<compile_context>
chip_gen: v6e
topology: v6e:2x2x1
jax: 0.10.0
libtpu: 0.0.40
codegen_flags: <defaults>
</compile_context>

<pallas_src>
import jax
import jax.numpy as jnp
from jax import lax
from jax.experimental import pallas as pl
from jax.experimental.pallas import tpu as pltpu

# -------- config: small but geometry-consistent with Down_classifer defaults ----
B = 2
L = 8                       # num tokens (small)
IN_DIM = 64                 # in_dim (ctor arg, only affects proj)
HIDDEN = 512                # hidden_dim -> head dim 128 -> conv chain 128->63->31
NUM_HEADS = 4
DH = HIDDEN // NUM_HEADS    # 128
NUM_CLASSES = 16
LN_EPS = 1e-5               # nn.LayerNorm default eps
H1 = (DH - 3) // 2 + 1      # 63  (conv1 output spatial)
H2 = (H1 - 3) // 2 + 1      # 31  (conv2 output spatial)
NREST = NUM_HEADS - 1       # 3 cov channels
FLAT = NREST * H2 * H2      # 2883, matches classifier2 in_features
_INV_SQRT2 = 0.7071067811865476
# F.normalize clamp (1e-12) folded together with the 1/L covariance scale:
#   (cov_raw/L) / max(||cov_raw/L||, 1e-12) == cov_raw * rsqrt(max(sumsq_raw, (L*1e-12)^2))
_NORM_EPS_SQ = (L * 1e-12) ** 2


# ------------------------------ fused kernel ------------------------------------
def _fused_kernel(x_ref, wp_ref, bp_ref, g_ref, beta_ref,
                  s1_ref, c1_ref, r2_ref, c2_ref, wcls_ref, bcls_ref, o_ref):
    # ---- projection: (L, IN_DIM) @ (IN_DIM, HIDDEN) + bias (f32) ----
    h = (jnp.dot(x_ref[0], wp_ref[...], preferred_element_type=jnp.float32)
         + bp_ref[...])                                          # (L, HIDDEN)
    g = g_ref[...]                                               # (1, DH)
    bt = beta_ref[...]                                           # (1, DH)

    def ln_center(t):                                            # t: (L, DH)
        mu = jnp.mean(t, axis=-1, keepdims=True)
        tc = t - mu
        var = jnp.mean(tc * tc, axis=-1, keepdims=True)
        y = tc * lax.rsqrt(var + LN_EPS) * g + bt
        # Covariance._remove_mean: subtract the per-sample global mean
        return y - jnp.mean(y)

    # head0 LayerNorm computed once; rest heads stacked along the lane axis.
    a = ln_center(h[:, 0:DH])                                    # (L, DH)
    c_stack = jnp.concatenate(
        [ln_center(h[:, i * DH:(i + 1) * DH]) for i in range(1, NUM_HEADS)],
        axis=1)                                                  # (L, 3*DH)

    # ---- raw cross-covariance (no 1/L), used ONLY for the per-column l2 norm ----
    cov_raw = lax.dot_general(a, c_stack, (((0,), (0,)), ((), ())),
                              preferred_element_type=jnp.float32)   # (DH, 3*DH)
    sumsq = jnp.sum(cov_raw * cov_raw, axis=0, keepdims=True)        # (1, 3*DH)
    inv_norm = lax.rsqrt(jnp.maximum(sumsq, _NORM_EPS_SQ))           # (1, 3*DH)

    # ---- conv1 (3x3 / stride 2, no bias): row selection on the cheap side,
    #      then ONE wide-K MXU matmul over the kh-stacked conv matrix ----------
    yk = []
    for kh in range(3):
        # a_kh[n, ho] = a[n, 2*ho + kh]   (one-hot selection, 8x128x63 MACs)
        a_kh = jnp.dot(a, s1_ref[kh], preferred_element_type=jnp.float32)
        # covk[ho, :] = cov_raw[2*ho + kh, :]   (recomputed on the cheap side)
        covk = lax.dot_general(a_kh, c_stack, (((0,), (0,)), ((), ())),
                               preferred_element_type=jnp.float32)   # (H1, 3*DH)
        yk.append(covk * inv_norm)                                   # normalized rows
    y1 = jnp.concatenate(yk, axis=1)                                 # (63, 1152)
    out1 = jnp.dot(y1.astype(jnp.bfloat16), c1_ref[...],
                   preferred_element_type=jnp.float32)               # (63, 189)

    # exact (erf) GELU — matches nn.GELU() default
    z = 0.5 * out1 * (1.0 + lax.erf(out1 * _INV_SQRT2))

    # ---- conv2 (3x3 / stride 2, no bias): tiny row-select matmuls + one wide-K ----
    zk = [jnp.dot(r2_ref[kh], z, preferred_element_type=jnp.float32)
          for kh in range(3)]                                        # 3 x (31, 189)
    y2 = jnp.concatenate(zk, axis=1)                                 # (31, 567)
    out2 = jnp.dot(y2.astype(jnp.bfloat16), c2_ref[...],
                   preferred_element_type=jnp.float32)               # (31, 93)

    # ---- classifier epilogue: per-class multiply + reduce (no big broadcast) ----
    cols = []
    for n in range(NUM_CLASSES):
        w_n = wcls_ref[n].astype(jnp.float32)                        # (31, 93)
        cols.append(jnp.sum(out2 * w_n, axis=1, keepdims=True))      # (31, 1)
    v = jnp.concatenate(cols, axis=1)                                # (31, 16)
    cls_row = jnp.sum(v, axis=0, keepdims=True)                      # (1, 16)
    o_ref[0] = cls_row + bcls_ref[...]


# --------------- wrapper-side construction of the conv matmul operands ----------
def _col_select(n_in, n_out):
    # S[kh, r, ho] = 1 if r == 2*ho + kh   (applied on the right of `a`)
    kh = jnp.arange(3).reshape(3, 1, 1)
    r = jnp.arange(n_in).reshape(1, n_in, 1)
    ho = jnp.arange(n_out).reshape(1, 1, n_out)
    return (r == 2 * ho + kh).astype(jnp.float32)                 # (3, n_in, n_out)


def _row_select(n_out, n_in):
    # R[kh, ho, r] = 1 if r == 2*ho + kh   (applied on the left of `z`)
    kh = jnp.arange(3).reshape(3, 1, 1)
    ho = jnp.arange(n_out).reshape(1, n_out, 1)
    r = jnp.arange(n_in).reshape(1, 1, n_in)
    return (r == 2 * ho + kh).astype(jnp.float32)                 # (3, n_out, n_in)


def _col_conv(w, n_in, n_out):
    # C[kh*3*n_in + ci*n_in + (2*wo+kw), co*n_out + wo] = w[co, ci, kh, kw]
    kw = jnp.arange(3).reshape(3, 1, 1)
    r = jnp.arange(n_in).reshape(1, n_in, 1)
    wo = jnp.arange(n_out).reshape(1, 1, n_out)
    s = (r == 2 * wo + kw).astype(jnp.float32)                    # (3, n_in, n_out)
    blocks = jnp.einsum("oihw,wrc->hiroc", w, s)                  # (kh,ci,n_in,co,n_out)
    return blocks.reshape(3 * NREST * n_in, NREST * n_out)        # kh-stacked wide-K


# --------------------------------- forward --------------------------------------
def down_classifier_forward(x, p):
    b_ = x.shape[0]
    s1 = _col_select(DH, H1)                                      # (3, 128, 63) f32
    r2 = _row_select(H2, H1)                                      # (3, 31, 63)  f32
    c1 = _col_conv(p["w_conv1"], DH, H1).astype(jnp.bfloat16)     # (1152, 189) bf16
    c2 = _col_conv(p["w_conv2"], H1, H2).astype(jnp.bfloat16)     # (567, 93)   bf16
    # classifier weight rearranged to match out2 layout [h2, co*H2 + w2]
    wcls_r = (p["w_cls"].reshape(NREST, H2, H2, NUM_CLASSES)
              .transpose(3, 1, 0, 2).reshape(NUM_CLASSES, H2, NREST * H2)
              .astype(jnp.bfloat16))                              # (16, 31, 93) bf16

    out = pl.pallas_call(
        _fused_kernel,
        out_shape=jax.ShapeDtypeStruct((b_, 1, NUM_CLASSES), jnp.float32),
        grid=(b_,),
        in_specs=[
            pl.BlockSpec((1, L, IN_DIM), lambda b: (b, 0, 0)),
            pl.BlockSpec((IN_DIM, HIDDEN), lambda b: (0, 0)),
            pl.BlockSpec((1, HIDDEN), lambda b: (0, 0)),
            pl.BlockSpec((1, DH), lambda b: (0, 0)),
            pl.BlockSpec((1, DH), lambda b: (0, 0)),
            pl.BlockSpec((3, DH, H1), lambda b: (0, 0, 0)),
            pl.BlockSpec((3 * NREST * DH, NREST * H1), lambda b: (0, 0)),
            pl.BlockSpec((3, H2, H1), lambda b: (0, 0, 0)),
            pl.BlockSpec((3 * NREST * H1, NREST * H2), lambda b: (0, 0)),
            pl.BlockSpec((NUM_CLASSES, H2, NREST * H2), lambda b: (0, 0, 0)),
            pl.BlockSpec((1, NUM_CLASSES), lambda b: (0, 0)),
        ],
        out_specs=pl.BlockSpec((1, 1, NUM_CLASSES), lambda b: (b, 0, 0)),
        compiler_params=pltpu.CompilerParams(
            dimension_semantics=("parallel",)),
    )(x, p["w_proj"], p["b_proj"].reshape(1, HIDDEN),
      p["ln_g"].reshape(1, DH), p["ln_b"].reshape(1, DH),
      s1, c1, r2, c2, wcls_r, p["b_cls"].reshape(1, NUM_CLASSES))
    return out.reshape(b_, NUM_CLASSES)


# ------------------------- pure-JAX reference (for checking) --------------------
def reference_forward(x, p):
    b_, l_, _ = x.shape
    h = x @ p["w_proj"] + p["b_proj"]
    h = h.reshape(b_, l_, NUM_HEADS, DH).transpose(2, 0, 1, 3)

    def ln(t):
        mu = t.mean(-1, keepdims=True)
        var = ((t - mu) ** 2).mean(-1, keepdims=True)
        return (t - mu) / jnp.sqrt(var + LN_EPS) * p["ln_g"] + p["ln_b"]

    def rm(t):
        return t - t.mean(axis=(1, 2), keepdims=True)

    a = rm(ln(h[0]))
    covs = []
    for i in range(1, NUM_HEADS):
        c = rm(ln(h[i]))
        cov = jnp.einsum("bnd,bne->bde", a, c) / l_
        norm = jnp.sqrt((cov ** 2).sum(axis=1, keepdims=True))
        covs.append(cov / jnp.maximum(norm, 1e-12))
    cov_list = jnp.stack(covs, axis=1)
    dn = ("NCHW", "OIHW", "NCHW")
    y = lax.conv_general_dilated(cov_list, p["w_conv1"], (2, 2), "VALID",
                                 dimension_numbers=dn)
    y = 0.5 * y * (1.0 + lax.erf(y * _INV_SQRT2))
    y = lax.conv_general_dilated(y, p["w_conv2"], (2, 2), "VALID",
                                 dimension_numbers=dn)
    return y.reshape(b_, -1) @ p["w_cls"] + p["b_cls"]


if __name__ == "__main__":
    key = jax.random.PRNGKey(0)
    ks = jax.random.split(key, 8)
    params = {
        "w_proj": 0.05 * jax.random.normal(ks[0], (IN_DIM, HIDDEN), jnp.float32),
        "b_proj": 0.05 * jax.random.normal(ks[1], (HIDDEN,), jnp.float32),
        "ln_g": jnp.ones((DH,), jnp.float32),      # nn.LayerNorm default init
        "ln_b": jnp.zeros((DH,), jnp.float32),
        "w_conv1": 0.2 * jax.random.normal(ks[2], (3, 3, 3, 3), jnp.float32),
        "w_conv2": 0.2 * jax.random.normal(ks[3], (3, 3, 3, 3), jnp.float32),
        "w_cls": 0.05 * jax.random.normal(ks[4], (FLAT, NUM_CLASSES), jnp.float32),
        "b_cls": 0.05 * jax.random.normal(ks[5], (NUM_CLASSES,), jnp.float32),
    }
    x = jax.random.normal(ks[6], (B, L, IN_DIM), jnp.float32)

    out = jax.jit(down_classifier_forward)(x, params)
    out = jax.block_until_ready(out)

    ref = reference_forward(x, params)
    assert out.shape == (B, NUM_CLASSES)
    assert bool(jnp.all(jnp.isfinite(out)))
    max_err = float(jnp.max(jnp.abs(out - ref)))
    assert max_err < 1e-2, f"max abs err vs reference: {max_err}"
    print("KERNEL_OK")
</pallas_src>

<mosaic_0001>
module attributes {stable_mosaic.version = 11 : i64} {
  func.func @_fused_kernel(%arg0: i32, %arg1: memref<1x8x64xf32, #tpu.memory_space<vmem>>, %arg2: memref<64x512xf32, #tpu.memory_space<vmem>>, %arg3: memref<1x512xf32, #tpu.memory_space<vmem>>, %arg4: memref<1x128xf32, #tpu.memory_space<vmem>>, %arg5: memref<1x128xf32, #tpu.memory_space<vmem>>, %arg6: memref<3x128x63xf32, #tpu.memory_space<vmem>>, %arg7: memref<1152x189xbf16, #tpu.memory_space<vmem>>, %arg8: memref<3x31x63xf32, #tpu.memory_space<vmem>>, %arg9: memref<567x93xbf16, #tpu.memory_space<vmem>>, %arg10: memref<16x31x93xbf16, #tpu.memory_space<vmem>>, %arg11: memref<1x16xf32, #tpu.memory_space<vmem>>, %arg12: memref<1x1x16xf32, #tpu.memory_space<vmem>>) attributes {dimension_semantics = [#tpu.dimension_semantics<parallel>], iteration_bounds = array<i64: 2>, scalar_prefetch = 0 : i64, scratch_operands = 0 : i64, tpu.core_type = #tpu.core_type<tc>, window_params = [{transform_indices = @transform_0, window_bounds = array<i64: 1, 8, 64>}, {pipeline_mode = #tpu.pipeline_mode<synchronous>, transform_indices = @transform_1, window_bounds = array<i64: 64, 512>}, {pipeline_mode = #tpu.pipeline_mode<synchronous>, transform_indices = @transform_2, window_bounds = array<i64: 1, 512>}, {pipeline_mode = #tpu.pipeline_mode<synchronous>, transform_indices = @transform_3, window_bounds = array<i64: 1, 128>}, {pipeline_mode = #tpu.pipeline_mode<synchronous>, transform_indices = @transform_4, window_bounds = array<i64: 1, 128>}, {pipeline_mode = #tpu.pipeline_mode<synchronous>, transform_indices = @transform_5, window_bounds = array<i64: 3, 128, 63>}, {pipeline_mode = #tpu.pipeline_mode<synchronous>, transform_indices = @transform_6, window_bounds = array<i64: 1152, 189>}, {pipeline_mode = #tpu.pipeline_mode<synchronous>, transform_indices = @transform_7, window_bounds = array<i64: 3, 31, 63>}, {pipeline_mode = #tpu.pipeline_mode<synchronous>, transform_indices = @transform_8, window_bounds = array<i64: 567, 93>}, {pipeline_mode = #tpu.pipeline_mode<synchronous>, transform_indices = @transform_9, window_bounds = array<i64: 16, 31, 93>}, {pipeline_mode = #tpu.pipeline_mode<synchronous>, transform_indices = @transform_10, window_bounds = array<i64: 1, 16>}, {transform_indices = @transform_11, window_bounds = array<i64: 1, 1, 16>}]} {
    %c0 = arith.constant 0 : index
    %c0_0 = arith.constant 0 : index
    %c0_1 = arith.constant 0 : index
    %0 = vector.load %arg1[%c0, %c0_0, %c0_1] : memref<1x8x64xf32, #tpu.memory_space<vmem>>, vector<1x8x64xf32>
    %1 = vector.shape_cast %0 : vector<1x8x64xf32> to vector<8x64xf32>
    %c0_2 = arith.constant 0 : index
    %c0_3 = arith.constant 0 : index
    %2 = vector.load %arg2[%c0_2, %c0_3] : memref<64x512xf32, #tpu.memory_space<vmem>>, vector<64x512xf32>
    %cst = arith.constant dense<0.000000e+00> : vector<8x512xf32>
    %3 = tpu.matmul %1, %2, %cst {dimension_numbers = #tpu.dot_dimension_numbers<[1], [0], [0], [1], [0, 0, 1, 1], [], []>} : vector<8x64xf32>, vector<64x512xf32>, vector<8x512xf32> -> vector<8x512xf32>
    %c0_4 = arith.constant 0 : index
    %c0_5 = arith.constant 0 : index
    %4 = vector.load %arg3[%c0_4, %c0_5] : memref<1x512xf32, #tpu.memory_space<vmem>>, vector<1x512xf32>
    %5 = vector.broadcast %4 : vector<1x512xf32> to vector<8x512xf32>
    %6 = arith.addf %3, %5 : vector<8x512xf32>
    %c0_6 = arith.constant 0 : index
    %c0_7 = arith.constant 0 : index
    %7 = vector.load %arg4[%c0_6, %c0_7] : memref<1x128xf32, #tpu.memory_space<vmem>>, vector<1x128xf32>
    %c0_8 = arith.constant 0 : index
    %c0_9 = arith.constant 0 : index
    %8 = vector.load %arg5[%c0_8, %c0_9] : memref<1x128xf32, #tpu.memory_space<vmem>>, vector<1x128xf32>
    %9 = vector.extract_strided_slice %6 {offsets = [0, 0], sizes = [8, 128], strides = [1, 1]} : vector<8x512xf32> to vector<8x128xf32>
    %cst_10 = arith.constant dense<0.000000e+00> : vector<8xf32>
    %10 = vector.multi_reduction <add>, %9, %cst_10 [1] : vector<8x128xf32> to vector<8xf32>
    %11 = vector.shape_cast %10 : vector<8xf32> to vector<8x1xf32>
    %cst_11 = arith.constant 1.280000e+02 : f32
    %12 = vector.broadcast %cst_11 : f32 to vector<8x1xf32>
    %13 = arith.divf %11, %12 : vector<8x1xf32>
    %14 = vector.broadcast %13 : vector<8x1xf32> to vector<8x128xf32>
    %15 = arith.subf %9, %14 : vector<8x128xf32>
    %16 = arith.mulf %15, %15 : vector<8x128xf32>
    %cst_12 = arith.constant dense<0.000000e+00> : vector<8xf32>
    %17 = vector.multi_reduction <add>, %16, %cst_12 [1] : vector<8x128xf32> to vector<8xf32>
    %18 = vector.shape_cast %17 : vector<8xf32> to vector<8x1xf32>
    %cst_13 = arith.constant 1.280000e+02 : f32
    %19 = vector.broadcast %cst_13 : f32 to vector<8x1xf32>
    %20 = arith.divf %18, %19 : vector<8x1xf32>
    %cst_14 = arith.constant 9.99999974E-6 : f32
    %21 = vector.broadcast %cst_14 : f32 to vector<8x1xf32>
    %22 = arith.addf %20, %21 : vector<8x1xf32>
    %23 = math.rsqrt %22 : vector<8x1xf32>
    %24 = vector.broadcast %23 : vector<8x1xf32> to vector<8x128xf32>
    %25 = arith.mulf %15, %24 : vector<8x128xf32>
    %26 = vector.broadcast %7 : vector<1x128xf32> to vector<8x128xf32>
    %27 = arith.mulf %25, %26 : vector<8x128xf32>
    %28 = vector.broadcast %8 : vector<1x128xf32> to vector<8x128xf32>
    %29 = arith.addf %27, %28 : vector<8x128xf32>
    %30 = vector.shape_cast %29 : vector<8x128xf32> to vector<1x8x128xf32>
    %cst_15 = arith.constant dense<0.000000e+00> : vector<1xf32>
    %31 = vector.multi_reduction <add>, %30, %cst_15 [1, 2] : vector<1x8x128xf32> to vector<1xf32>
    %32 = vector.shape_cast %31 : vector<1xf32> to vector<1x1x1xf32>
    %33 = vector.extract %32[0, 0, 0] : f32 from vector<1x1x1xf32>
    %cst_16 = arith.constant 1.024000e+03 : f32
    %34 = arith.divf %33, %cst_16 : f32
    %35 = vector.broadcast %34 : f32 to vector<8x128xf32>
    %36 = arith.subf %29, %35 : vector<8x128xf32>
    %37 = vector.extract_strided_slice %6 {offsets = [0, 128], sizes = [8, 128], strides = [1, 1]} : vector<8x512xf32> to vector<8x128xf32>
    %cst_17 = arith.constant dense<0.000000e+00> : vector<8xf32>
    %38 = vector.multi_reduction <add>, %37, %cst_17 [1] : vector<8x128xf32> to vector<8xf32>
    %39 = vector.shape_cast %38 : vector<8xf32> to vector<8x1xf32>
    %cst_18 = arith.constant 1.280000e+02 : f32
    %40 = vector.broadcast %cst_18 : f32 to vector<8x1xf32>
    %41 = arith.divf %39, %40 : vector<8x1xf32>
    %42 = vector.broadcast %41 : vector<8x1xf32> to vector<8x128xf32>
    %43 = arith.subf %37, %42 : vector<8x128xf32>
    %44 = arith.mulf %43, %43 : vector<8x128xf32>
    %cst_19 = arith.constant dense<0.000000e+00> : vector<8xf32>
    %45 = vector.multi_reduction <add>, %44, %cst_19 [1] : vector<8x128xf32> to vector<8xf32>
    %46 = vector.shape_cast %45 : vector<8xf32> to vector<8x1xf32>
    %cst_20 = arith.constant 1.280000e+02 : f32
    %47 = vector.broadcast %cst_20 : f32 to vector<8x1xf32>
    %48 = arith.divf %46, %47 : vector<8x1xf32>
    %cst_21 = arith.constant 9.99999974E-6 : f32
    %49 = vector.broadcast %cst_21 : f32 to vector<8x1xf32>
    %50 = arith.addf %48, %49 : vector<8x1xf32>
    %51 = math.rsqrt %50 : vector<8x1xf32>
    %52 = vector.broadcast %51 : vector<8x1xf32> to vector<8x128xf32>
    %53 = arith.mulf %43, %52 : vector<8x128xf32>
    %54 = vector.broadcast %7 : vector<1x128xf32> to vector<8x128xf32>
    %55 = arith.mulf %53, %54 : vector<8x128xf32>
    %56 = vector.broadcast %8 : vector<1x128xf32> to vector<8x128xf32>
    %57 = arith.addf %55, %56 : vector<8x128xf32>
    %58 = vector.shape_cast %57 : vector<8x128xf32> to vector<1x8x128xf32>
    %cst_22 = arith.constant dense<0.000000e+00> : vector<1xf32>
    %59 = vector.multi_reduction <add>, %58, %cst_22 [1, 2] : vector<1x8x128xf32> to vector<1xf32>
    %60 = vector.shape_cast %59 : vector<1xf32> to vector<1x1x1xf32>
    %61 = vector.extract %60[0, 0, 0] : f32 from vector<1x1x1xf32>
    %cst_23 = arith.constant 1.024000e+03 : f32
    %62 = arith.divf %61, %cst_23 : f32
    %63 = vector.broadcast %62 : f32 to vector<8x128xf32>
    %64 = arith.subf %57, %63 : vector<8x128xf32>
    %65 = vector.extract_strided_slice %6 {offsets = [0, 256], sizes = [8, 128], strides = [1, 1]} : vector<8x512xf32> to vector<8x128xf32>
    %cst_24 = arith.constant dense<0.000000e+00> : vector<8xf32>
    %66 = vector.multi_reduction <add>, %65, %cst_24 [1] : vector<8x128xf32> to vector<8xf32>
    %67 = vector.shape_cast %66 : vector<8xf32> to vector<8x1xf32>
    %cst_25 = arith.constant 1.280000e+02 : f32
    %68 = vector.broadcast %cst_25 : f32 to vector<8x1xf32>
    %69 = arith.divf %67, %68 : vector<8x1xf32>
    %70 = vector.broadcast %69 : vector<8x1xf32> to vector<8x128xf32>
    %71 = arith.subf %65, %70 : vector<8x128xf32>
    %72 = arith.mulf %71, %71 : vector<8x128xf32>
    %cst_26 = arith.constant dense<0.000000e+00> : vector<8xf32>
    %73 = vector.multi_reduction <add>, %72, %cst_26 [1] : vector<8x128xf32> to vector<8xf32>
    %74 = vector.shape_cast %73 : vector<8xf32> to vector<8x1xf32>
    %cst_27 = arith.constant 1.280000e+02 : f32
    %75 = vector.broadcast %cst_27 : f32 to vector<8x1xf32>
    %76 = arith.divf %74, %75 : vector<8x1xf32>
    %cst_28 = arith.constant 9.99999974E-6 : f32
    %77 = vector.broadcast %cst_28 : f32 to vector<8x1xf32>
    %78 = arith.addf %76, %77 : vector<8x1xf32>
    %79 = math.rsqrt %78 : vector<8x1xf32>
    %80 = vector.broadcast %79 : vector<8x1xf32> to vector<8x128xf32>
    %81 = arith.mulf %71, %80 : vector<8x128xf32>
    %82 = vector.broadcast %7 : vector<1x128xf32> to vector<8x128xf32>
    %83 = arith.mulf %81, %82 : vector<8x128xf32>
    %84 = vector.broadcast %8 : vector<1x128xf32> to vector<8x128xf32>
    %85 = arith.addf %83, %84 : vector<8x128xf32>
    %86 = vector.shape_cast %85 : vector<8x128xf32> to vector<1x8x128xf32>
    %cst_29 = arith.constant dense<0.000000e+00> : vector<1xf32>
    %87 = vector.multi_reduction <add>, %86, %cst_29 [1, 2] : vector<1x8x128xf32> to vector<1xf32>
    %88 = vector.shape_cast %87 : vector<1xf32> to vector<1x1x1xf32>
    %89 = vector.extract %88[0, 0, 0] : f32 from vector<1x1x1xf32>
    %cst_30 = arith.constant 1.024000e+03 : f32
    %90 = arith.divf %89, %cst_30 : f32
    %91 = vector.broadcast %90 : f32 to vector<8x128xf32>
    %92 = arith.subf %85, %91 : vector<8x128xf32>
    %93 = vector.extract_strided_slice %6 {offsets = [0, 384], sizes = [8, 128], strides = [1, 1]} : vector<8x512xf32> to vector<8x128xf32>
    %cst_31 = arith.constant dense<0.000000e+00> : vector<8xf32>
    %94 = vector.multi_reduction <add>, %93, %cst_31 [1] : vector<8x128xf32> to vector<8xf32>
    %95 = vector.shape_cast %94 : vector<8xf32> to vector<8x1xf32>
    %cst_32 = arith.constant 1.280000e+02 : f32
    %96 = vector.broadcast %cst_32 : f32 to vector<8x1xf32>
    %97 = arith.divf %95, %96 : vector<8x1xf32>
    %98 = vector.broadcast %97 : vector<8x1xf32> to vector<8x128xf32>
    %99 = arith.subf %93, %98 : vector<8x128xf32>
    %100 = arith.mulf %99, %99 : vector<8x128xf32>
    %cst_33 = arith.constant dense<0.000000e+00> : vector<8xf32>
    %101 = vector.multi_reduction <add>, %100, %cst_33 [1] : vector<8x128xf32> to vector<8xf32>
    %102 = vector.shape_cast %101 : vector<8xf32> to vector<8x1xf32>
    %cst_34 = arith.constant 1.280000e+02 : f32
    %103 = vector.broadcast %cst_34 : f32 to vector<8x1xf32>
    %104 = arith.divf %102, %103 : vector<8x1xf32>
    %cst_35 = arith.constant 9.99999974E-6 : f32
    %105 = vector.broadcast %cst_35 : f32 to vector<8x1xf32>
    %106 = arith.addf %104, %105 : vector<8x1xf32>
    %107 = math.rsqrt %106 : vector<8x1xf32>
    %108 = vector.broadcast %107 : vector<8x1xf32> to vector<8x128xf32>
    %109 = arith.mulf %99, %108 : vector<8x128xf32>
    %110 = vector.broadcast %7 : vector<1x128xf32> to vector<8x128xf32>
    %111 = arith.mulf %109, %110 : vector<8x128xf32>
    %112 = vector.broadcast %8 : vector<1x128xf32> to vector<8x128xf32>
    %113 = arith.addf %111, %112 : vector<8x128xf32>
    %114 = vector.shape_cast %113 : vector<8x128xf32> to vector<1x8x128xf32>
    %cst_36 = arith.constant dense<0.000000e+00> : vector<1xf32>
    %115 = vector.multi_reduction <add>, %114, %cst_36 [1, 2] : vector<1x8x128xf32> to vector<1xf32>
    %116 = vector.shape_cast %115 : vector<1xf32> to vector<1x1x1xf32>
    %117 = vector.extract %116[0, 0, 0] : f32 from vector<1x1x1xf32>
    %cst_37 = arith.constant 1.024000e+03 : f32
    %118 = arith.divf %117, %cst_37 : f32
    %119 = vector.broadcast %118 : f32 to vector<8x128xf32>
    %120 = arith.subf %113, %119 : vector<8x128xf32>
    %121 = tpu.concatenate %64, %92, %120 in 1 : vector<8x128xf32>, vector<8x128xf32>, vector<8x128xf32> -> vector<8x384xf32>
    %cst_38 = arith.constant dense<0.000000e+00> : vector<128x384xf32>
    %122 = tpu.matmul %36, %121, %cst_38 {dimension_numbers = #tpu.dot_dimension_numbers<[0], [0], [1], [1], [0, 1, 1, 1], [], []>} : vector<8x128xf32>, vector<8x384xf32>, vector<128x384xf32> -> vector<128x384xf32>
    %123 = arith.mulf %122, %122 : vector<128x384xf32>
    %cst_39 = arith.constant dense<0.000000e+00> : vector<384xf32>
    %124 = vector.multi_reduction <add>, %123, %cst_39 [0] : vector<128x384xf32> to vector<384xf32>
    %125 = vector.shape_cast %124 : vector<384xf32> to vector<1x384xf32>
    %cst_40 = arith.constant 6.400000e-23 : f32
    %126 = vector.broadcast %cst_40 : f32 to vector<1x384xf32>
    %127 = arith.maximumf %125, %126 : vector<1x384xf32>
    %128 = math.rsqrt %127 : vector<1x384xf32>
    %c0_41 = arith.constant 0 : index
    %c0_42 = arith.constant 0 : index
    %c0_43 = arith.constant 0 : index
    %129 = vector.load %arg6[%c0_41, %c0_42, %c0_43] : memref<3x128x63xf32, #tpu.memory_space<vmem>>, vector<1x128x63xf32>
    %130 = vector.shape_cast %129 : vector<1x128x63xf32> to vector<128x63xf32>
    %cst_44 = arith.constant dense<0.000000e+00> : vector<8x63xf32>
    %131 = tpu.matmul %36, %130, %cst_44 {dimension_numbers = #tpu.dot_dimension_numbers<[1], [0], [0], [1], [0, 0, 1, 1], [], []>} : vector<8x128xf32>, vector<128x63xf32>, vector<8x63xf32> -> vector<8x63xf32>
    %cst_45 = arith.constant dense<0.000000e+00> : vector<63x384xf32>
    %132 = tpu.matmul %131, %121, %cst_45 {dimension_numbers = #tpu.dot_dimension_numbers<[0], [0], [1], [1], [0, 1, 1, 1], [], []>} : vector<8x63xf32>, vector<8x384xf32>, vector<63x384xf32> -> vector<63x384xf32>
    %133 = vector.broadcast %128 : vector<1x384xf32> to vector<63x384xf32>
    %134 = arith.mulf %132, %133 : vector<63x384xf32>
    %c1 = arith.constant 1 : index
    %c0_46 = arith.constant 0 : index
    %c0_47 = arith.constant 0 : index
    %135 = vector.load %arg6[%c1, %c0_46, %c0_47] : memref<3x128x63xf32, #tpu.memory_space<vmem>>, vector<1x128x63xf32>
    %136 = vector.shape_cast %135 : vector<1x128x63xf32> to vector<128x63xf32>
    %cst_48 = arith.constant dense<0.000000e+00> : vector<8x63xf32>
    %137 = tpu.matmul %36, %136, %cst_48 {dimension_numbers = #tpu.dot_dimension_numbers<[1], [0], [0], [1], [0, 0, 1, 1], [], []>} : vector<8x128xf32>, vector<128x63xf32>, vector<8x63xf32> -> vector<8x63xf32>
    %cst_49 = arith.constant dense<0.000000e+00> : vector<63x384xf32>
    %138 = tpu.matmul %137, %121, %cst_49 {dimension_numbers = #tpu.dot_dimension_numbers<[0], [0], [1], [1], [0, 1, 1, 1], [], []>} : vector<8x63xf32>, vector<8x384xf32>, vector<63x384xf32> -> vector<63x384xf32>
    %139 = vector.broadcast %128 : vector<1x384xf32> to vector<63x384xf32>
    %140 = arith.mulf %138, %139 : vector<63x384xf32>
    %c2 = arith.constant 2 : index
    %c0_50 = arith.constant 0 : index
    %c0_51 = arith.constant 0 : index
    %141 = vector.load %arg6[%c2, %c0_50, %c0_51] : memref<3x128x63xf32, #tpu.memory_space<vmem>>, vector<1x128x63xf32>
    %142 = vector.shape_cast %141 : vector<1x128x63xf32> to vector<128x63xf32>
    %cst_52 = arith.constant dense<0.000000e+00> : vector<8x63xf32>
    %143 = tpu.matmul %36, %142, %cst_52 {dimension_numbers = #tpu.dot_dimension_numbers<[1], [0], [0], [1], [0, 0, 1, 1], [], []>} : vector<8x128xf32>, vector<128x63xf32>, vector<8x63xf32> -> vector<8x63xf32>
    %cst_53 = arith.constant dense<0.000000e+00> : vector<63x384xf32>
    %144 = tpu.matmul %143, %121, %cst_53 {dimension_numbers = #tpu.dot_dimension_numbers<[0], [0], [1], [1], [0, 1, 1, 1], [], []>} : vector<8x63xf32>, vector<8x384xf32>, vector<63x384xf32> -> vector<63x384xf32>
    %145 = vector.broadcast %128 : vector<1x384xf32> to vector<63x384xf32>
    %146 = arith.mulf %144, %145 : vector<63x384xf32>
    %147 = tpu.concatenate %134, %140, %146 in 1 : vector<63x384xf32>, vector<63x384xf32>, vector<63x384xf32> -> vector<63x1152xf32>
    %148 = arith.truncf %147 : vector<63x1152xf32> to vector<63x1152xbf16>
    %c0_54 = arith.constant 0 : index
    %c0_55 = arith.constant 0 : index
    %149 = vector.load %arg7[%c0_54, %c0_55] : memref<1152x189xbf16, #tpu.memory_space<vmem>>, vector<1152x189xbf16>
    %cst_56 = arith.constant dense<0.000000e+00> : vector<63x189xf32>
    %150 = tpu.matmul %148, %149, %cst_56 {dimension_numbers = #tpu.dot_dimension_numbers<[1], [0], [0], [1], [0, 0, 1, 1], [], []>} : vector<63x1152xbf16>, vector<1152x189xbf16>, vector<63x189xf32> -> vector<63x189xf32>
    %cst_57 = arith.constant 5.000000e-01 : f32
    %151 = vector.broadcast %cst_57 : f32 to vector<63x189xf32>
    %152 = arith.mulf %151, %150 : vector<63x189xf32>
    %cst_58 = arith.constant 0.707106769 : f32
    %153 = vector.broadcast %cst_58 : f32 to vector<63x189xf32>
    %154 = arith.mulf %150, %153 : vector<63x189xf32>
    %155 = math.erf %154 : vector<63x189xf32>
    %cst_59 = arith.constant 1.000000e+00 : f32
    %156 = vector.broadcast %cst_59 : f32 to vector<63x189xf32>
    %157 = arith.addf %156, %155 : vector<63x189xf32>
    %158 = arith.mulf %152, %157 : vector<63x189xf32>
    %c0_60 = arith.constant 0 : index
    %c0_61 = arith.constant 0 : index
    %c0_62 = arith.constant 0 : index
    %159 = vector.load %arg8[%c0_60, %c0_61, %c0_62] : memref<3x31x63xf32, #tpu.memory_space<vmem>>, vector<1x31x63xf32>
    %160 = vector.shape_cast %159 : vector<1x31x63xf32> to vector<31x63xf32>
    %cst_63 = arith.constant dense<0.000000e+00> : vector<31x189xf32>
    %161 = tpu.matmul %160, %158, %cst_63 {dimension_numbers = #tpu.dot_dimension_numbers<[1], [0], [0], [1], [0, 0, 1, 1], [], []>} : vector<31x63xf32>, vector<63x189xf32>, vector<31x189xf32> -> vector<31x189xf32>
    %c1_64 = arith.constant 1 : index
    %c0_65 = arith.constant 0 : index
    %c0_66 = arith.constant 0 : index
    %162 = vector.load %arg8[%c1_64, %c0_65, %c0_66] : memref<3x31x63xf32, #tpu.memory_space<vmem>>, vector<1x31x63xf32>
    %163 = vector.shape_cast %162 : vector<1x31x63xf32> to vector<31x63xf32>
    %cst_67 = arith.constant dense<0.000000e+00> : vector<31x189xf32>
    %164 = tpu.matmul %163, %158, %cst_67 {dimension_numbers = #tpu.dot_dimension_numbers<[1], [0], [0], [1], [0, 0, 1, 1], [], []>} : vector<31x63xf32>, vector<63x189xf32>, vector<31x189xf32> -> vector<31x189xf32>
    %c2_68 = arith.constant 2 : index
    %c0_69 = arith.constant 0 : index
    %c0_70 = arith.constant 0 : index
    %165 = vector.load %arg8[%c2_68, %c0_69, %c0_70] : memref<3x31x63xf32, #tpu.memory_space<vmem>>, vector<1x31x63xf32>
    %166 = vector.shape_cast %165 : vector<1x31x63xf32> to vector<31x63xf32>
    %cst_71 = arith.constant dense<0.000000e+00> : vector<31x189xf32>
    %167 = tpu.matmul %166, %158, %cst_71 {dimension_numbers = #tpu.dot_dimension_numbers<[1], [0], [0], [1], [0, 0, 1, 1], [], []>} : vector<31x63xf32>, vector<63x189xf32>, vector<31x189xf32> -> vector<31x189xf32>
    %168 = tpu.concatenate %161, %164, %167 in 1 : vector<31x189xf32>, vector<31x189xf32>, vector<31x189xf32> -> vector<31x567xf32>
    %169 = arith.truncf %168 : vector<31x567xf32> to vector<31x567xbf16>
    %c0_72 = arith.constant 0 : index
    %c0_73 = arith.constant 0 : index
    %170 = vector.load %arg9[%c0_72, %c0_73] : memref<567x93xbf16, #tpu.memory_space<vmem>>, vector<567x93xbf16>
    %cst_74 = arith.constant dense<0.000000e+00> : vector<31x93xf32>
    %171 = tpu.matmul %169, %170, %cst_74 {dimension_numbers = #tpu.dot_dimension_numbers<[1], [0], [0], [1], [0, 0, 1, 1], [], []>} : vector<31x567xbf16>, vector<567x93xbf16>, vector<31x93xf32> -> vector<31x93xf32>
    %c0_75 = arith.constant 0 : index
    %c0_76 = arith.constant 0 : index
    %c0_77 = arith.constant 0 : index
    %172 = vector.load %arg10[%c0_75, %c0_76, %c0_77] : memref<16x31x93xbf16, #tpu.memory_space<vmem>>, vector<1x31x93xbf16>
    %173 = vector.shape_cast %172 : vector<1x31x93xbf16> to vector<31x93xbf16>
    %174 = arith.extf %173 : vector<31x93xbf16> to vector<31x93xf32>
    %175 = arith.mulf %171, %174 : vector<31x93xf32>
    %cst_78 = arith.constant dense<0.000000e+00> : vector<31xf32>
    %176 = vector.multi_reduction <add>, %175, %cst_78 [1] : vector<31x93xf32> to vector<31xf32>
    %177 = vector.shape_cast %176 : vector<31xf32> to vector<31x1xf32>
    %c1_79 = arith.constant 1 : index
    %c0_80 = arith.constant 0 : index
    %c0_81 = arith.constant 0 : index
    %178 = vector.load %arg10[%c1_79, %c0_80, %c0_81] : memref<16x31x93xbf16, #tpu.memory_space<vmem>>, vector<1x31x93xbf16>
    %179 = vector.shape_cast %178 : vector<1x31x93xbf16> to vector<31x93xbf16>
    %180 = arith.extf %179 : vector<31x93xbf16> to vector<31x93xf32>
    %181 = arith.mulf %171, %180 : vector<31x93xf32>
    %cst_82 = arith.constant dense<0.000000e+00> : vector<31xf32>
    %182 = vector.multi_reduction <add>, %181, %cst_82 [1] : vector<31x93xf32> to vector<31xf32>
    %183 = vector.shape_cast %182 : vector<31xf32> to vector<31x1xf32>
    %c2_83 = arith.constant 2 : index
    %c0_84 = arith.constant 0 : index
    %c0_85 = arith.constant 0 : index
    %184 = vector.load %arg10[%c2_83, %c0_84, %c0_85] : memref<16x31x93xbf16, #tpu.memory_space<vmem>>, vector<1x31x93xbf16>
    %185 = vector.shape_cast %184 : vector<1x31x93xbf16> to vector<31x93xbf16>
    %186 = arith.extf %185 : vector<31x93xbf16> to vector<31x93xf32>
    %187 = arith.mulf %171, %186 : vector<31x93xf32>
    %cst_86 = arith.constant dense<0.000000e+00> : vector<31xf32>
    %188 = vector.multi_reduction <add>, %187, %cst_86 [1] : vector<31x93xf32> to vector<31xf32>
    %189 = vector.shape_cast %188 : vector<31xf32> to vector<31x1xf32>
    %c3 = arith.constant 3 : index
    %c0_87 = arith.constant 0 : index
    %c0_88 = arith.constant 0 : index
    %190 = vector.load %arg10[%c3, %c0_87, %c0_88] : memref<16x31x93xbf16, #tpu.memory_space<vmem>>, vector<1x31x93xbf16>
    %191 = vector.shape_cast %190 : vector<1x31x93xbf16> to vector<31x93xbf16>
    %192 = arith.extf %191 : vector<31x93xbf16> to vector<31x93xf32>
    %193 = arith.mulf %171, %192 : vector<31x93xf32>
    %cst_89 = arith.constant dense<0.000000e+00> : vector<31xf32>
    %194 = vector.multi_reduction <add>, %193, %cst_89 [1] : vector<31x93xf32> to vector<31xf32>
    %195 = vector.shape_cast %194 : vector<31xf32> to vector<31x1xf32>
    %c4 = arith.constant 4 : index
    %c0_90 = arith.constant 0 : index
    %c0_91 = arith.constant 0 : index
    %196 = vector.load %arg10[%c4, %c0_90, %c0_91] : memref<16x31x93xbf16, #tpu.memory_space<vmem>>, vector<1x31x93xbf16>
    %197 = vector.shape_cast %196 : vector<1x31x93xbf16> to vector<31x93xbf16>
    %198 = arith.extf %197 : vector<31x93xbf16> to vector<31x93xf32>
    %199 = arith.mulf %171, %198 : vector<31x93xf32>
    %cst_92 = arith.constant dense<0.000000e+00> : vector<31xf32>
    %200 = vector.multi_reduction <add>, %199, %cst_92 [1] : vector<31x93xf32> to vector<31xf32>
    %201 = vector.shape_cast %200 : vector<31xf32> to vector<31x1xf32>
    %c5 = arith.constant 5 : index
    %c0_93 = arith.constant 0 : index
    %c0_94 = arith.constant 0 : index
    %202 = vector.load %arg10[%c5, %c0_93, %c0_94] : memref<16x31x93xbf16, #tpu.memory_space<vmem>>, vector<1x31x93xbf16>
    %203 = vector.shape_cast %202 : vector<1x31x93xbf16> to vector<31x93xbf16>
    %204 = arith.extf %203 : vector<31x93xbf16> to vector<31x93xf32>
    %205 = arith.mulf %171, %204 : vector<31x93xf32>
    %cst_95 = arith.constant dense<0.000000e+00> : vector<31xf32>
    %206 = vector.multi_reduction <add>, %205, %cst_95 [1] : vector<31x93xf32> to vector<31xf32>
    %207 = vector.shape_cast %206 : vector<31xf32> to vector<31x1xf32>
    %c6 = arith.constant 6 : index
    %c0_96 = arith.constant 0 : index
    %c0_97 = arith.constant 0 : index
    %208 = vector.load %arg10[%c6, %c0_96, %c0_97] : memref<16x31x93xbf16, #tpu.memory_space<vmem>>, vector<1x31x93xbf16>
    %209 = vector.shape_cast %208 : vector<1x31x93xbf16> to vector<31x93xbf16>
    %210 = arith.extf %209 : vector<31x93xbf16> to vector<31x93xf32>
    %211 = arith.mulf %171, %210 : vector<31x93xf32>
    %cst_98 = arith.constant dense<0.000000e+00> : vector<31xf32>
    %212 = vector.multi_reduction <add>, %211, %cst_98 [1] : vector<31x93xf32> to vector<31xf32>
    %213 = vector.shape_cast %212 : vector<31xf32> to vector<31x1xf32>
    %c7 = arith.constant 7 : index
    %c0_99 = arith.constant 0 : index
    %c0_100 = arith.constant 0 : index
    %214 = vector.load %arg10[%c7, %c0_99, %c0_100] : memref<16x31x93xbf16, #tpu.memory_space<vmem>>, vector<1x31x93xbf16>
    %215 = vector.shape_cast %214 : vector<1x31x93xbf16> to vector<31x93xbf16>
    %216 = arith.extf %215 : vector<31x93xbf16> to vector<31x93xf32>
    %217 = arith.mulf %171, %216 : vector<31x93xf32>
    %cst_101 = arith.constant dense<0.000000e+00> : vector<31xf32>
    %218 = vector.multi_reduction <add>, %217, %cst_101 [1] : vector<31x93xf32> to vector<31xf32>
    %219 = vector.shape_cast %218 : vector<31xf32> to vector<31x1xf32>
    %c8 = arith.constant 8 : index
    %c0_102 = arith.constant 0 : index
    %c0_103 = arith.constant 0 : index
    %220 = vector.load %arg10[%c8, %c0_102, %c0_103] : memref<16x31x93xbf16, #tpu.memory_space<vmem>>, vector<1x31x93xbf16>
    %221 = vector.shape_cast %220 : vector<1x31x93xbf16> to vector<31x93xbf16>
    %222 = arith.extf %221 : vector<31x93xbf16> to vector<31x93xf32>
    %223 = arith.mulf %171, %222 : vector<31x93xf32>
    %cst_104 = arith.constant dense<0.000000e+00> : vector<31xf32>
    %224 = vector.multi_reduction <add>, %223, %cst_104 [1] : vector<31x93xf32> to vector<31xf32>
    %225 = vector.shape_cast %224 : vector<31xf32> to vector<31x1xf32>
    %c9 = arith.constant 9 : index
    %c0_105 = arith.constant 0 : index
    %c0_106 = arith.constant 0 : index
    %226 = vector.load %arg10[%c9, %c0_105, %c0_106] : memref<16x31x93xbf16, #tpu.memory_space<vmem>>, vector<1x31x93xbf16>
    %227 = vector.shape_cast %226 : vector<1x31x93xbf16> to vector<31x93xbf16>
    %228 = arith.extf %227 : vector<31x93xbf16> to vector<31x93xf32>
    %229 = arith.mulf %171, %228 : vector<31x93xf32>
    %cst_107 = arith.constant dense<0.000000e+00> : vector<31xf32>
    %230 = vector.multi_reduction <add>, %229, %cst_107 [1] : vector<31x93xf32> to vector<31xf32>
    %231 = vector.shape_cast %230 : vector<31xf32> to vector<31x1xf32>
    %c10 = arith.constant 10 : index
    %c0_108 = arith.constant 0 : index
    %c0_109 = arith.constant 0 : index
    %232 = vector.load %arg10[%c10, %c0_108, %c0_109] : memref<16x31x93xbf16, #tpu.memory_space<vmem>>, vector<1x31x93xbf16>
    %233 = vector.shape_cast %232 : vector<1x31x93xbf16> to vector<31x93xbf16>
    %234 = arith.extf %233 : vector<31x93xbf16> to vector<31x93xf32>
    %235 = arith.mulf %171, %234 : vector<31x93xf32>
    %cst_110 = arith.constant dense<0.000000e+00> : vector<31xf32>
    %236 = vector.multi_reduction <add>, %235, %cst_110 [1] : vector<31x93xf32> to vector<31xf32>
    %237 = vector.shape_cast %236 : vector<31xf32> to vector<31x1xf32>
    %c11 = arith.constant 11 : index
    %c0_111 = arith.constant 0 : index
    %c0_112 = arith.constant 0 : index
    %238 = vector.load %arg10[%c11, %c0_111, %c0_112] : memref<16x31x93xbf16, #tpu.memory_space<vmem>>, vector<1x31x93xbf16>
    %239 = vector.shape_cast %238 : vector<1x31x93xbf16> to vector<31x93xbf16>
    %240 = arith.extf %239 : vector<31x93xbf16> to vector<31x93xf32>
    %241 = arith.mulf %171, %240 : vector<31x93xf32>
    %cst_113 = arith.constant dense<0.000000e+00> : vector<31xf32>
    %242 = vector.multi_reduction <add>, %241, %cst_113 [1] : vector<31x93xf32> to vector<31xf32>
    %243 = vector.shape_cast %242 : vector<31xf32> to vector<31x1xf32>
    %c12 = arith.constant 12 : index
    %c0_114 = arith.constant 0 : index
    %c0_115 = arith.constant 0 : index
    %244 = vector.load %arg10[%c12, %c0_114, %c0_115] : memref<16x31x93xbf16, #tpu.memory_space<vmem>>, vector<1x31x93xbf16>
    %245 = vector.shape_cast %244 : vector<1x31x93xbf16> to vector<31x93xbf16>
    %246 = arith.extf %245 : vector<31x93xbf16> to vector<31x93xf32>
    %247 = arith.mulf %171, %246 : vector<31x93xf32>
    %cst_116 = arith.constant dense<0.000000e+00> : vector<31xf32>
    %248 = vector.multi_reduction <add>, %247, %cst_116 [1] : vector<31x93xf32> to vector<31xf32>
    %249 = vector.shape_cast %248 : vector<31xf32> to vector<31x1xf32>
    %c13 = arith.constant 13 : index
    %c0_117 = arith.constant 0 : index
    %c0_118 = arith.constant 0 : index
    %250 = vector.load %arg10[%c13, %c0_117, %c0_118] : memref<16x31x93xbf16, #tpu.memory_space<vmem>>, vector<1x31x93xbf16>
    %251 = vector.shape_cast %250 : vector<1x31x93xbf16> to vector<31x93xbf16>
    %252 = arith.extf %251 : vector<31x93xbf16> to vector<31x93xf32>
    %253 = arith.mulf %171, %252 : vector<31x93xf32>
    %cst_119 = arith.constant dense<0.000000e+00> : vector<31xf32>
    %254 = vector.multi_reduction <add>, %253, %cst_119 [1] : vector<31x93xf32> to vector<31xf32>
    %255 = vector.shape_cast %254 : vector<31xf32> to vector<31x1xf32>
    %c14 = arith.constant 14 : index
    %c0_120 = arith.constant 0 : index
    %c0_121 = arith.constant 0 : index
    %256 = vector.load %arg10[%c14, %c0_120, %c0_121] : memref<16x31x93xbf16, #tpu.memory_space<vmem>>, vector<1x31x93xbf16>
    %257 = vector.shape_cast %256 : vector<1x31x93xbf16> to vector<31x93xbf16>
    %258 = arith.extf %257 : vector<31x93xbf16> to vector<31x93xf32>
    %259 = arith.mulf %171, %258 : vector<31x93xf32>
    %cst_122 = arith.constant dense<0.000000e+00> : vector<31xf32>
    %260 = vector.multi_reduction <add>, %259, %cst_122 [1] : vector<31x93xf32> to vector<31xf32>
    %261 = vector.shape_cast %260 : vector<31xf32> to vector<31x1xf32>
    %c15 = arith.constant 15 : index
    %c0_123 = arith.constant 0 : index
    %c0_124 = arith.constant 0 : index
    %262 = vector.load %arg10[%c15, %c0_123, %c0_124] : memref<16x31x93xbf16, #tpu.memory_space<vmem>>, vector<1x31x93xbf16>
    %263 = vector.shape_cast %262 : vector<1x31x93xbf16> to vector<31x93xbf16>
    %264 = arith.extf %263 : vector<31x93xbf16> to vector<31x93xf32>
    %265 = arith.mulf %171, %264 : vector<31x93xf32>
    %cst_125 = arith.constant dense<0.000000e+00> : vector<31xf32>
    %266 = vector.multi_reduction <add>, %265, %cst_125 [1] : vector<31x93xf32> to vector<31xf32>
    %267 = vector.shape_cast %266 : vector<31xf32> to vector<31x1xf32>
    %268 = tpu.concatenate %177, %183, %189, %195, %201, %207, %213, %219, %225, %231, %237, %243, %249, %255, %261, %267 in 1 : vector<31x1xf32>, vector<31x1xf32>, vector<31x1xf32>, vector<31x1xf32>, vector<31x1xf32>, vector<31x1xf32>, vector<31x1xf32>, vector<31x1xf32>, vector<31x1xf32>, vector<31x1xf32>, vector<31x1xf32>, vector<31x1xf32>, vector<31x1xf32>, vector<31x1xf32>, vector<31x1xf32>, vector<31x1xf32> -> vector<31x16xf32>
    %cst_126 = arith.constant dense<0.000000e+00> : vector<16xf32>
    %269 = vector.multi_reduction <add>, %268, %cst_126 [0] : vector<31x16xf32> to vector<16xf32>
    %270 = vector.shape_cast %269 : vector<16xf32> to vector<1x16xf32>
    %c0_127 = arith.constant 0 : index
    %c0_128 = arith.constant 0 : index
    %271 = vector.load %arg11[%c0_127, %c0_128] : memref<1x16xf32, #tpu.memory_space<vmem>>, vector<1x16xf32>
    %272 = arith.addf %270, %271 : vector<1x16xf32>
    %c0_129 = arith.constant 0 : index
    %c0_130 = arith.constant 0 : index
    %c0_131 = arith.constant 0 : index
    %273 = vector.load %arg12[%c0_129, %c0_130, %c0_131] : memref<1x1x16xf32, #tpu.memory_space<vmem>>, vector<1x1x16xf32>
    %274 = vector.shape_cast %273 : vector<1x1x16xf32> to vector<1x16xf32>
    %275 = vector.shape_cast %272 : vector<1x16xf32> to vector<1x1x16xf32>
    tpu.vector_store %arg12[%c0_129, %c0_130, %c0_131], %275 {strides = array<i32>} : memref<1x1x16xf32, #tpu.memory_space<vmem>>, vector<1x1x16xf32>,
    return
  }
  func.func @transform_0(%arg0: i32) -> (i32, i32, i32) {
    %c0_i32 = arith.constant 0 : i32
    %c0_i32_0 = arith.constant 0 : i32
    %c0_i32_1 = arith.constant 0 : i32
    return %arg0, %c0_i32, %c0_i32_0 : i32, i32, i32
  }
  func.func @transform_1(%arg0: i32) -> (i32, i32) {
    %c0_i32 = arith.constant 0 : i32
    %c0_i32_0 = arith.constant 0 : i32
    %c0_i32_1 = arith.constant 0 : i32
    return %c0_i32, %c0_i32_0 : i32, i32
  }
  func.func @transform_2(%arg0: i32) -> (i32, i32) {
    %c0_i32 = arith.constant 0 : i32
    %c0_i32_0 = arith.constant 0 : i32
    %c0_i32_1 = arith.constant 0 : i32
    return %c0_i32, %c0_i32_0 : i32, i32
  }
  func.func @transform_3(%arg0: i32) -> (i32, i32) {
    %c0_i32 = arith.constant 0 : i32
    %c0_i32_0 = arith.constant 0 : i32
    %c0_i32_1 = arith.constant 0 : i32
    return %c0_i32, %c0_i32_0 : i32, i32
  }
  func.func @transform_4(%arg0: i32) -> (i32, i32) {
    %c0_i32 = arith.constant 0 : i32
    %c0_i32_0 = arith.constant 0 : i32
    %c0_i32_1 = arith.constant 0 : i32
    return %c0_i32, %c0_i32_0 : i32, i32
  }
  func.func @transform_5(%arg0: i32) -> (i32, i32, i32) {
    %c0_i32 = arith.constant 0 : i32
    %c0_i32_0 = arith.constant 0 : i32
    %c0_i32_1 = arith.constant 0 : i32
    %c0_i32_2 = arith.constant 0 : i32
    return %c0_i32, %c0_i32_0, %c0_i32_1 : i32, i32, i32
  }
  func.func @transform_6(%arg0: i32) -> (i32, i32) {
    %c0_i32 = arith.constant 0 : i32
    %c0_i32_0 = arith.constant 0 : i32
    %c0_i32_1 = arith.constant 0 : i32
    return %c0_i32, %c0_i32_0 : i32, i32
  }
  func.func @transform_7(%arg0: i32) -> (i32, i32, i32) {
    %c0_i32 = arith.constant 0 : i32
    %c0_i32_0 = arith.constant 0 : i32
    %c0_i32_1 = arith.constant 0 : i32
    %c0_i32_2 = arith.constant 0 : i32
    return %c0_i32, %c0_i32_0, %c0_i32_1 : i32, i32, i32
  }
  func.func @transform_8(%arg0: i32) -> (i32, i32) {
    %c0_i32 = arith.constant 0 : i32
    %c0_i32_0 = arith.constant 0 : i32
    %c0_i32_1 = arith.constant 0 : i32
    return %c0_i32, %c0_i32_0 : i32, i32
  }
  func.func @transform_9(%arg0: i32) -> (i32, i32, i32) {
    %c0_i32 = arith.constant 0 : i32
    %c0_i32_0 = arith.constant 0 : i32
    %c0_i32_1 = arith.constant 0 : i32
    %c0_i32_2 = arith.constant 0 : i32
    return %c0_i32, %c0_i32_0, %c0_i32_1 : i32, i32, i32
  }
  func.func @transform_10(%arg0: i32) -> (i32, i32) {
    %c0_i32 = arith.constant 0 : i32
    %c0_i32_0 = arith.constant 0 : i32
    %c0_i32_1 = arith.constant 0 : i32
    return %c0_i32, %c0_i32_0 : i32, i32
  }
  func.func @transform_11(%arg0: i32) -> (i32, i32, i32) {
    %c0_i32 = arith.constant 0 : i32
    %c0_i32_0 = arith.constant 0 : i32
    %c0_i32_1 = arith.constant 0 : i32
    return %arg0, %c0_i32, %c0_i32_0 : i32, i32, i32
  }
}

</mosaic_0001>

<llo_original>
// kernel: down_classifier_forward.1
$region0: #{down_classifier_forward.1}
  #allocation0 [shape = 'u32[]', space=smem, size = 0x4, offset = 0x4, fixed_abs, tag = 'smem constant byte address 0x4 - core index']
  #allocation1 [shape = 'u32[144,128]{1,0:T(1,128)}', space=vmem, size = 0x12000, scoped, tag = 'internal scratch']
  %s0 = inlined_call_operand.vmem [shape: f32[2,8,64], index: 0, kind: input, shape index: {}]
  %s1 = inlined_call_operand.vmem [shape: f32[64,512], index: 1, kind: input, shape index: {}]
  %s2 = inlined_call_operand.vmem [shape: f32[1,512], index: 2, kind: input, shape index: {}]
  %s3 = inlined_call_operand.vmem [shape: f32[1,128], index: 3, kind: input, shape index: {}]
  %s4 = inlined_call_operand.vmem [shape: f32[1,128], index: 4, kind: input, shape index: {}]
  %s5 = inlined_call_operand.vmem [shape: f32[3,128,63], index: 5, kind: input, shape index: {}]
  %s6 = inlined_call_operand.vmem [shape: bf16[1152,189], index: 6, kind: input, shape index: {}]
  %s7 = inlined_call_operand.vmem [shape: f32[3,31,63], index: 7, kind: input, shape index: {}]
  %s8 = inlined_call_operand.vmem [shape: bf16[567,93], index: 8, kind: input, shape index: {}]
  %s9 = inlined_call_operand.vmem [shape: bf16[16,31,93], index: 9, kind: input, shape index: {}]
  %s10 = inlined_call_operand.vmem [shape: f32[1,16], index: 10, kind: input, shape index: {}]
  %s11 = inlined_call_operand.hbm [shape: f32[2,1,16], index: 11, kind: output, shape index: {}]
  %s12 = sld [smem:[#allocation0]]
  $region77: #{down_classifier_forward.1} parent=0
    _
  %s14 = ssub.s32 1, %s12
  %s15 = scalar_select 0, %s14, %s12
  $region1: #{down_classifier_forward.1} parent=0
    #allocation2 [shape = 'u8[1024]{0}', space=vmem, size = 0x400, scoped, tag = 'output window, operand 0']
    #allocation3 [shape = 's32[2]{0}', space=sflag, size = 0x8, scoped, tag = 'scoped memory for down_classifier_forward.1']
    %16 = vsyncpa [#allocation3], 0
    %s17 = scalar_lea.sflag [#allocation3], 1
    %18 = vsyncpa %s17, 0
    loop: start=0, step=1, limit=4
    $region2: #{down_classifier_forward.1} parent=1 // loop_pre_header
      _
    $region3: #{down_classifier_forward.1} parent=1 // loop_header
      %s20 = sphi 0, %s24
      %p21 = scmp.ge.s32.totalorder %s20, 4
      %s30 = sphi 0, %s32
      %s33 = sphi 0, %s30
      %s34 = sphi 0, %s33
      %s50 = sphi 0, %s34
      %s54 = sphi 0, %s54
      %s56 = sphi 0, %s54
      %s57 = sphi 0, %s56
      %s71 = sphi 0, %s57
      %s75 = sphi 0, %s75
      %s77 = sphi 0, %s75
      %s78 = sphi 0, %s77
      %s92 = sphi 0, %s78
      %s96 = sphi 0, %s96
      %s98 = sphi 0, %s96
      %s99 = sphi 0, %s98
      %s113 = sphi 0, %s99
      %s117 = sphi 0, %s117
      %s119 = sphi 0, %s117
      %s120 = sphi 0, %s119
      %s134 = sphi 0, %s120
      %s138 = sphi 0, %s138
      %s140 = sphi 0, %s138
      %s141 = sphi 0, %s140
      %s155 = sphi 0, %s141
      %s159 = sphi 0, %s159
      %s161 = sphi 0, %s159
      %s162 = sphi 0, %s161
      %s176 = sphi 0, %s162
      %s180 = sphi 0, %s180
      %s182 = sphi 0, %s180
      %s183 = sphi 0, %s182
      %s197 = sphi 0, %s183
      %s201 = sphi 0, %s201
      %s203 = sphi 0, %s201
      %s204 = sphi 0, %s203
      %s218 = sphi 0, %s204
      %s222 = sphi 0, %s222
      %s224 = sphi 0, %s222
      %s225 = sphi 0, %s224
      %s239 = sphi 0, %s225
      %s243 = sphi 0, %s243
      %s245 = sphi 0, %s243
      %s246 = sphi 0, %s245
      %s260 = sphi 0, %s246
      %s266 = sphi 0, %s268
      %s269 = sphi 0, %s266
      %s270 = sphi 0, %s269
      %s286 = sphi 0, %s270
    $region4: #{down_classifier_forward.1} parent=1 // loop_header_branch
      %23 = sbr.rel (%p21) target = $region8
    $region5: #{down_classifier_forward.1} parent=1 // loop_body
      %s25 = ssub.s32 %s20, 1
      %s26 = ssub.s32 %s20, 2
      %s27 = sadd.s32 %s20, 1
      %s28 = ssub.s32 %s20, %s27
      %p29 = scmp.eq.s32.totalorder %s28, 0
      %s31 = sadd.s32 %s30, 1
      %s32 = scalar_select %p29, %s30, %s31
      %p35 = pneg %p29
      %p36 = scmp.eq.s32.totalorder %s20, 1
      %p37 = por %p35, %p36
      %p38 = scmp.ne.s32.totalorder %s30, %s33
      %p39 = scmp.eq.s32.totalorder %s20, 0
      %p40 = por %p38, %p39
      %p41 = scmp.ne.s32.totalorder %s30, %s33
      %p42 = scmp.eq.s32.totalorder %s25, 1
      %p43 = por %p41, %p42
      %p44 = scmp.ne.s32.totalorder %s33, %s34
      %p45 = scmp.eq.s32.totalorder %s25, 0
      %p46 = por %p44, %p45
      %p47 = scmp.ne.s32.totalorder %s33, %s34
      %p48 = scmp.eq.s32.totalorder %s26, 1
      %p49 = por %p47, %p48
      %p51 = scmp.ne.s32.totalorder %s34, %s50
      %p52 = scmp.eq.s32.totalorder %s26, 0
      %p53 = por %p51, %p52
      %s55 = sadd.s32 %s54, 1
      %p58 = scmp.eq.s32.totalorder %s20, 1
      %p59 = scmp.ne.s32.totalorder %s54, %s56
      %p60 = scmp.eq.s32.totalorder %s20, 0
      %p61 = por %p59, %p60
      %p62 = scmp.ne.s32.totalorder %s54, %s56
      %p63 = scmp.eq.s32.totalorder %s25, 1
      %p64 = por %p62, %p63
      %p65 = scmp.ne.s32.totalorder %s56, %s57
      %p66 = scmp.eq.s32.totalorder %s25, 0
      %p67 = por %p65, %p66
      %p68 = scmp.ne.s32.totalorder %s56, %s57
      %p69 = scmp.eq.s32.totalorder %s26, 1
      %p70 = por %p68, %p69
      %p72 = scmp.ne.s32.totalorder %s57, %s71
      %p73 = scmp.eq.s32.totalorder %s26, 0
      %p74 = por %p72, %p73
      %s76 = sadd.s32 %s75, 1
      %p79 = scmp.eq.s32.totalorder %s20, 1
      %p80 = scmp.ne.s32.totalorder %s75, %s77
      %p81 = scmp.eq.s32.totalorder %s20, 0
      %p82 = por %p80, %p81
      %p83 = scmp.ne.s32.totalorder %s75, %s77
      %p84 = scmp.eq.s32.totalorder %s25, 1
      %p85 = por %p83, %p84
      %p86 = scmp.ne.s32.totalorder %s77, %s78
      %p87 = scmp.eq.s32.totalorder %s25, 0
      %p88 = por %p86, %p87
      %p89 = scmp.ne.s32.totalorder %s77, %s78
      %p90 = scmp.eq.s32.totalorder %s26, 1
      %p91 = por %p89, %p90
      %p93 = scmp.ne.s32.totalorder %s78, %s92
      %p94 = scmp.eq.s32.totalorder %s26, 0
      %p95 = por %p93, %p94
      %s97 = sadd.s32 %s96, 1
      %p100 = scmp.eq.s32.totalorder %s20, 1
      %p101 = scmp.ne.s32.totalorder %s96, %s98
      %p102 = scmp.eq.s32.totalorder %s20, 0
      %p103 = por %p101, %p102
      %p104 = scmp.ne.s32.totalorder %s96, %s98
      %p105 = scmp.eq.s32.totalorder %s25, 1
      %p106 = por %p104, %p105
      %p107 = scmp.ne.s32.totalorder %s98, %s99
      %p108 = scmp.eq.s32.totalorder %s25, 0
      %p109 = por %p107, %p108
      %p110 = scmp.ne.s32.totalorder %s98, %s99
      %p111 = scmp.eq.s32.totalorder %s26, 1
      %p112 = por %p110, %p111
      %p114 = scmp.ne.s32.totalorder %s99, %s113
      %p115 = scmp.eq.s32.totalorder %s26, 0
      %p116 = por %p114, %p115
      %s118 = sadd.s32 %s117, 1
      %p121 = scmp.eq.s32.totalorder %s20, 1
      %p122 = scmp.ne.s32.totalorder %s117, %s119
      %p123 = scmp.eq.s32.totalorder %s20, 0
      %p124 = por %p122, %p123
      %p125 = scmp.ne.s32.totalorder %s117, %s119
      %p126 = scmp.eq.s32.totalorder %s25, 1
      %p127 = por %p125, %p126
      %p128 = scmp.ne.s32.totalorder %s119, %s120
      %p129 = scmp.eq.s32.totalorder %s25, 0
      %p130 = por %p128, %p129
      %p131 = scmp.ne.s32.totalorder %s119, %s120
      %p132 = scmp.eq.s32.totalorder %s26, 1
      %p133 = por %p131, %p132
      %p135 = scmp.ne.s32.totalorder %s120, %s134
      %p136 = scmp.eq.s32.totalorder %s26, 0
      %p137 = por %p135, %p136
      %s139 = sadd.s32 %s138, 1
      %p142 = scmp.eq.s32.totalorder %s20, 1
      %p143 = scmp.ne.s32.totalorder %s138, %s140
      %p144 = scmp.eq.s32.totalorder %s20, 0
      %p145 = por %p143, %p144
      %p146 = scmp.ne.s32.totalorder %s138, %s140
      %p147 = scmp.eq.s32.totalorder %s25, 1
      %p148 = por %p146, %p147
      %p149 = scmp.ne.s32.totalorder %s140, %s141
      %p150 = scmp.eq.s32.totalorder %s25, 0
      %p151 = por %p149, %p150
      %p152 = scmp.ne.s32.totalorder %s140, %s141
      %p153 = scmp.eq.s32.totalorder %s26, 1
      %p154 = por %p152, %p153
      %p156 = scmp.ne.s32.totalorder %s141, %s155
      %p157 = scmp.eq.s32.totalorder %s26, 0
      %p158 = por %p156, %p157
      %s160 = sadd.s32 %s159, 1
      %p163 = scmp.eq.s32.totalorder %s20, 1
      %p164 = scmp.ne.s32.totalorder %s159, %s161
      %p165 = scmp.eq.s32.totalorder %s20, 0
      %p166 = por %p164, %p165
      %p167 = scmp.ne.s32.totalorder %s159, %s161
      %p168 = scmp.eq.s32.totalorder %s25, 1
      %p169 = por %p167, %p168
      %p170 = scmp.ne.s32.totalorder %s161, %s162
      %p171 = scmp.eq.s32.totalorder %s25, 0
      %p172 = por %p170, %p171
      %p173 = scmp.ne.s32.totalorder %s161, %s162
      %p174 = scmp.eq.s32.totalorder %s26, 1
      %p175 = por %p173, %p174
      %p177 = scmp.ne.s32.totalorder %s162, %s176
      %p178 = scmp.eq.s32.totalorder %s26, 0
      %p179 = por %p177, %p178
      %s181 = sadd.s32 %s180, 1
      %p184 = scmp.eq.s32.totalorder %s20, 1
      %p185 = scmp.ne.s32.totalorder %s180, %s182
      %p186 = scmp.eq.s32.totalorder %s20, 0
      %p187 = por %p185, %p186
      %p188 = scmp.ne.s32.totalorder %s180, %s182
      %p189 = scmp.eq.s32.totalorder %s25, 1
      %p190 = por %p188, %p189
      %p191 = scmp.ne.s32.totalorder %s182, %s183
      %p192 = scmp.eq.s32.totalorder %s25, 0
      %p193 = por %p191, %p192
      %p194 = scmp.ne.s32.totalorder %s182, %s183
      %p195 = scmp.eq.s32.totalorder %s26, 1
      %p196 = por %p194, %p195
      %p198 = scmp.ne.s32.totalorder %s183, %s197
      %p199 = scmp.eq.s32.totalorder %s26, 0
      %p200 = por %p198, %p199
      %s202 = sadd.s32 %s201, 1
      %p205 = scmp.eq.s32.totalorder %s20, 1
      %p206 = scmp.ne.s32.totalorder %s201, %s203
      %p207 = scmp.eq.s32.totalorder %s20, 0
      %p208 = por %p206, %p207
      %p209 = scmp.ne.s32.totalorder %s201, %s203
      %p210 = scmp.eq.s32.totalorder %s25, 1
      %p211 = por %p209, %p210
      %p212 = scmp.ne.s32.totalorder %s203, %s204
      %p213 = scmp.eq.s32.totalorder %s25, 0
      %p214 = por %p212, %p213
      %p215 = scmp.ne.s32.totalorder %s203, %s204
      %p216 = scmp.eq.s32.totalorder %s26, 1
      %p217 = por %p215, %p216
      %p219 = scmp.ne.s32.totalorder %s204, %s218
      %p220 = scmp.eq.s32.totalorder %s26, 0
      %p221 = por %p219, %p220
      %s223 = sadd.s32 %s222, 1
      %p226 = scmp.eq.s32.totalorder %s20, 1
      %p227 = scmp.ne.s32.totalorder %s222, %s224
      %p228 = scmp.eq.s32.totalorder %s20, 0
      %p229 = por %p227, %p228
      %p230 = scmp.ne.s32.totalorder %s222, %s224
      %p231 = scmp.eq.s32.totalorder %s25, 1
      %p232 = por %p230, %p231
      %p233 = scmp.ne.s32.totalorder %s224, %s225
      %p234 = scmp.eq.s32.totalorder %s25, 0
      %p235 = por %p233, %p234
      %p236 = scmp.ne.s32.totalorder %s224, %s225
      %p237 = scmp.eq.s32.totalorder %s26, 1
      %p238 = por %p236, %p237
      %p240 = scmp.ne.s32.totalorder %s225, %s239
      %p241 = scmp.eq.s32.totalorder %s26, 0
      %p242 = por %p240, %p241
      %s244 = sadd.s32 %s243, 1
      %p247 = scmp.eq.s32.totalorder %s20, 1
      %p248 = scmp.ne.s32.totalorder %s243, %s245
      %p249 = scmp.eq.s32.totalorder %s20, 0
      %p250 = por %p248, %p249
      %p251 = scmp.ne.s32.totalorder %s243, %s245
      %p252 = scmp.eq.s32.totalorder %s25, 1
      %p253 = por %p251, %p252
      %p254 = scmp.ne.s32.totalorder %s245, %s246
      %p255 = scmp.eq.s32.totalorder %s25, 0
      %p256 = por %p254, %p255
      %p257 = scmp.ne.s32.totalorder %s245, %s246
      %p258 = scmp.eq.s32.totalorder %s26, 1
      %p259 = por %p257, %p258
      %p261 = scmp.ne.s32.totalorder %s246, %s260
      %p262 = scmp.eq.s32.totalorder %s26, 0
      %p263 = por %p261, %p262
      %s264 = ssub.s32 %s20, %s27
      %p265 = scmp.eq.s32.totalorder %s264, 0
      %s267 = sadd.s32 %s266, 1
      %s268 = scalar_select %p265, %s266, %s267
      %p271 = pneg %p265
      %p272 = scmp.eq.s32.totalorder %s20, 1
      %p273 = por %p271, %p272
      %p274 = scmp.ne.s32.totalorder %s266, %s269
      %p275 = scmp.eq.s32.totalorder %s20, 0
      %p276 = por %p274, %p275
      %p277 = scmp.ne.s32.totalorder %s266, %s269
      %p278 = scmp.eq.s32.totalorder %s25, 1
      %p279 = por %p277, %p278
      %p280 = scmp.ne.s32.totalorder %s269, %s270
      %p281 = scmp.eq.s32.totalorder %s25, 0
      %p282 = por %p280, %p281
      %p283 = scmp.ne.s32.totalorder %s269, %s270
      %p284 = scmp.eq.s32.totalorder %s26, 1
      %p285 = por %p283, %p284
      %p287 = scmp.ne.s32.totalorder %s270, %s286
      %p288 = scmp.eq.s32.totalorder %s26, 0
      %p289 = por %p287, %p288
      %p290 = scmp.le.s32.totalorder 1, %s20
      %p291 = scmp.lt.s32.totalorder %s20, 3
      %p292 = pnand %p290, %p291
      %p293 = pneg %p292
      // Predicated region
      $region9: #{down_classifier_forward.1} parent=5 // pred_check
        _
      $region10: #{down_classifier_forward.1} parent=5 // pred_check_branch
        %295 = sbr.rel (%p292) target = $region12
      $region11: #{down_classifier_forward.1} parent=5 // pred_region
        %s296 = ssub.s32 %s20, 1
        // Predicated region
        $region13: #{down_classifier_forward.1} parent=11 // pred_check
          %p297 = pneg %p67
        $region14: #{down_classifier_forward.1} parent=11 // pred_check_branch
          %299 = sbr.rel (%p297) target = $region16
        $region15: #{down_classifier_forward.1} parent=11 // pred_region
          _
        $region16: #{down_classifier_forward.1} parent=11 // pred_fallthru
          _
        // Predicated region
        $region17: #{down_classifier_forward.1} parent=11 // pred_check
          %p300 = pneg %p88
        $region18: #{down_classifier_forward.1} parent=11 // pred_check_branch
          %302 = sbr.rel (%p300) target = $region20
        $region19: #{down_classifier_forward.1} parent=11 // pred_region
          _
        $region20: #{down_classifier_forward.1} parent=11 // pred_fallthru
          _
        // Predicated region
        $region21: #{down_classifier_forward.1} parent=11 // pred_check
          %p303 = pneg %p109
        $region22: #{down_classifier_forward.1} parent=11 // pred_check_branch
          %305 = sbr.rel (%p303) target = $region24
        $region23: #{down_classifier_forward.1} parent=11 // pred_region
          _
        $region24: #{down_classifier_forward.1} parent=11 // pred_fallthru
          _
        // Predicated region
        $region25: #{down_classifier_forward.1} parent=11 // pred_check
          %p306 = pneg %p130
        $region26: #{down_classifier_forward.1} parent=11 // pred_check_branch
          %308 = sbr.rel (%p306) target = $region28
        $region27: #{down_classifier_forward.1} parent=11 // pred_region
          _
        $region28: #{down_classifier_forward.1} parent=11 // pred_fallthru
          _
        // Predicated region
        $region29: #{down_classifier_forward.1} parent=11 // pred_check
          %p309 = pneg %p151
        $region30: #{down_classifier_forward.1} parent=11 // pred_check_branch
          %311 = sbr.rel (%p309) target = $region32
        $region31: #{down_classifier_forward.1} parent=11 // pred_region
          _
        $region32: #{down_classifier_forward.1} parent=11 // pred_fallthru
          _
        // Predicated region
        $region33: #{down_classifier_forward.1} parent=11 // pred_check
          %p312 = pneg %p172
        $region34: #{down_classifier_forward.1} parent=11 // pred_check_branch
          %314 = sbr.rel (%p312) target = $region36
        $region35: #{down_classifier_forward.1} parent=11 // pred_region
          _
        $region36: #{down_classifier_forward.1} parent=11 // pred_fallthru
          _
        // Predicated region
        $region37: #{down_classifier_forward.1} parent=11 // pred_check
          %p315 = pneg %p193
        $region38: #{down_classifier_forward.1} parent=11 // pred_check_branch
          %317 = sbr.rel (%p315) target = $region40
        $region39: #{down_classifier_forward.1} parent=11 // pred_region
          _
        $region40: #{down_classifier_forward.1} parent=11 // pred_fallthru
          _
        // Predicated region
        $region41: #{down_classifier_forward.1} parent=11 // pred_check
          %p318 = pneg %p214
        $region42: #{down_classifier_forward.1} parent=11 // pred_check_branch
          %320 = sbr.rel (%p318) target = $region44
        $region43: #{down_classifier_forward.1} parent=11 // pred_region
          _
        $region44: #{down_classifier_forward.1} parent=11 // pred_fallthru
          _
        // Predicated region
        $region45: #{down_classifier_forward.1} parent=11 // pred_check
          %p321 = pneg %p235
        $region46: #{down_classifier_forward.1} parent=11 // pred_check_branch
          %323 = sbr.rel (%p321) target = $region48
        $region47: #{down_classifier_forward.1} parent=11 // pred_region
          _
        $region48: #{down_classifier_forward.1} parent=11 // pred_fallthru
          _
        // Predicated region
        $region49: #{down_classifier_forward.1} parent=11 // pred_check
          %p324 = pneg %p256
        $region50: #{down_classifier_forward.1} parent=11 // pred_check_branch
          %326 = sbr.rel (%p324) target = $region52
        $region51: #{down_classifier_forward.1} parent=11 // pred_region
          _
        $region52: #{down_classifier_forward.1} parent=11 // pred_fallthru
          _
      $region12: #{down_classifier_forward.1} parent=5 // pred_fallthru
        _
      %p327 = scmp.lt.s32.totalorder %s20, 2
      // Predicated region
      $region53: #{down_classifier_forward.1} parent=5 // pred_check
        %p328 = pneg %p327
      $region54: #{down_classifier_forward.1} parent=5 // pred_check_branch
        %330 = sbr.rel (%p328) target = $region56
      $region55: #{down_classifier_forward.1} parent=5 // pred_region
        // Predicated region
        $region57: #{down_classifier_forward.1} parent=55 // pred_check
          %p331 = pneg %p40
        $region58: #{down_classifier_forward.1} parent=55 // pred_check_branch
          %333 = sbr.rel (%p331) target = $region60
        $region59: #{down_classifier_forward.1} parent=55 // pred_region
          %p334 = scmp.lt.s32.totalorder %s20, 1
          %s335 = scalar_select %p334, %s20, 1
          %s336 = smul.addr %s335, 8
          %s337 = scalar_lea.vmem %s0, %s336
        $region60: #{down_classifier_forward.1} parent=55 // pred_fallthru
          _
      $region56: #{down_classifier_forward.1} parent=5 // pred_fallthru
        _
      %p338 = scmp.le.s32.totalorder 1, %s20
      %p339 = scmp.lt.s32.totalorder %s20, 3
      %p340 = pnand %p338, %p339
      %p341 = pneg %p340
      // Predicated region
      $region61: #{down_classifier_forward.1} parent=5 // pred_check
        _
      $region62: #{down_classifier_forward.1} parent=5 // pred_check_branch
        %343 = sbr.rel (%p340) target = $region64
      $region63: #{down_classifier_forward.1} parent=5 // pred_region
        %s344 = ssub.s32 %s20, 1
        %p345 = scmp.lt.s32.totalorder %s25, 1
        %s346 = scalar_select %p345, %s25, 1
        %s347 = smul.addr %s346, 8
        %s348 = scalar_lea.vmem %s0, %s347
        %p349 = pneg %p46
        %p350 = pneg %p43
        %p351 = pneg %p67
        %p352 = pneg %p64
        %p353 = pneg %p88
        %p354 = pneg %p85
        %p355 = pneg %p109
        %p356 = pneg %p106
        %p357 = pneg %p130
        %p358 = pneg %p127
        %p359 = pneg %p151
        %p360 = pneg %p148
        %p361 = pneg %p172
        %p362 = pneg %p169
        %p363 = pneg %p193
        %p364 = pneg %p190
        %p365 = pneg %p214
        %p366 = pneg %p211
        %p367 = pneg %p235
        %p368 = pneg %p232
        %p369 = pneg %p256
        %p370 = pneg %p253
        %p371 = pneg %p282
        %p372 = pneg %p279
        %s373 = sand.u32 %s269, 1
        %s374 = scalar_lea.sflag [#allocation3], %s373
        %s375 = sand.u32 %s269, 1
        %s376 = scalar_lea.vmem [#allocation2], %s375
        %p377 = scmp.lt.s32.totalorder %s25, 1
        %s378 = scalar_select %p377, %s25, 1
        %s379 = smul.addr %s378, 8
        %s380 = scalar_lea.vmem %s0, %s379
        %v382 = vld [vmem:[%s380] sm:$0xff]
        %v383 = vld [vmem:[%s1] sm:$0xff]
        %v384 = vld [vmem:[%s1 + $0x8] sm:$0xff]
        %v385 = vld [vmem:[%s1 + $0x10] sm:$0xff]
        %v386 = vld [vmem:[%s1 + $0x18] sm:$0xff]
        %v387 = vld [vmem:[%s1 + $0x20] sm:$0xff]
        %v388 = vld [vmem:[%s1 + $0x28] sm:$0xff]
        %v389 = vld [vmem:[%s1 + $0x30] sm:$0xff]
        %v390 = vld [vmem:[%s1 + $0x38] sm:$0xff]
        %v391 = vld [vmem:[%s1 + $0x40] sm:$0xff]
        %v392 = vld [vmem:[%s1 + $0x48] sm:$0xff]
        %v393 = vld [vmem:[%s1 + $0x50] sm:$0xff]
        %v394 = vld [vmem:[%s1 + $0x58] sm:$0xff]
        %v395 = vld [vmem:[%s1 + $0x60] sm:$0xff]
        %v396 = vld [vmem:[%s1 + $0x68] sm:$0xff]
        %v397 = vld [vmem:[%s1 + $0x70] sm:$0xff]
        %v398 = vld [vmem:[%s1 + $0x78] sm:$0xff]
        %v399 = vld [vmem:[%s1 + $0x80] sm:$0xff]
        %v400 = vld [vmem:[%s1 + $0x88] sm:$0xff]
        %v401 = vld [vmem:[%s1 + $0x90] sm:$0xff]
        %v402 = vld [vmem:[%s1 + $0x98] sm:$0xff]
        %v403 = vld [vmem:[%s1 + $0xa0] sm:$0xff]
        %v404 = vld [vmem:[%s1 + $0xa8] sm:$0xff]
        %v405 = vld [vmem:[%s1 + $0xb0] sm:$0xff]
        %v406 = vld [vmem:[%s1 + $0xb8] sm:$0xff]
        %v407 = vld [vmem:[%s1 + $0xc0] sm:$0xff]
        %v408 = vld [vmem:[%s1 + $0xc8] sm:$0xff]
        %v409 = vld [vmem:[%s1 + $0xd0] sm:$0xff]
        %v410 = vld [vmem:[%s1 + $0xd8] sm:$0xff]
        %v411 = vld [vmem:[%s1 + $0xe0] sm:$0xff]
        %v412 = vld [vmem:[%s1 + $0xe8] sm:$0xff]
        %v413 = vld [vmem:[%s1 + $0xf0] sm:$0xff]
        %v414 = vld [vmem:[%s1 + $0xf8] sm:$0xff]
        %v415 = vld [vmem:[%s2] sm:$0xf]
        %v417 = vlaneseq
        %v418 = vshrl.u32 %v417, 7
        %v419 = vsub.s32 0, %v418
        %v420 = vrot.slane %v415, %v419
        %v421 = vlaneseq
        %v422 = vshrl.u32 %v421, 7
        %v423 = vsub.s32 1, %v422
        %v424 = vrot.slane %v415, %v423
        %v425 = vlaneseq
        %v426 = vshrl.u32 %v425, 7
        %v427 = vsub.s32 2, %v426
        %v428 = vrot.slane %v415, %v427
        %v429 = vlaneseq
        %v430 = vshrl.u32 %v429, 7
        %v431 = vsub.s32 3, %v430
        %v432 = vrot.slane %v415, %v431
        %vm437 = vcmask 523264
        %v439 = vsel %vm437, %v382, 0
        %441 = vmatprep.subr.mxu0 0.0
        %442 = vmatpush1.msra.mxu0 0.0
        %443 = vmatprep.subr.mxu0 0.0
        %444 = vmatpush1.msra.mxu0 0.0
        %445 = vmatprep.subr.mxu0 0.0
        %446 = vmatpush1.msra.mxu0 0.0
        %447 = vmatprep.subr.mxu0 0.0
        %448 = vmatpush1.msra.mxu0 0.0
        %449 = vmatprep.subr.mxu0 0.0
        %450 = vmatpush1.msra.mxu0 0.0
        %451 = vmatprep.subr.mxu0 0.0
        %452 = vmatpush1.msra.mxu0 0.0
        %453 = vmatprep.subr.mxu0 0.0
        %454 = vmatpush1.msra.mxu0 0.0
        %455 = vmatprep.subr.mxu0 0.0
        %456 = vmatpush1.msra.mxu0 0.0
        %457 = vmatprep.subr.mxu0 %v412
        %458 = vmatpush1.msra.mxu0 %v411
        %459 = vmatprep.subr.mxu0 %v408
        %460 = vmatpush1.msra.mxu0 %v407
        %461 = vmatprep.subr.mxu0 %v404
        %462 = vmatpush1.msra.mxu0 %v403
        %463 = vmatprep.subr.mxu0 %v400
        %464 = vmatpush1.msra.mxu0 %v399
        %465 = vmatprep.subr.mxu0 %v396
        %466 = vmatpush1.msra.mxu0 %v395
        %467 = vmatprep.subr.mxu0 %v392
        %468 = vmatpush1.msra.mxu0 %v391
        %469 = vmatprep.subr.mxu0 %v388
        %470 = vmatpush1.msra.mxu0 %v387
        %471 = vmatprep.subr.mxu0 %v384
        %472 = vmatpush1.msra.mxu0 %v383
        %473 = vmatprep.subr.mxu0 0.0
        %474 = vmatpush2.msra.mxu0 0.0
        %475 = vmatprep.subr.mxu0 0.0
        %476 = vmatpush2.msra.mxu0 0.0
        %477 = vmatprep.subr.mxu0 0.0
        %478 = vmatpush2.msra.mxu0 0.0
        %479 = vmatprep.subr.mxu0 0.0
        %480 = vmatpush2.msra.mxu0 0.0
        %481 = vmatprep.subr.mxu0 0.0
        %482 = vmatpush2.msra.mxu0 0.0
        %483 = vmatprep.subr.mxu0 0.0
        %484 = vmatpush2.msra.mxu0 0.0
        %485 = vmatprep.subr.mxu0 0.0
        %486 = vmatpush2.msra.mxu0 0.0
        %487 = vmatprep.subr.mxu0 0.0
        %488 = vmatpush2.msra.mxu0 0.0
        %489 = vmatprep.subr.mxu0 0.0
        %490 = vmatpush2.msra.mxu0 0.0
        %491 = vmatprep.subr.mxu0 0.0
        %492 = vmatpush2.msra.mxu0 0.0
        %493 = vmatprep.subr.mxu0 0.0
        %494 = vmatpush2.msra.mxu0 0.0
        %495 = vmatprep.subr.mxu0 0.0
        %496 = vmatpush2.msra.mxu0 0.0
        %497 = vmatprep.subr.mxu0 0.0
        %498 = vmatpush2.msra.mxu0 0.0
        %499 = vmatprep.subr.mxu0 0.0
        %500 = vmatpush2.msra.mxu0 0.0
        %501 = vmatprep.subr.mxu0 0.0
        %502 = vmatpush2.msra.mxu0 0.0
        %503 = vmatprep.subr.mxu0 0.0
        %504 = vmatpush2.msra.mxu0 0.0
        %505 = vmatprep.mubr.f32.mxu0 0.0
        %506 = vmatmul.mubr.f32.gmra.mxu0 %v439
        %v507 = vpop.f32.mrf.mxu0
        %v508 = vadd.f32 %v420, %v507
        %v509 = vpop.f32.mrf.mxu0
        %v510 = vadd.f32 %v424, %v509
        %511 = vdwg.mxu0
        %512 = vmatprep.subr.mxu0 0.0
        %513 = vmatpush1.msra.mxu0 0.0
        %514 = vmatprep.subr.mxu0 0.0
        %515 = vmatpush1.msra.mxu0 0.0
        %516 = vmatprep.subr.mxu0 0.0
        %517 = vmatpush1.msra.mxu0 0.0
        %518 = vmatprep.subr.mxu0 0.0
        %519 = vmatpush1.msra.mxu0 0.0
        %520 = vmatprep.subr.mxu0 0.0
        %521 = vmatpush1.msra.mxu0 0.0
        %522 = vmatprep.subr.mxu0 0.0
        %523 = vmatpush1.msra.mxu0 0.0
        %524 = vmatprep.subr.mxu0 0.0
        %525 = vmatpush1.msra.mxu0 0.0
        %526 = vmatprep.subr.mxu0 0.0
        %527 = vmatpush1.msra.mxu0 0.0
        %528 = vmatprep.subr.mxu0 %v414
        %529 = vmatpush1.msra.mxu0 %v413
        %530 = vmatprep.subr.mxu0 %v410
        %531 = vmatpush1.msra.mxu0 %v409
        %532 = vmatprep.subr.mxu0 %v406
        %533 = vmatpush1.msra.mxu0 %v405
        %534 = vmatprep.subr.mxu0 %v402
        %535 = vmatpush1.msra.mxu0 %v401
        %536 = vmatprep.subr.mxu0 %v398
        %537 = vmatpush1.msra.mxu0 %v397
        %538 = vmatprep.subr.mxu0 %v394
        %539 = vmatpush1.msra.mxu0 %v393
        %540 = vmatprep.subr.mxu0 %v390
        %541 = vmatpush1.msra.mxu0 %v389
        %542 = vmatprep.subr.mxu0 %v386
        %543 = vmatpush1.msra.mxu0 %v385
        %544 = vmatprep.subr.mxu0 0.0
        %545 = vmatpush2.msra.mxu0 0.0
        %546 = vmatprep.subr.mxu0 0.0
        %547 = vmatpush2.msra.mxu0 0.0
        %548 = vmatprep.subr.mxu0 0.0
        %549 = vmatpush2.msra.mxu0 0.0
        %550 = vmatprep.subr.mxu0 0.0
        %551 = vmatpush2.msra.mxu0 0.0
        %552 = vmatprep.subr.mxu0 0.0
        %553 = vmatpush2.msra.mxu0 0.0
        %554 = vmatprep.subr.mxu0 0.0
        %555 = vmatpush2.msra.mxu0 0.0
        %556 = vmatprep.subr.mxu0 0.0
        %557 = vmatpush2.msra.mxu0 0.0
        %558 = vmatprep.subr.mxu0 0.0
        %559 = vmatpush2.msra.mxu0 0.0
        %560 = vmatprep.subr.mxu0 0.0
        %561 = vmatpush2.msra.mxu0 0.0
        %562 = vmatprep.subr.mxu0 0.0
        %563 = vmatpush2.msra.mxu0 0.0
        %564 = vmatprep.subr.mxu0 0.0
        %565 = vmatpush2.msra.mxu0 0.0
        %566 = vmatprep.subr.mxu0 0.0
        %567 = vmatpush2.msra.mxu0 0.0
        %568 = vmatprep.subr.mxu0 0.0
        %569 = vmatpush2.msra.mxu0 0.0
        %570 = vmatprep.subr.mxu0 0.0
        %571 = vmatpush2.msra.mxu0 0.0
        %572 = vmatprep.subr.mxu0 0.0
        %573 = vmatpush2.msra.mxu0 0.0
        %574 = vmatprep.subr.mxu0 0.0
        %575 = vmatpush2.msra.mxu0 0.0
        %576 = vmatprep.mubr.f32.mxu0 0.0
        %577 = vmatmul.mubr.f32.gmra.mxu0 %v439
        %v578 = vpop.f32.mrf.mxu0
        %v579 = vadd.f32 %v428, %v578
        %v580 = vpop.f32.mrf.mxu0
        %v581 = vadd.f32 %v432, %v580
        %582 = vdwg.mxu0
        %v583 = vld [vmem:[%s3] sm:$0x1]
        %v584 = vld [vmem:[%s4] sm:$0x1]
        %585 = vadd.xlane.f32.xlu0 %v508
        %v586 = vpop.xlane.xlu0 %585
        %v587 = vrcp.pop 128.0
        %v588 = vmul.f32 %v586, %v587
        %v589 = vsub.f32 %v508, %v588
        %v590 = vmul.f32 %v589, %v589
        %591 = vadd.xlane.f32.xlu0 %v590
        %v592 = vpop.xlane.xlu0 %591
        %v593 = vmul.f32 %v592, %v587
        %v594 = vadd.f32 %v593, 1e-05
        %v595 = vrsqrt.pop %v594
        %v596 = vmul.f32 %v589, %v595
        %v598 = vlaneseq
        %v599 = vshrl.u32 %v598, 7
        %v600 = vsub.s32 0, %v599
        %v601 = vrot.slane %v583, %v600
        %v603 = vmul.f32 %v596, %v601
        %v605 = vlaneseq
        %v606 = vshrl.u32 %v605, 7
        %v607 = vsub.s32 0, %v606
        %v608 = vrot.slane %v584, %v607
        %v610 = vadd.f32 %v603, %v608
        %611 = vadd.xlane.f32.xlu0 %v610
        %v612 = vpop.xlane.xlu0 %611
        %v613 = vrot.slane %v612, 4
        %v614 = vadd.f32 %v612, %v613
        %v615 = vrot.slane %v614, 2
        %v616 = vadd.f32 %v614, %v615
        %v617 = vrot.slane %v616, 1
        %v618 = vadd.f32 %v616, %v617
        %s619 = vtos %v618
        %v620 = vrcp.pop 1024.0
        %s621 = vtos %v620
        %s622 = smul.f32 %s619, %s621
        %v623 = vstv %s622
        %v624 = vsub.f32 %v610, %v623
        %625 = vadd.xlane.f32.xlu0 %v510
        %v626 = vpop.xlane.xlu0 %625
        %v627 = vmul.f32 %v626, %v587
        %v628 = vsub.f32 %v510, %v627
        %v629 = vmul.f32 %v628, %v628
        %630 = vadd.xlane.f32.xlu0 %v629
        %v631 = vpop.xlane.xlu0 %630
        %v632 = vmul.f32 %v631, %v587
        %v633 = vadd.f32 %v632, 1e-05
        %v634 = vrsqrt.pop %v633
        %v635 = vmul.f32 %v628, %v634
        %v636 = vmul.f32 %v635, %v601
        %v637 = vadd.f32 %v636, %v608
        %638 = vadd.xlane.f32.xlu0 %v637
        %v639 = vpop.xlane.xlu0 %638
        %v640 = vrot.slane %v639, 4
        %v641 = vadd.f32 %v639, %v640
        %v642 = vrot.slane %v641, 2
        %v643 = vadd.f32 %v641, %v642
        %v644 = vrot.slane %v643, 1
        %v645 = vadd.f32 %v643, %v644
        %s646 = vtos %v645
        %v647 = vrcp.pop 1024.0
        %s648 = vtos %v647
        %s649 = smul.f32 %s646, %s648
        %v650 = vstv %s649
        %v651 = vsub.f32 %v637, %v650
        %652 = vadd.xlane.f32.xlu0 %v579
        %v653 = vpop.xlane.xlu0 %652
        %v654 = vmul.f32 %v653, %v587
        %v655 = vsub.f32 %v579, %v654
        %v656 = vmul.f32 %v655, %v655
        %657 = vadd.xlane.f32.xlu0 %v656
        %v658 = vpop.xlane.xlu0 %657
        %v659 = vmul.f32 %v658, %v587
        %v660 = vadd.f32 %v659, 1e-05
        %v661 = vrsqrt.pop %v660
        %v662 = vmul.f32 %v655, %v661
        %v663 = vmul.f32 %v662, %v601
        %v664 = vadd.f32 %v663, %v608
        %665 = vadd.xlane.f32.xlu0 %v664
        %v666 = vpop.xlane.xlu0 %665
        %v667 = vrot.slane %v666, 4
        %v668 = vadd.f32 %v666, %v667
        %v669 = vrot.slane %v668, 2
        %v670 = vadd.f32 %v668, %v669
        %v671 = vrot.slane %v670, 1
        %v672 = vadd.f32 %v670, %v671
        %s673 = vtos %v672
        %v674 = vrcp.pop 1024.0
        %s675 = vtos %v674
        %s676 = smul.f32 %s673, %s675
        %v677 = vstv %s676
        %v678 = vsub.f32 %v664, %v677
        %679 = vadd.xlane.f32.xlu0 %v581
        %v680 = vpop.xlane.xlu0 %679
        %v681 = vmul.f32 %v680, %v587
        %v682 = vsub.f32 %v581, %v681
        %v683 = vmul.f32 %v682, %v682
        %684 = vadd.xlane.f32.xlu0 %v683
        %v685 = vpop.xlane.xlu0 %684
        %v686 = vmul.f32 %v685, %v587
        %v687 = vadd.f32 %v686, 1e-05
        %v688 = vrsqrt.pop %v687
        %v689 = vmul.f32 %v682, %v688
        %v690 = vmul.f32 %v689, %v601
        %v691 = vadd.f32 %v690, %v608
        %692 = vadd.xlane.f32.xlu0 %v691
        %v693 = vpop.xlane.xlu0 %692
        %v694 = vrot.slane %v693, 4
        %v695 = vadd.f32 %v693, %v694
        %v696 = vrot.slane %v695, 2
        %v697 = vadd.f32 %v695, %v696
        %v698 = vrot.slane %v697, 1
        %v699 = vadd.f32 %v697, %v698
        %s700 = vtos %v699
        %v701 = vrcp.pop 1024.0
        %s702 = vtos %v701
        %s703 = smul.f32 %s700, %s702
        %v704 = vstv %s703
        %v705 = vsub.f32 %v691, %v704
        %706 = vxpose.xlu0.b32.start [1/16] %v624, 128
        %707 = vxpose.xlu0.b32.cont [2/16] 0.0, 128
        %708 = vxpose.xlu0.b32.cont [3/16] 0.0, 128
        %709 = vxpose.xlu0.b32.cont [4/16] 0.0, 128
        %710 = vxpose.xlu0.b32.cont [5/16] 0.0, 128
        %711 = vxpose.xlu0.b32.cont [6/16] 0.0, 128
        %712 = vxpose.xlu0.b32.cont [7/16] 0.0, 128
        %713 = vxpose.xlu0.b32.cont [8/16] 0.0, 128
        %714 = vxpose.xlu0.b32.cont [9/16] 0.0, 128
        %715 = vxpose.xlu0.b32.cont [10/16] 0.0, 128
        %716 = vxpose.xlu0.b32.cont [11/16] 0.0, 128
        %717 = vxpose.xlu0.b32.cont [12/16] 0.0, 128
        %718 = vxpose.xlu0.b32.cont [13/16] 0.0, 128
        %719 = vxpose.xlu0.b32.cont [14/16] 0.0, 128
        %720 = vxpose.xlu0.b32.cont [15/16] 0.0, 128
        %721 = vxpose.xlu0.b32.end [16/16] 0.0, 128
        %v722 = vpop.trf.xlu0
        %v723 = vpop.trf.xlu0
        %v724 = vpop.trf.xlu0
        %v725 = vpop.trf.xlu0
        %v726 = vpop.trf.xlu0
        %v727 = vpop.trf.xlu0
        %v728 = vpop.trf.xlu0
        %v729 = vpop.trf.xlu0
        %v730 = vpop.trf.xlu0
        %v731 = vpop.trf.xlu0
        %v732 = vpop.trf.xlu0
        %v733 = vpop.trf.xlu0
        %v734 = vpop.trf.xlu0
        %v735 = vpop.trf.xlu0
        %v736 = vpop.trf.xlu0
        %v737 = vpop.trf.xlu0
        %vm738 = vcmask 64512
        %v740 = vsel %vm738, %v722, 0
        %v743 = vsel %vm738, %v723, 0
        %v746 = vsel %vm738, %v724, 0
        %v749 = vsel %vm738, %v725, 0
        %v752 = vsel %vm738, %v726, 0
        %v755 = vsel %vm738, %v727, 0
        %v758 = vsel %vm738, %v728, 0
        %v761 = vsel %vm738, %v729, 0
        %v764 = vsel %vm738, %v730, 0
        %v767 = vsel %vm738, %v731, 0
        %v770 = vsel %vm738, %v732, 0
        %v773 = vsel %vm738, %v733, 0
        %v776 = vsel %vm738, %v734, 0
        %v779 = vsel %vm738, %v735, 0
        %v782 = vsel %vm738, %v736, 0
        %v785 = vsel %vm738, %v737, 0
        %787 = vmatprep.subr.mxu0 0.0
        %788 = vmatpush1.msra.mxu0 0.0
        %789 = vmatprep.subr.mxu0 0.0
        %790 = vmatpush1.msra.mxu0 0.0
        %791 = vmatprep.subr.mxu0 0.0
        %792 = vmatpush1.msra.mxu0 0.0
        %793 = vmatprep.subr.mxu0 0.0
        %794 = vmatpush1.msra.mxu0 0.0
        %795 = vmatprep.subr.mxu0 0.0
        %796 = vmatpush1.msra.mxu0 0.0
        %797 = vmatprep.subr.mxu0 0.0
        %798 = vmatpush1.msra.mxu0 0.0
        %799 = vmatprep.subr.mxu0 0.0
        %800 = vmatpush1.msra.mxu0 0.0
        %801 = vmatprep.subr.mxu0 0.0
        %802 = vmatpush1.msra.mxu0 0.0
        %803 = vmatprep.subr.mxu0 0.0
        %804 = vmatpush1.msra.mxu0 0.0
        %805 = vmatprep.subr.mxu0 0.0
        %806 = vmatpush1.msra.mxu0 0.0
        %807 = vmatprep.subr.mxu0 0.0
        %808 = vmatpush1.msra.mxu0 0.0
        %809 = vmatprep.subr.mxu0 0.0
        %810 = vmatpush1.msra.mxu0 0.0
        %811 = vmatprep.subr.mxu0 0.0
        %812 = vmatpush1.msra.mxu0 0.0
        %813 = vmatprep.subr.mxu0 0.0
        %814 = vmatpush1.msra.mxu0 0.0
        %815 = vmatprep.subr.mxu0 0.0
        %816 = vmatpush1.msra.mxu0 0.0
        %817 = vmatprep.subr.mxu0 %v678
        %818 = vmatpush1.msra.mxu0 %v651
        %819 = vmatprep.subr.mxu0 0.0
        %820 = vmatpush2.msra.mxu0 0.0
        %821 = vmatprep.subr.mxu0 0.0
        %822 = vmatpush2.msra.mxu0 0.0
        %823 = vmatprep.subr.mxu0 0.0
        %824 = vmatpush2.msra.mxu0 0.0
        %825 = vmatprep.subr.mxu0 0.0
        %826 = vmatpush2.msra.mxu0 0.0
        %827 = vmatprep.subr.mxu0 0.0
        %828 = vmatpush2.msra.mxu0 0.0
        %829 = vmatprep.subr.mxu0 0.0
        %830 = vmatpush2.msra.mxu0 0.0
        %831 = vmatprep.subr.mxu0 0.0
        %832 = vmatpush2.msra.mxu0 0.0
        %833 = vmatprep.subr.mxu0 0.0
        %834 = vmatpush2.msra.mxu0 0.0
        %835 = vmatprep.subr.mxu0 0.0
        %836 = vmatpush2.msra.mxu0 0.0
        %837 = vmatprep.subr.mxu0 0.0
        %838 = vmatpush2.msra.mxu0 0.0
        %839 = vmatprep.subr.mxu0 0.0
        %840 = vmatpush2.msra.mxu0 0.0
        %841 = vmatprep.subr.mxu0 0.0
        %842 = vmatpush2.msra.mxu0 0.0
        %843 = vmatprep.subr.mxu0 0.0
        %844 = vmatpush2.msra.mxu0 0.0
        %845 = vmatprep.subr.mxu0 0.0
        %846 = vmatpush2.msra.mxu0 0.0
        %847 = vmatprep.subr.mxu0 0.0
        %848 = vmatpush2.msra.mxu0 0.0
        %849 = vmatprep.subr.mxu0 0.0
        %850 = vmatpush2.msra.mxu0 0.0
        %851 = vmatprep.mubr.f32.mxu0 0.0
        %852 = vmatmul.mubr.f32.gmra.mxu0 %v740
        %v853 = vpop.f32.mrf.mxu0
        %v854 = vadd.f32 0.0, %v853
        %v855 = vpop.f32.mrf.mxu0
        %v856 = vadd.f32 0.0, %v855
        %857 = vmatprep.mubr.f32.mxu0 0.0
        %858 = vmatmul.mubr.f32.gmra.mxu0 %v743
        %v859 = vpop.f32.mrf.mxu0
        %v860 = vadd.f32 0.0, %v859
        %v861 = vpop.f32.mrf.mxu0
        %v862 = vadd.f32 0.0, %v861
        %863 = vmatprep.mubr.f32.mxu0 0.0
        %864 = vmatmul.mubr.f32.gmra.mxu0 %v746
        %v865 = vpop.f32.mrf.mxu0
        %v866 = vadd.f32 0.0, %v865
        %v867 = vpop.f32.mrf.mxu0
        %v868 = vadd.f32 0.0, %v867
        %869 = vmatprep.mubr.f32.mxu0 0.0
        %870 = vmatmul.mubr.f32.gmra.mxu0 %v749
        %v871 = vpop.f32.mrf.mxu0
        %v872 = vadd.f32 0.0, %v871
        %v873 = vpop.f32.mrf.mxu0
        %v874 = vadd.f32 0.0, %v873
        %875 = vmatprep.mubr.f32.mxu0 0.0
        %876 = vmatmul.mubr.f32.gmra.mxu0 %v752
        %v877 = vpop.f32.mrf.mxu0
        %v878 = vadd.f32 0.0, %v877
        %v879 = vpop.f32.mrf.mxu0
        %v880 = vadd.f32 0.0, %v879
        %881 = vmatprep.mubr.f32.mxu0 0.0
        %882 = vmatmul.mubr.f32.gmra.mxu0 %v755
        %v883 = vpop.f32.mrf.mxu0
        %v884 = vadd.f32 0.0, %v883
        %v885 = vpop.f32.mrf.mxu0
        %v886 = vadd.f32 0.0, %v885
        %887 = vmatprep.mubr.f32.mxu0 0.0
        %888 = vmatmul.mubr.f32.gmra.mxu0 %v758
        %v889 = vpop.f32.mrf.mxu0
        %v890 = vadd.f32 0.0, %v889
        %v891 = vpop.f32.mrf.mxu0
        %v892 = vadd.f32 0.0, %v891
        %893 = vmatprep.mubr.f32.mxu0 0.0
        %894 = vmatmul.mubr.f32.gmra.mxu0 %v761
        %v895 = vpop.f32.mrf.mxu0
        %v896 = vadd.f32 0.0, %v895
        %v897 = vpop.f32.mrf.mxu0
        %v898 = vadd.f32 0.0, %v897
        %899 = vmatprep.mubr.f32.mxu0 0.0
        %900 = vmatmul.mubr.f32.gmra.mxu0 %v764
        %v901 = vpop.f32.mrf.mxu0
        %v902 = vadd.f32 0.0, %v901
        %v903 = vpop.f32.mrf.mxu0
        %v904 = vadd.f32 0.0, %v903
        %905 = vmatprep.mubr.f32.mxu0 0.0
        %906 = vmatmul.mubr.f32.gmra.mxu0 %v767
        %v907 = vpop.f32.mrf.mxu0
        %v908 = vadd.f32 0.0, %v907
        %v909 = vpop.f32.mrf.mxu0
        %v910 = vadd.f32 0.0, %v909
        %911 = vmatprep.mubr.f32.mxu0 0.0
        %912 = vmatmul.mubr.f32.gmra.mxu0 %v770
        %v913 = vpop.f32.mrf.mxu0
        %v914 = vadd.f32 0.0, %v913
        %v915 = vpop.f32.mrf.mxu0
        %v916 = vadd.f32 0.0, %v915
        %917 = vmatprep.mubr.f32.mxu0 0.0
        %918 = vmatmul.mubr.f32.gmra.mxu0 %v773
        %v919 = vpop.f32.mrf.mxu0
        %v920 = vadd.f32 0.0, %v919
        %v921 = vpop.f32.mrf.mxu0
        %v922 = vadd.f32 0.0, %v921
        %923 = vmatprep.mubr.f32.mxu0 0.0
        %924 = vmatmul.mubr.f32.gmra.mxu0 %v776
        %v925 = vpop.f32.mrf.mxu0
        %v926 = vadd.f32 0.0, %v925
        %v927 = vpop.f32.mrf.mxu0
        %v928 = vadd.f32 0.0, %v927
        %929 = vmatprep.mubr.f32.mxu0 0.0
        %930 = vmatmul.mubr.f32.gmra.mxu0 %v779
        %v931 = vpop.f32.mrf.mxu0
        %v932 = vadd.f32 0.0, %v931
        %v933 = vpop.f32.mrf.mxu0
        %v934 = vadd.f32 0.0, %v933
        %935 = vmatprep.mubr.f32.mxu0 0.0
        %936 = vmatmul.mubr.f32.gmra.mxu0 %v782
        %v937 = vpop.f32.mrf.mxu0
        %v938 = vadd.f32 0.0, %v937
        %v939 = vpop.f32.mrf.mxu0
        %v940 = vadd.f32 0.0, %v939
        %941 = vmatprep.mubr.f32.mxu0 0.0
        %942 = vmatmul.mubr.f32.gmra.mxu0 %v785
        %v943 = vpop.f32.mrf.mxu0
        %v944 = vadd.f32 0.0, %v943
        %v945 = vpop.f32.mrf.mxu0
        %v946 = vadd.f32 0.0, %v945
        %947 = vdwg.mxu0
        %948 = vmatprep.subr.mxu0 0.0
        %949 = vmatpush1.msra.mxu0 0.0
        %950 = vmatprep.subr.mxu0 0.0
        %951 = vmatpush1.msra.mxu0 0.0
        %952 = vmatprep.subr.mxu0 0.0
        %953 = vmatpush1.msra.mxu0 0.0
        %954 = vmatprep.subr.mxu0 0.0
        %955 = vmatpush1.msra.mxu0 0.0
        %956 = vmatprep.subr.mxu0 0.0
        %957 = vmatpush1.msra.mxu0 0.0
        %958 = vmatprep.subr.mxu0 0.0
        %959 = vmatpush1.msra.mxu0 0.0
        %960 = vmatprep.subr.mxu0 0.0
        %961 = vmatpush1.msra.mxu0 0.0
        %962 = vmatprep.subr.mxu0 0.0
        %963 = vmatpush1.msra.mxu0 0.0
        %964 = vmatprep.subr.mxu0 0.0
        %965 = vmatpush1.msra.mxu0 0.0
        %966 = vmatprep.subr.mxu0 0.0
        %967 = vmatpush1.msra.mxu0 0.0
        %968 = vmatprep.subr.mxu0 0.0
        %969 = vmatpush1.msra.mxu0 0.0
        %970 = vmatprep.subr.mxu0 0.0
        %971 = vmatpush1.msra.mxu0 0.0
        %972 = vmatprep.subr.mxu0 0.0
        %973 = vmatpush1.msra.mxu0 0.0
        %974 = vmatprep.subr.mxu0 0.0
        %975 = vmatpush1.msra.mxu0 0.0
        %976 = vmatprep.subr.mxu0 0.0
        %977 = vmatpush1.msra.mxu0 0.0
        %978 = vmatprep.subr.mxu0 0.0
        %979 = vmatpush1.msra.mxu0 %v705
        %980 = vmatprep.subr.mxu0 0.0
        %981 = vmatpush2.msra.mxu0 0.0
        %982 = vmatprep.subr.mxu0 0.0
        %983 = vmatpush2.msra.mxu0 0.0
        %984 = vmatprep.subr.mxu0 0.0
        %985 = vmatpush2.msra.mxu0 0.0
        %986 = vmatprep.subr.mxu0 0.0
        %987 = vmatpush2.msra.mxu0 0.0
        %988 = vmatprep.subr.mxu0 0.0
        %989 = vmatpush2.msra.mxu0 0.0
        %990 = vmatprep.subr.mxu0 0.0
        %991 = vmatpush2.msra.mxu0 0.0
        %992 = vmatprep.subr.mxu0 0.0
        %993 = vmatpush2.msra.mxu0 0.0
        %994 = vmatprep.subr.mxu0 0.0
        %995 = vmatpush2.msra.mxu0 0.0
        %996 = vmatprep.subr.mxu0 0.0
        %997 = vmatpush2.msra.mxu0 0.0
        %998 = vmatprep.subr.mxu0 0.0
        %999 = vmatpush2.msra.mxu0 0.0
        %1000 = vmatprep.subr.mxu0 0.0
        %1001 = vmatpush2.msra.mxu0 0.0
        %1002 = vmatprep.subr.mxu0 0.0
        %1003 = vmatpush2.msra.mxu0 0.0
        %1004 = vmatprep.subr.mxu0 0.0
        %1005 = vmatpush2.msra.mxu0 0.0
        %1006 = vmatprep.subr.mxu0 0.0
        %1007 = vmatpush2.msra.mxu0 0.0
        %1008 = vmatprep.subr.mxu0 0.0
        %1009 = vmatpush2.msra.mxu0 0.0
        %1010 = vmatprep.subr.mxu0 0.0
        %1011 = vmatpush2.msra.mxu0 0.0
        %1012 = vmatprep.mubr.f32.mxu0 0.0
        %1013 = vmatmul.mubr.f32.gmra.mxu0 %v740
        %v1014 = vpop.f32.mrf.mxu0
        %v1015 = vadd.f32 0.0, %v1014
        %v1016 = vpop.f32.mrf.mxu0
        %1017 = vmatprep.mubr.f32.mxu0 0.0
        %1018 = vmatmul.mubr.f32.gmra.mxu0 %v743
        %v1019 = vpop.f32.mrf.mxu0
        %v1020 = vadd.f32 0.0, %v1019
        %v1021 = vpop.f32.mrf.mxu0
        %1022 = vmatprep.mubr.f32.mxu0 0.0
        %1023 = vmatmul.mubr.f32.gmra.mxu0 %v746
        %v1024 = vpop.f32.mrf.mxu0
        %v1025 = vadd.f32 0.0, %v1024
        %v1026 = vpop.f32.mrf.mxu0
        %1027 = vmatprep.mubr.f32.mxu0 0.0
        %1028 = vmatmul.mubr.f32.gmra.mxu0 %v749
        %v1029 = vpop.f32.mrf.mxu0
        %v1030 = vadd.f32 0.0, %v1029
        %v1031 = vpop.f32.mrf.mxu0
        %1032 = vmatprep.mubr.f32.mxu0 0.0
        %1033 = vmatmul.mubr.f32.gmra.mxu0 %v752
        %v1034 = vpop.f32.mrf.mxu0
        %v1035 = vadd.f32 0.0, %v1034
        %v1036 = vpop.f32.mrf.mxu0
        %1037 = vmatprep.mubr.f32.mxu0 0.0
        %1038 = vmatmul.mubr.f32.gmra.mxu0 %v755
        %v1039 = vpop.f32.mrf.mxu0
        %v1040 = vadd.f32 0.0, %v1039
        %v1041 = vpop.f32.mrf.mxu0
        %1042 = vmatprep.mubr.f32.mxu0 0.0
        %1043 = vmatmul.mubr.f32.gmra.mxu0 %v758
        %v1044 = vpop.f32.mrf.mxu0
        %v1045 = vadd.f32 0.0, %v1044
        %v1046 = vpop.f32.mrf.mxu0
        %1047 = vmatprep.mubr.f32.mxu0 0.0
        %1048 = vmatmul.mubr.f32.gmra.mxu0 %v761
        %v1049 = vpop.f32.mrf.mxu0
        %v1050 = vadd.f32 0.0, %v1049
        %v1051 = vpop.f32.mrf.mxu0
        %1052 = vmatprep.mubr.f32.mxu0 0.0
        %1053 = vmatmul.mubr.f32.gmra.mxu0 %v764
        %v1054 = vpop.f32.mrf.mxu0
        %v1055 = vadd.f32 0.0, %v1054
        %v1056 = vpop.f32.mrf.mxu0
        %1057 = vmatprep.mubr.f32.mxu0 0.0
        %1058 = vmatmul.mubr.f32.gmra.mxu0 %v767
        %v1059 = vpop.f32.mrf.mxu0
        %v1060 = vadd.f32 0.0, %v1059
        %v1061 = vpop.f32.mrf.mxu0
        %1062 = vmatprep.mubr.f32.mxu0 0.0
        %1063 = vmatmul.mubr.f32.gmra.mxu0 %v770
        %v1064 = vpop.f32.mrf.mxu0
        %v1065 = vadd.f32 0.0, %v1064
        %v1066 = vpop.f32.mrf.mxu0
        %1067 = vmatprep.mubr.f32.mxu0 0.0
        %1068 = vmatmul.mubr.f32.gmra.mxu0 %v773
        %v1069 = vpop.f32.mrf.mxu0
        %v1070 = vadd.f32 0.0, %v1069
        %v1071 = vpop.f32.mrf.mxu0
        %1072 = vmatprep.mubr.f32.mxu0 0.0
        %1073 = vmatmul.mubr.f32.gmra.mxu0 %v776
        %v1074 = vpop.f32.mrf.mxu0
        %v1075 = vadd.f32 0.0, %v1074
        %v1076 = vpop.f32.mrf.mxu0
        %1077 = vmatprep.mubr.f32.mxu0 0.0
        %1078 = vmatmul.mubr.f32.gmra.mxu0 %v779
        %v1079 = vpop.f32.mrf.mxu0
        %v1080 = vadd.f32 0.0, %v1079
        %v1081 = vpop.f32.mrf.mxu0
        %1082 = vmatprep.mubr.f32.mxu0 0.0
        %1083 = vmatmul.mubr.f32.gmra.mxu0 %v782
        %v1084 = vpop.f32.mrf.mxu0
        %v1085 = vadd.f32 0.0, %v1084
        %v1086 = vpop.f32.mrf.mxu0
        %1087 = vmatprep.mubr.f32.mxu0 0.0
        %1088 = vmatmul.mubr.f32.gmra.mxu0 %v785
        %v1089 = vpop.f32.mrf.mxu0
        %v1090 = vadd.f32 0.0, %v1089
        %v1091 = vpop.f32.mrf.mxu0
        %1092 = vdwg.mxu0
        %v1093 = vmul.f32 %v854, %v854
        %v1094 = vmul.f32 %v856, %v856
        %v1095 = vmul.f32 %v1015, %v1015
        %v1096 = vmul.f32 %v860, %v860
        %v1097 = vmul.f32 %v862, %v862
        %v1098 = vmul.f32 %v1020, %v1020
        %v1099 = vmul.f32 %v866, %v866
        %v1100 = vmul.f32 %v868, %v868
        %v1101 = vmul.f32 %v1025, %v1025
        %v1102 = vmul.f32 %v872, %v872
        %v1103 = vmul.f32 %v874, %v874
        %v1104 = vmul.f32 %v1030, %v1030
        %v1105 = vmul.f32 %v878, %v878
        %v1106 = vmul.f32 %v880, %v880
        %v1107 = vmul.f32 %v1035, %v1035
        %v1108 = vmul.f32 %v884, %v884
        %v1109 = vmul.f32 %v886, %v886
        %v1110 = vmul.f32 %v1040, %v1040
        %v1111 = vmul.f32 %v890, %v890
        %v1112 = vmul.f32 %v892, %v892
        %v1113 = vmul.f32 %v1045, %v1045
        %v1114 = vmul.f32 %v896, %v896
        %v1115 = vmul.f32 %v898, %v898
        %v1116 = vmul.f32 %v1050, %v1050
        %v1117 = vmul.f32 %v902, %v902
        %v1118 = vmul.f32 %v904, %v904
        %v1119 = vmul.f32 %v1055, %v1055
        %v1120 = vmul.f32 %v908, %v908
        %v1121 = vmul.f32 %v910, %v910
        %v1122 = vmul.f32 %v1060, %v1060
        %v1123 = vmul.f32 %v914, %v914
        %v1124 = vmul.f32 %v916, %v916
        %v1125 = vmul.f32 %v1065, %v1065
        %v1126 = vmul.f32 %v920, %v920
        %v1127 = vmul.f32 %v922, %v922
        %v1128 = vmul.f32 %v1070, %v1070
        %v1129 = vmul.f32 %v926, %v926
        %v1130 = vmul.f32 %v928, %v928
        %v1131 = vmul.f32 %v1075, %v1075
        %v1132 = vmul.f32 %v932, %v932
        %v1133 = vmul.f32 %v934, %v934
        %v1134 = vmul.f32 %v1080, %v1080
        %v1135 = vmul.f32 %v938, %v938
        %v1136 = vmul.f32 %v940, %v940
        %v1137 = vmul.f32 %v1085, %v1085
        %v1138 = vmul.f32 %v944, %v944
        %v1139 = vmul.f32 %v946, %v946
        %v1140 = vmul.f32 %v1090, %v1090
        %v1141 = vadd.f32 %v1093, %v1096
        %v1142 = vadd.f32 %v1141, %v1099
        %v1143 = vadd.f32 %v1142, %v1102
        %v1144 = vadd.f32 %v1143, %v1105
        %v1145 = vadd.f32 %v1144, %v1108
        %v1146 = vadd.f32 %v1145, %v1111
        %v1147 = vadd.f32 %v1146, %v1114
        %v1148 = vadd.f32 %v1147, %v1117
        %v1149 = vadd.f32 %v1148, %v1120
        %v1150 = vadd.f32 %v1149, %v1123
        %v1151 = vadd.f32 %v1150, %v1126
        %v1152 = vadd.f32 %v1151, %v1129
        %v1153 = vadd.f32 %v1152, %v1132
        %v1154 = vadd.f32 %v1153, %v1135
        %v1155 = vadd.f32 %v1154, %v1138
        %v1156 = vrot.slane %v1155, 4
        %v1157 = vadd.f32 %v1155, %v1156
        %v1158 = vrot.slane %v1157, 2
        %v1159 = vadd.f32 %v1157, %v1158
        %v1160 = vrot.slane %v1159, 1
        %v1161 = vadd.f32 %v1159, %v1160
        %v1162 = vadd.f32 %v1094, %v1097
        %v1163 = vadd.f32 %v1162, %v1100
        %v1164 = vadd.f32 %v1163, %v1103
        %v1165 = vadd.f32 %v1164, %v1106
        %v1166 = vadd.f32 %v1165, %v1109
        %v1167 = vadd.f32 %v1166, %v1112
        %v1168 = vadd.f32 %v1167, %v1115
        %v1169 = vadd.f32 %v1168, %v1118
        %v1170 = vadd.f32 %v1169, %v1121
        %v1171 = vadd.f32 %v1170, %v1124
        %v1172 = vadd.f32 %v1171, %v1127
        %v1173 = vadd.f32 %v1172, %v1130
        %v1174 = vadd.f32 %v1173, %v1133
        %v1175 = vadd.f32 %v1174, %v1136
        %v1176 = vadd.f32 %v1175, %v1139
        %v1177 = vrot.slane %v1176, 4
        %v1178 = vadd.f32 %v1176, %v1177
        %v1179 = vrot.slane %v1178, 2
        %v1180 = vadd.f32 %v1178, %v1179
        %v1181 = vrot.slane %v1180, 1
        %v1182 = vadd.f32 %v1180, %v1181
        %v1183 = vadd.f32 %v1095, %v1098
        %v1184 = vadd.f32 %v1183, %v1101
        %v1185 = vadd.f32 %v1184, %v1104
        %v1186 = vadd.f32 %v1185, %v1107
        %v1187 = vadd.f32 %v1186, %v1110
        %v1188 = vadd.f32 %v1187, %v1113
        %v1189 = vadd.f32 %v1188, %v1116
        %v1190 = vadd.f32 %v1189, %v1119
        %v1191 = vadd.f32 %v1190, %v1122
        %v1192 = vadd.f32 %v1191, %v1125
        %v1193 = vadd.f32 %v1192, %v1128
        %v1194 = vadd.f32 %v1193, %v1131
        %v1195 = vadd.f32 %v1194, %v1134
        %v1196 = vadd.f32 %v1195, %v1137
        %v1197 = vadd.f32 %v1196, %v1140
        %v1198 = vrot.slane %v1197, 4
        %v1199 = vadd.f32 %v1197, %v1198
        %v1200 = vrot.slane %v1199, 2
        %v1201 = vadd.f32 %v1199, %v1200
        %v1202 = vrot.slane %v1201, 1
        %v1203 = vadd.f32 %v1201, %v1202
        %v1204 = vmax.f32 %v1161, 6.4e-23
        %v1205 = vmax.f32 %v1182, 6.4e-23
        %v1206 = vmax.f32 %v1203, 6.4e-23
        %v1207 = vrsqrt.pop %v1204
        %v1208 = vrsqrt.pop %v1205
        %v1209 = vrsqrt.pop %v1206
        %v1210 = vld [vmem:[%s5] sm:$0xff]
        %v1211 = vld [vmem:[%s5 + $0x8] sm:$0xff]
        %v1212 = vld [vmem:[%s5 + $0x10] sm:$0xff]
        %v1213 = vld [vmem:[%s5 + $0x18] sm:$0xff]
        %v1214 = vld [vmem:[%s5 + $0x20] sm:$0xff]
        %v1215 = vld [vmem:[%s5 + $0x28] sm:$0xff]
        %v1216 = vld [vmem:[%s5 + $0x30] sm:$0xff]
        %v1217 = vld [vmem:[%s5 + $0x38] sm:$0xff]
        %v1218 = vld [vmem:[%s5 + $0x40] sm:$0xff]
        %v1219 = vld [vmem:[%s5 + $0x48] sm:$0xff]
        %v1220 = vld [vmem:[%s5 + $0x50] sm:$0xff]
        %v1221 = vld [vmem:[%s5 + $0x58] sm:$0xff]
        %v1222 = vld [vmem:[%s5 + $0x60] sm:$0xff]
        %v1223 = vld [vmem:[%s5 + $0x68] sm:$0xff]
        %v1224 = vld [vmem:[%s5 + $0x70] sm:$0xff]
        %v1225 = vld [vmem:[%s5 + $0x78] sm:$0xff]
        %1226 = vmatprep.subr.mxu0 0.0
        %1227 = vmatpush1.msra.mxu0 %v1225
        %1228 = vmatprep.subr.mxu0 0.0
        %1229 = vmatpush1.msra.mxu0 %v1224
        %1230 = vmatprep.subr.mxu0 0.0
        %1231 = vmatpush1.msra.mxu0 %v1223
        %1232 = vmatprep.subr.mxu0 0.0
        %1233 = vmatpush1.msra.mxu0 %v1222
        %1234 = vmatprep.subr.mxu0 0.0
        %1235 = vmatpush1.msra.mxu0 %v1221
        %1236 = vmatprep.subr.mxu0 0.0
        %1237 = vmatpush1.msra.mxu0 %v1220
        %1238 = vmatprep.subr.mxu0 0.0
        %1239 = vmatpush1.msra.mxu0 %v1219
        %1240 = vmatprep.subr.mxu0 0.0
        %1241 = vmatpush1.msra.mxu0 %v1218
        %1242 = vmatprep.subr.mxu0 0.0
        %1243 = vmatpush1.msra.mxu0 %v1217
        %1244 = vmatprep.subr.mxu0 0.0
        %1245 = vmatpush1.msra.mxu0 %v1216
        %1246 = vmatprep.subr.mxu0 0.0
        %1247 = vmatpush1.msra.mxu0 %v1215
        %1248 = vmatprep.subr.mxu0 0.0
        %1249 = vmatpush1.msra.mxu0 %v1214
        %1250 = vmatprep.subr.mxu0 0.0
        %1251 = vmatpush1.msra.mxu0 %v1213
        %1252 = vmatprep.subr.mxu0 0.0
        %1253 = vmatpush1.msra.mxu0 %v1212
        %1254 = vmatprep.subr.mxu0 0.0
        %1255 = vmatpush1.msra.mxu0 %v1211
        %1256 = vmatprep.subr.mxu0 0.0
        %1257 = vmatpush1.msra.mxu0 %v1210
        %1258 = vmatprep.subr.mxu0 0.0
        %1259 = vmatpush2.msra.mxu0 0.0
        %1260 = vmatprep.subr.mxu0 0.0
        %1261 = vmatpush2.msra.mxu0 0.0
        %1262 = vmatprep.subr.mxu0 0.0
        %1263 = vmatpush2.msra.mxu0 0.0
        %1264 = vmatprep.subr.mxu0 0.0
        %1265 = vmatpush2.msra.mxu0 0.0
        %1266 = vmatprep.subr.mxu0 0.0
        %1267 = vmatpush2.msra.mxu0 0.0
        %1268 = vmatprep.subr.mxu0 0.0
        %1269 = vmatpush2.msra.mxu0 0.0
        %1270 = vmatprep.subr.mxu0 0.0
        %1271 = vmatpush2.msra.mxu0 0.0
        %1272 = vmatprep.subr.mxu0 0.0
        %1273 = vmatpush2.msra.mxu0 0.0
        %1274 = vmatprep.subr.mxu0 0.0
        %1275 = vmatpush2.msra.mxu0 0.0
        %1276 = vmatprep.subr.mxu0 0.0
        %1277 = vmatpush2.msra.mxu0 0.0
        %1278 = vmatprep.subr.mxu0 0.0
        %1279 = vmatpush2.msra.mxu0 0.0
        %1280 = vmatprep.subr.mxu0 0.0
        %1281 = vmatpush2.msra.mxu0 0.0
        %1282 = vmatprep.subr.mxu0 0.0
        %1283 = vmatpush2.msra.mxu0 0.0
        %1284 = vmatprep.subr.mxu0 0.0
        %1285 = vmatpush2.msra.mxu0 0.0
        %1286 = vmatprep.subr.mxu0 0.0
        %1287 = vmatpush2.msra.mxu0 0.0
        %1288 = vmatprep.subr.mxu0 0.0
        %1289 = vmatpush2.msra.mxu0 0.0
        %1290 = vmatprep.mubr.f32.mxu0 0.0
        %1291 = vmatmul.mubr.f32.gmra.mxu0 %v624
        %v1292 = vpop.f32.mrf.mxu0
        %v1293 = vadd.f32 0.0, %v1292
        %v1294 = vpop.f32.mrf.mxu0
        %1295 = vdwg.mxu0
        %1296 = vxpose.xlu0.b32.start [1/16] %v1293, 128
        %1297 = vxpose.xlu0.b32.cont [2/16] 0.0, 128
        %1298 = vxpose.xlu0.b32.cont [3/16] 0.0, 128
        %1299 = vxpose.xlu0.b32.cont [4/16] 0.0, 128
        %1300 = vxpose.xlu0.b32.cont [5/16] 0.0, 128
        %1301 = vxpose.xlu0.b32.cont [6/16] 0.0, 128
        %1302 = vxpose.xlu0.b32.cont [7/16] 0.0, 128
        %1303 = vxpose.xlu0.b32.cont [8/16] 0.0, 128
        %1304 = vxpose.xlu0.b32.cont [9/16] 0.0, 128
        %1305 = vxpose.xlu0.b32.cont [10/16] 0.0, 128
        %1306 = vxpose.xlu0.b32.cont [11/16] 0.0, 128
        %1307 = vxpose.xlu0.b32.cont [12/16] 0.0, 128
        %1308 = vxpose.xlu0.b32.cont [13/16] 0.0, 128
        %1309 = vxpose.xlu0.b32.cont [14/16] 0.0, 128
        %1310 = vxpose.xlu0.b32.cont [15/16] 0.0, 128
        %1311 = vxpose.xlu0.b32.end [16/16] 0.0, 128
        %v1312 = vpop.trf.xlu0
        %v1313 = vpop.trf.xlu0
        %v1314 = vpop.trf.xlu0
        %v1315 = vpop.trf.xlu0
        %v1316 = vpop.trf.xlu0
        %v1317 = vpop.trf.xlu0
        %v1318 = vpop.trf.xlu0
        %v1319 = vpop.trf.xlu0
        %v1320 = vpop.trf.xlu0
        %v1321 = vpop.trf.xlu0
        %v1322 = vpop.trf.xlu0
        %v1323 = vpop.trf.xlu0
        %v1324 = vpop.trf.xlu0
        %v1325 = vpop.trf.xlu0
        %v1326 = vpop.trf.xlu0
        %v1327 = vpop.trf.xlu0
        %v1329 = vsel %vm738, %v1312, 0
        %v1332 = vsel %vm738, %v1313, 0
        %v1335 = vsel %vm738, %v1314, 0
        %v1338 = vsel %vm738, %v1315, 0
        %v1341 = vsel %vm738, %v1316, 0
        %v1344 = vsel %vm738, %v1317, 0
        %v1347 = vsel %vm738, %v1318, 0
        %v1350 = vsel %vm738, %v1319, 0
        %1352 = vmatprep.subr.mxu0 0.0
        %1353 = vmatpush1.msra.mxu0 0.0
        %1354 = vmatprep.subr.mxu0 0.0
        %1355 = vmatpush1.msra.mxu0 0.0
        %1356 = vmatprep.subr.mxu0 0.0
        %1357 = vmatpush1.msra.mxu0 0.0
        %1358 = vmatprep.subr.mxu0 0.0
        %1359 = vmatpush1.msra.mxu0 0.0
        %1360 = vmatprep.subr.mxu0 0.0
        %1361 = vmatpush1.msra.mxu0 0.0
        %1362 = vmatprep.subr.mxu0 0.0
        %1363 = vmatpush1.msra.mxu0 0.0
        %1364 = vmatprep.subr.mxu0 0.0
        %1365 = vmatpush1.msra.mxu0 0.0
        %1366 = vmatprep.subr.mxu0 0.0
        %1367 = vmatpush1.msra.mxu0 0.0
        %1368 = vmatprep.subr.mxu0 0.0
        %1369 = vmatpush1.msra.mxu0 0.0
        %1370 = vmatprep.subr.mxu0 0.0
        %1371 = vmatpush1.msra.mxu0 0.0
        %1372 = vmatprep.subr.mxu0 0.0
        %1373 = vmatpush1.msra.mxu0 0.0
        %1374 = vmatprep.subr.mxu0 0.0
        %1375 = vmatpush1.msra.mxu0 0.0
        %1376 = vmatprep.subr.mxu0 0.0
        %1377 = vmatpush1.msra.mxu0 0.0
        %1378 = vmatprep.subr.mxu0 0.0
        %1379 = vmatpush1.msra.mxu0 0.0
        %1380 = vmatprep.subr.mxu0 0.0
        %1381 = vmatpush1.msra.mxu0 0.0
        %1382 = vmatprep.subr.mxu0 %v678
        %1383 = vmatpush1.msra.mxu0 %v651
        %1384 = vmatprep.subr.mxu0 0.0
        %1385 = vmatpush2.msra.mxu0 0.0
        %1386 = vmatprep.subr.mxu0 0.0
        %1387 = vmatpush2.msra.mxu0 0.0
        %1388 = vmatprep.subr.mxu0 0.0
        %1389 = vmatpush2.msra.mxu0 0.0
        %1390 = vmatprep.subr.mxu0 0.0
        %1391 = vmatpush2.msra.mxu0 0.0
        %1392 = vmatprep.subr.mxu0 0.0
        %1393 = vmatpush2.msra.mxu0 0.0
        %1394 = vmatprep.subr.mxu0 0.0
        %1395 = vmatpush2.msra.mxu0 0.0
        %1396 = vmatprep.subr.mxu0 0.0
        %1397 = vmatpush2.msra.mxu0 0.0
        %1398 = vmatprep.subr.mxu0 0.0
        %1399 = vmatpush2.msra.mxu0 0.0
        %1400 = vmatprep.subr.mxu0 0.0
        %1401 = vmatpush2.msra.mxu0 0.0
        %1402 = vmatprep.subr.mxu0 0.0
        %1403 = vmatpush2.msra.mxu0 0.0
        %1404 = vmatprep.subr.mxu0 0.0
        %1405 = vmatpush2.msra.mxu0 0.0
        %1406 = vmatprep.subr.mxu0 0.0
        %1407 = vmatpush2.msra.mxu0 0.0
        %1408 = vmatprep.subr.mxu0 0.0
        %1409 = vmatpush2.msra.mxu0 0.0
        %1410 = vmatprep.subr.mxu0 0.0
        %1411 = vmatpush2.msra.mxu0 0.0
        %1412 = vmatprep.subr.mxu0 0.0
        %1413 = vmatpush2.msra.mxu0 0.0
        %1414 = vmatprep.subr.mxu0 0.0
        %1415 = vmatpush2.msra.mxu0 0.0
        %1416 = vmatprep.mubr.f32.mxu0 0.0
        %1417 = vmatmul.mubr.f32.gmra.mxu0 %v1329
        %v1418 = vpop.f32.mrf.mxu0
        %v1419 = vadd.f32 0.0, %v1418
        %v1420 = vpop.f32.mrf.mxu0
        %v1421 = vadd.f32 0.0, %v1420
        %1422 = vmatprep.mubr.f32.mxu0 0.0
        %1423 = vmatmul.mubr.f32.gmra.mxu0 %v1332
        %v1424 = vpop.f32.mrf.mxu0
        %v1425 = vadd.f32 0.0, %v1424
        %v1426 = vpop.f32.mrf.mxu0
        %v1427 = vadd.f32 0.0, %v1426
        %1428 = vmatprep.mubr.f32.mxu0 0.0
        %1429 = vmatmul.mubr.f32.gmra.mxu0 %v1335
        %v1430 = vpop.f32.mrf.mxu0
        %v1431 = vadd.f32 0.0, %v1430
        %v1432 = vpop.f32.mrf.mxu0
        %v1433 = vadd.f32 0.0, %v1432
        %1434 = vmatprep.mubr.f32.mxu0 0.0
        %1435 = vmatmul.mubr.f32.gmra.mxu0 %v1338
        %v1436 = vpop.f32.mrf.mxu0
        %v1437 = vadd.f32 0.0, %v1436
        %v1438 = vpop.f32.mrf.mxu0
        %v1439 = vadd.f32 0.0, %v1438
        %1440 = vmatprep.mubr.f32.mxu0 0.0
        %1441 = vmatmul.mubr.f32.gmra.mxu0 %v1341
        %v1442 = vpop.f32.mrf.mxu0
        %v1443 = vadd.f32 0.0, %v1442
        %v1444 = vpop.f32.mrf.mxu0
        %v1445 = vadd.f32 0.0, %v1444
        %1446 = vmatprep.mubr.f32.mxu0 0.0
        %1447 = vmatmul.mubr.f32.gmra.mxu0 %v1344
        %v1448 = vpop.f32.mrf.mxu0
        %v1449 = vadd.f32 0.0, %v1448
        %v1450 = vpop.f32.mrf.mxu0
        %v1451 = vadd.f32 0.0, %v1450
        %1452 = vmatprep.mubr.f32.mxu0 0.0
        %1453 = vmatmul.mubr.f32.gmra.mxu0 %v1347
        %v1454 = vpop.f32.mrf.mxu0
        %v1455 = vadd.f32 0.0, %v1454
        %v1456 = vpop.f32.mrf.mxu0
        %v1457 = vadd.f32 0.0, %v1456
        %1458 = vmatprep.mubr.f32.mxu0 0.0
        %1459 = vmatmul.mubr.f32.gmra.mxu0 %v1350
        %v1460 = vpop.f32.mrf.mxu0
        %v1461 = vadd.f32 0.0, %v1460
        %v1462 = vpop.f32.mrf.mxu0
        %v1463 = vadd.f32 0.0, %v1462
        %1464 = vdwg.mxu0
        %1465 = vmatprep.subr.mxu0 0.0
        %1466 = vmatpush1.msra.mxu0 0.0
        %1467 = vmatprep.subr.mxu0 0.0
        %1468 = vmatpush1.msra.mxu0 0.0
        %1469 = vmatprep.subr.mxu0 0.0
        %1470 = vmatpush1.msra.mxu0 0.0
        %1471 = vmatprep.subr.mxu0 0.0
        %1472 = vmatpush1.msra.mxu0 0.0
        %1473 = vmatprep.subr.mxu0 0.0
        %1474 = vmatpush1.msra.mxu0 0.0
        %1475 = vmatprep.subr.mxu0 0.0
        %1476 = vmatpush1.msra.mxu0 0.0
        %1477 = vmatprep.subr.mxu0 0.0
        %1478 = vmatpush1.msra.mxu0 0.0
        %1479 = vmatprep.subr.mxu0 0.0
        %1480 = vmatpush1.msra.mxu0 0.0
        %1481 = vmatprep.subr.mxu0 0.0
        %1482 = vmatpush1.msra.mxu0 0.0
        %1483 = vmatprep.subr.mxu0 0.0
        %1484 = vmatpush1.msra.mxu0 0.0
        %1485 = vmatprep.subr.mxu0 0.0
        %1486 = vmatpush1.msra.mxu0 0.0
        %1487 = vmatprep.subr.mxu0 0.0
        %1488 = vmatpush1.msra.mxu0 0.0
        %1489 = vmatprep.subr.mxu0 0.0
        %1490 = vmatpush1.msra.mxu0 0.0
        %1491 = vmatprep.subr.mxu0 0.0
        %1492 = vmatpush1.msra.mxu0 0.0
        %1493 = vmatprep.subr.mxu0 0.0
        %1494 = vmatpush1.msra.mxu0 0.0
        %1495 = vmatprep.subr.mxu0 0.0
        %1496 = vmatpush1.msra.mxu0 %v705
        %1497 = vmatprep.subr.mxu0 0.0
        %1498 = vmatpush2.msra.mxu0 0.0
        %1499 = vmatprep.subr.mxu0 0.0
        %1500 = vmatpush2.msra.mxu0 0.0
        %1501 = vmatprep.subr.mxu0 0.0
        %1502 = vmatpush2.msra.mxu0 0.0
        %1503 = vmatprep.subr.mxu0 0.0
        %1504 = vmatpush2.msra.mxu0 0.0
        %1505 = vmatprep.subr.mxu0 0.0
        %1506 = vmatpush2.msra.mxu0 0.0
        %1507 = vmatprep.subr.mxu0 0.0
        %1508 = vmatpush2.msra.mxu0 0.0
        %1509 = vmatprep.subr.mxu0 0.0
        %1510 = vmatpush2.msra.mxu0 0.0
        %1511 = vmatprep.subr.mxu0 0.0
        %1512 = vmatpush2.msra.mxu0 0.0
        %1513 = vmatprep.subr.mxu0 0.0
        %1514 = vmatpush2.msra.mxu0 0.0
        %1515 = vmatprep.subr.mxu0 0.0
        %1516 = vmatpush2.msra.mxu0 0.0
        %1517 = vmatprep.subr.mxu0 0.0
        %1518 = vmatpush2.msra.mxu0 0.0
        %1519 = vmatprep.subr.mxu0 0.0
        %1520 = vmatpush2.msra.mxu0 0.0
        %1521 = vmatprep.subr.mxu0 0.0
        %1522 = vmatpush2.msra.mxu0 0.0
        %1523 = vmatprep.subr.mxu0 0.0
        %1524 = vmatpush2.msra.mxu0 0.0
        %1525 = vmatprep.subr.mxu0 0.0
        %1526 = vmatpush2.msra.mxu0 0.0
        %1527 = vmatprep.subr.mxu0 0.0
        %1528 = vmatpush2.msra.mxu0 0.0
        %1529 = vmatprep.mubr.f32.mxu0 0.0
        %1530 = vmatmul.mubr.f32.gmra.mxu0 %v1329
        %v1531 = vpop.f32.mrf.mxu0
        %v1532 = vadd.f32 0.0, %v1531
        %v1533 = vpop.f32.mrf.mxu0
        %1534 = vmatprep.mubr.f32.mxu0 0.0
        %1535 = vmatmul.mubr.f32.gmra.mxu0 %v1332
        %v1536 = vpop.f32.mrf.mxu0
        %v1537 = vadd.f32 0.0, %v1536
        %v1538 = vpop.f32.mrf.mxu0
        %1539 = vmatprep.mubr.f32.mxu0 0.0
        %1540 = vmatmul.mubr.f32.gmra.mxu0 %v1335
        %v1541 = vpop.f32.mrf.mxu0
        %v1542 = vadd.f32 0.0, %v1541
        %v1543 = vpop.f32.mrf.mxu0
        %1544 = vmatprep.mubr.f32.mxu0 0.0
        %1545 = vmatmul.mubr.f32.gmra.mxu0 %v1338
        %v1546 = vpop.f32.mrf.mxu0
        %v1547 = vadd.f32 0.0, %v1546
        %v1548 = vpop.f32.mrf.mxu0
        %1549 = vmatprep.mubr.f32.mxu0 0.0
        %1550 = vmatmul.mubr.f32.gmra.mxu0 %v1341
        %v1551 = vpop.f32.mrf.mxu0
        %v1552 = vadd.f32 0.0, %v1551
        %v1553 = vpop.f32.mrf.mxu0
        %1554 = vmatprep.mubr.f32.mxu0 0.0
        %1555 = vmatmul.mubr.f32.gmra.mxu0 %v1344
        %v1556 = vpop.f32.mrf.mxu0
        %v1557 = vadd.f32 0.0, %v1556
        %v1558 = vpop.f32.mrf.mxu0
        %1559 = vmatprep.mubr.f32.mxu0 0.0
        %1560 = vmatmul.mubr.f32.gmra.mxu0 %v1347
        %v1561 = vpop.f32.mrf.mxu0
        %v1562 = vadd.f32 0.0, %v1561
        %v1563 = vpop.f32.mrf.mxu0
        %1564 = vmatprep.mubr.f32.mxu0 0.0
        %1565 = vmatmul.mubr.f32.gmra.mxu0 %v1350
        %v1566 = vpop.f32.mrf.mxu0
        %v1567 = vadd.f32 0.0, %v1566
        %v1568 = vpop.f32.mrf.mxu0
        %1569 = vdwg.mxu0
        %v1570 = vmul.f32 %v1419, %v1207
        %v1571 = vmul.f32 %v1421, %v1208
        %v1572 = vmul.f32 %v1532, %v1209
        %v1573 = vmul.f32 %v1425, %v1207
        %v1574 = vmul.f32 %v1427, %v1208
        %v1575 = vmul.f32 %v1537, %v1209
        %v1576 = vmul.f32 %v1431, %v1207
        %v1577 = vmul.f32 %v1433, %v1208
        %v1578 = vmul.f32 %v1542, %v1209
        %v1579 = vmul.f32 %v1437, %v1207
        %v1580 = vmul.f32 %v1439, %v1208
        %v1581 = vmul.f32 %v1547, %v1209
        %v1582 = vmul.f32 %v1443, %v1207
        %v1583 = vmul.f32 %v1445, %v1208
        %v1584 = vmul.f32 %v1552, %v1209
        %v1585 = vmul.f32 %v1449, %v1207
        %v1586 = vmul.f32 %v1451, %v1208
        %v1587 = vmul.f32 %v1557, %v1209
        %v1588 = vmul.f32 %v1455, %v1207
        %v1589 = vmul.f32 %v1457, %v1208
        %v1590 = vmul.f32 %v1562, %v1209
        %v1591 = vmul.f32 %v1461, %v1207
        %v1592 = vmul.f32 %v1463, %v1208
        %v1593 = vmul.f32 %v1567, %v1209
        %s1594 = scalar_lea.vmem %s5, 128
        %v1595 = vld [vmem:[%s1594] sm:$0xff]
        %v1596 = vld [vmem:[%s1594 + $0x8] sm:$0xff]
        %v1597 = vld [vmem:[%s1594 + $0x10] sm:$0xff]
        %v1598 = vld [vmem:[%s1594 + $0x18] sm:$0xff]
        %v1599 = vld [vmem:[%s1594 + $0x20] sm:$0xff]
        %v1600 = vld [vmem:[%s1594 + $0x28] sm:$0xff]
        %v1601 = vld [vmem:[%s1594 + $0x30] sm:$0xff]
        %v1602 = vld [vmem:[%s1594 + $0x38] sm:$0xff]
        %v1603 = vld [vmem:[%s1594 + $0x40] sm:$0xff]
        %v1604 = vld [vmem:[%s1594 + $0x48] sm:$0xff]
        %v1605 = vld [vmem:[%s1594 + $0x50] sm:$0xff]
        %v1606 = vld [vmem:[%s1594 + $0x58] sm:$0xff]
        %v1607 = vld [vmem:[%s1594 + $0x60] sm:$0xff]
        %v1608 = vld [vmem:[%s1594 + $0x68] sm:$0xff]
        %v1609 = vld [vmem:[%s1594 + $0x70] sm:$0xff]
        %v1610 = vld [vmem:[%s1594 + $0x78] sm:$0xff]
        %1611 = vmatprep.subr.mxu0 0.0
        %1612 = vmatpush1.msra.mxu0 %v1610
        %1613 = vmatprep.subr.mxu0 0.0
        %1614 = vmatpush1.msra.mxu0 %v1609
        %1615 = vmatprep.subr.mxu0 0.0
        %1616 = vmatpush1.msra.mxu0 %v1608
        %1617 = vmatprep.subr.mxu0 0.0
        %1618 = vmatpush1.msra.mxu0 %v1607
        %1619 = vmatprep.subr.mxu0 0.0
        %1620 = vmatpush1.msra.mxu0 %v1606
        %1621 = vmatprep.subr.mxu0 0.0
        %1622 = vmatpush1.msra.mxu0 %v1605
        %1623 = vmatprep.subr.mxu0 0.0
        %1624 = vmatpush1.msra.mxu0 %v1604
        %1625 = vmatprep.subr.mxu0 0.0
        %1626 = vmatpush1.msra.mxu0 %v1603
        %1627 = vmatprep.subr.mxu0 0.0
        %1628 = vmatpush1.msra.mxu0 %v1602
        %1629 = vmatprep.subr.mxu0 0.0
        %1630 = vmatpush1.msra.mxu0 %v1601
        %1631 = vmatprep.subr.mxu0 0.0
        %1632 = vmatpush1.msra.mxu0 %v1600
        %1633 = vmatprep.subr.mxu0 0.0
        %1634 = vmatpush1.msra.mxu0 %v1599
        %1635 = vmatprep.subr.mxu0 0.0
        %1636 = vmatpush1.msra.mxu0 %v1598
        %1637 = vmatprep.subr.mxu0 0.0
        %1638 = vmatpush1.msra.mxu0 %v1597
        %1639 = vmatprep.subr.mxu0 0.0
        %1640 = vmatpush1.msra.mxu0 %v1596
        %1641 = vmatprep.subr.mxu0 0.0
        %1642 = vmatpush1.msra.mxu0 %v1595
        %1643 = vmatprep.subr.mxu0 0.0
        %1644 = vmatpush2.msra.mxu0 0.0
        %1645 = vmatprep.subr.mxu0 0.0
        %1646 = vmatpush2.msra.mxu0 0.0
        %1647 = vmatprep.subr.mxu0 0.0
        %1648 = vmatpush2.msra.mxu0 0.0
        %1649 = vmatprep.subr.mxu0 0.0
        %1650 = vmatpush2.msra.mxu0 0.0
        %1651 = vmatprep.subr.mxu0 0.0
        %1652 = vmatpush2.msra.mxu0 0.0
        %1653 = vmatprep.subr.mxu0 0.0
        %1654 = vmatpush2.msra.mxu0 0.0
        %1655 = vmatprep.subr.mxu0 0.0
        %1656 = vmatpush2.msra.mxu0 0.0
        %1657 = vmatprep.subr.mxu0 0.0
        %1658 = vmatpush2.msra.mxu0 0.0
        %1659 = vmatprep.subr.mxu0 0.0
        %1660 = vmatpush2.msra.mxu0 0.0
        %1661 = vmatprep.subr.mxu0 0.0
        %1662 = vmatpush2.msra.mxu0 0.0
        %1663 = vmatprep.subr.mxu0 0.0
        %1664 = vmatpush2.msra.mxu0 0.0
        %1665 = vmatprep.subr.mxu0 0.0
        %1666 = vmatpush2.msra.mxu0 0.0
        %1667 = vmatprep.subr.mxu0 0.0
        %1668 = vmatpush2.msra.mxu0 0.0
        %1669 = vmatprep.subr.mxu0 0.0
        %1670 = vmatpush2.msra.mxu0 0.0
        %1671 = vmatprep.subr.mxu0 0.0
        %1672 = vmatpush2.msra.mxu0 0.0
        %1673 = vmatprep.subr.mxu0 0.0
        %1674 = vmatpush2.msra.mxu0 0.0
        %1675 = vmatprep.mubr.f32.mxu0 0.0
        %1676 = vmatmul.mubr.f32.gmra.mxu0 %v624
        %v1677 = vpop.f32.mrf.mxu0
        %v1678 = vadd.f32 0.0, %v1677
        %v1679 = vpop.f32.mrf.mxu0
        %1680 = vdwg.mxu0
        %1681 = vxpose.xlu0.b32.start [1/16] %v1678, 128
        %1682 = vxpose.xlu0.b32.cont [2/16] 0.0, 128
        %1683 = vxpose.xlu0.b32.cont [3/16] 0.0, 128
        %1684 = vxpose.xlu0.b32.cont [4/16] 0.0, 128
        %1685 = vxpose.xlu0.b32.cont [5/16] 0.0, 128
        %1686 = vxpose.xlu0.b32.cont [6/16] 0.0, 128
        %1687 = vxpose.xlu0.b32.cont [7/16] 0.0, 128
        %1688 = vxpose.xlu0.b32.cont [8/16] 0.0, 128
        %1689 = vxpose.xlu0.b32.cont [9/16] 0.0, 128
        %1690 = vxpose.xlu0.b32.cont [10/16] 0.0, 128
        %1691 = vxpose.xlu0.b32.cont [11/16] 0.0, 128
        %1692 = vxpose.xlu0.b32.cont [12/16] 0.0, 128
        %1693 = vxpose.xlu0.b32.cont [13/16] 0.0, 128
        %1694 = vxpose.xlu0.b32.cont [14/16] 0.0, 128
        %1695 = vxpose.xlu0.b32.cont [15/16] 0.0, 128
        %1696 = vxpose.xlu0.b32.end [16/16] 0.0, 128
        %v1697 = vpop.trf.xlu0
        %v1698 = vpop.trf.xlu0
        %v1699 = vpop.trf.xlu0
        %v1700 = vpop.trf.xlu0
        %v1701 = vpop.trf.xlu0
        %v1702 = vpop.trf.xlu0
        %v1703 = vpop.trf.xlu0
        %v1704 = vpop.trf.xlu0
        %v1705 = vpop.trf.xlu0
        %v1706 = vpop.trf.xlu0
        %v1707 = vpop.trf.xlu0
        %v1708 = vpop.trf.xlu0
        %v1709 = vpop.trf.xlu0
        %v1710 = vpop.trf.xlu0
        %v1711 = vpop.trf.xlu0
        %v1712 = vpop.trf.xlu0
        %v1714 = vsel %vm738, %v1697, 0
        %v1717 = vsel %vm738, %v1698, 0
        %v1720 = vsel %vm738, %v1699, 0
        %v1723 = vsel %vm738, %v1700, 0
        %v1726 = vsel %vm738, %v1701, 0
        %v1729 = vsel %vm738, %v1702, 0
        %v1732 = vsel %vm738, %v1703, 0
        %v1735 = vsel %vm738, %v1704, 0
        %1737 = vmatprep.subr.mxu0 0.0
        %1738 = vmatpush1.msra.mxu0 0.0
        %1739 = vmatprep.subr.mxu0 0.0
        %1740 = vmatpush1.msra.mxu0 0.0
        %1741 = vmatprep.subr.mxu0 0.0
        %1742 = vmatpush1.msra.mxu0 0.0
        %1743 = vmatprep.subr.mxu0 0.0
        %1744 = vmatpush1.msra.mxu0 0.0
        %1745 = vmatprep.subr.mxu0 0.0
        %1746 = vmatpush1.msra.mxu0 0.0
        %1747 = vmatprep.subr.mxu0 0.0
        %1748 = vmatpush1.msra.mxu0 0.0
        %1749 = vmatprep.subr.mxu0 0.0
        %1750 = vmatpush1.msra.mxu0 0.0
        %1751 = vmatprep.subr.mxu0 0.0
        %1752 = vmatpush1.msra.mxu0 0.0
        %1753 = vmatprep.subr.mxu0 0.0
        %1754 = vmatpush1.msra.mxu0 0.0
        %1755 = vmatprep.subr.mxu0 0.0
        %1756 = vmatpush1.msra.mxu0 0.0
        %1757 = vmatprep.subr.mxu0 0.0
        %1758 = vmatpush1.msra.mxu0 0.0
        %1759 = vmatprep.subr.mxu0 0.0
        %1760 = vmatpush1.msra.mxu0 0.0
        %1761 = vmatprep.subr.mxu0 0.0
        %1762 = vmatpush1.msra.mxu0 0.0
        %1763 = vmatprep.subr.mxu0 0.0
        %1764 = vmatpush1.msra.mxu0 0.0
        %1765 = vmatprep.subr.mxu0 0.0
        %1766 = vmatpush1.msra.mxu0 0.0
        %1767 = vmatprep.subr.mxu0 %v678
        %1768 = vmatpush1.msra.mxu0 %v651
        %1769 = vmatprep.subr.mxu0 0.0
        %1770 = vmatpush2.msra.mxu0 0.0
        %1771 = vmatprep.subr.mxu0 0.0
        %1772 = vmatpush2.msra.mxu0 0.0
        %1773 = vmatprep.subr.mxu0 0.0
        %1774 = vmatpush2.msra.mxu0 0.0
        %1775 = vmatprep.subr.mxu0 0.0
        %1776 = vmatpush2.msra.mxu0 0.0
        %1777 = vmatprep.subr.mxu0 0.0
        %1778 = vmatpush2.msra.mxu0 0.0
        %1779 = vmatprep.subr.mxu0 0.0
        %1780 = vmatpush2.msra.mxu0 0.0
        %1781 = vmatprep.subr.mxu0 0.0
        %1782 = vmatpush2.msra.mxu0 0.0
        %1783 = vmatprep.subr.mxu0 0.0
        %1784 = vmatpush2.msra.mxu0 0.0
        %1785 = vmatprep.subr.mxu0 0.0
        %1786 = vmatpush2.msra.mxu0 0.0
        %1787 = vmatprep.subr.mxu0 0.0
        %1788 = vmatpush2.msra.mxu0 0.0
        %1789 = vmatprep.subr.mxu0 0.0
        %1790 = vmatpush2.msra.mxu0 0.0
        %1791 = vmatprep.subr.mxu0 0.0
        %1792 = vmatpush2.msra.mxu0 0.0
        %1793 = vmatprep.subr.mxu0 0.0
        %1794 = vmatpush2.msra.mxu0 0.0
        %1795 = vmatprep.subr.mxu0 0.0
        %1796 = vmatpush2.msra.mxu0 0.0
        %1797 = vmatprep.subr.mxu0 0.0
        %1798 = vmatpush2.msra.mxu0 0.0
        %1799 = vmatprep.subr.mxu0 0.0
        %1800 = vmatpush2.msra.mxu0 0.0
        %1801 = vmatprep.mubr.f32.mxu0 0.0
        %1802 = vmatmul.mubr.f32.gmra.mxu0 %v1714
        %v1803 = vpop.f32.mrf.mxu0
        %v1804 = vadd.f32 0.0, %v1803
        %v1805 = vpop.f32.mrf.mxu0
        %v1806 = vadd.f32 0.0, %v1805
        %1807 = vmatprep.mubr.f32.mxu0 0.0
        %1808 = vmatmul.mubr.f32.gmra.mxu0 %v1717
        %v1809 = vpop.f32.mrf.mxu0
        %v1810 = vadd.f32 0.0, %v1809
        %v1811 = vpop.f32.mrf.mxu0
        %v1812 = vadd.f32 0.0, %v1811
        %1813 = vmatprep.mubr.f32.mxu0 0.0
        %1814 = vmatmul.mubr.f32.gmra.mxu0 %v1720
        %v1815 = vpop.f32.mrf.mxu0
        %v1816 = vadd.f32 0.0, %v1815
        %v1817 = vpop.f32.mrf.mxu0
        %v1818 = vadd.f32 0.0, %v1817
        %1819 = vmatprep.mubr.f32.mxu0 0.0
        %1820 = vmatmul.mubr.f32.gmra.mxu0 %v1723
        %v1821 = vpop.f32.mrf.mxu0
        %v1822 = vadd.f32 0.0, %v1821
        %v1823 = vpop.f32.mrf.mxu0
        %v1824 = vadd.f32 0.0, %v1823
        %1825 = vmatprep.mubr.f32.mxu0 0.0
        %1826 = vmatmul.mubr.f32.gmra.mxu0 %v1726
        %v1827 = vpop.f32.mrf.mxu0
        %v1828 = vadd.f32 0.0, %v1827
        %v1829 = vpop.f32.mrf.mxu0
        %v1830 = vadd.f32 0.0, %v1829
        %1831 = vmatprep.mubr.f32.mxu0 0.0
        %1832 = vmatmul.mubr.f32.gmra.mxu0 %v1729
        %v1833 = vpop.f32.mrf.mxu0
        %v1834 = vadd.f32 0.0, %v1833
        %v1835 = vpop.f32.mrf.mxu0
        %v1836 = vadd.f32 0.0, %v1835
        %1837 = vmatprep.mubr.f32.mxu0 0.0
        %1838 = vmatmul.mubr.f32.gmra.mxu0 %v1732
        %v1839 = vpop.f32.mrf.mxu0
        %v1840 = vadd.f32 0.0, %v1839
        %v1841 = vpop.f32.mrf.mxu0
        %v1842 = vadd.f32 0.0, %v1841
        %1843 = vmatprep.mubr.f32.mxu0 0.0
        %1844 = vmatmul.mubr.f32.gmra.mxu0 %v1735
        %v1845 = vpop.f32.mrf.mxu0
        %v1846 = vadd.f32 0.0, %v1845
        %v1847 = vpop.f32.mrf.mxu0
        %v1848 = vadd.f32 0.0, %v1847
        %1849 = vdwg.mxu0
        %1850 = vmatprep.subr.mxu0 0.0
        %1851 = vmatpush1.msra.mxu0 0.0
        %1852 = vmatprep.subr.mxu0 0.0
        %1853 = vmatpush1.msra.mxu0 0.0
        %1854 = vmatprep.subr.mxu0 0.0
        %1855 = vmatpush1.msra.mxu0 0.0
        %1856 = vmatprep.subr.mxu0 0.0
        %1857 = vmatpush1.msra.mxu0 0.0
        %1858 = vmatprep.subr.mxu0 0.0
        %1859 = vmatpush1.msra.mxu0 0.0
        %1860 = vmatprep.subr.mxu0 0.0
        %1861 = vmatpush1.msra.mxu0 0.0
        %1862 = vmatprep.subr.mxu0 0.0
        %1863 = vmatpush1.msra.mxu0 0.0
        %1864 = vmatprep.subr.mxu0 0.0
        %1865 = vmatpush1.msra.mxu0 0.0
        %1866 = vmatprep.subr.mxu0 0.0
        %1867 = vmatpush1.msra.mxu0 0.0
        %1868 = vmatprep.subr.mxu0 0.0
        %1869 = vmatpush1.msra.mxu0 0.0
        %1870 = vmatprep.subr.mxu0 0.0
        %1871 = vmatpush1.msra.mxu0 0.0
        %1872 = vmatprep.subr.mxu0 0.0
        %1873 = vmatpush1.msra.mxu0 0.0
        %1874 = vmatprep.subr.mxu0 0.0
        %1875 = vmatpush1.msra.mxu0 0.0
        %1876 = vmatprep.subr.mxu0 0.0
        %1877 = vmatpush1.msra.mxu0 0.0
        %1878 = vmatprep.subr.mxu0 0.0
        %1879 = vmatpush1.msra.mxu0 0.0
        %1880 = vmatprep.subr.mxu0 0.0
        %1881 = vmatpush1.msra.mxu0 %v705
        %1882 = vmatprep.subr.mxu0 0.0
        %1883 = vmatpush2.msra.mxu0 0.0
        %1884 = vmatprep.subr.mxu0 0.0
        %1885 = vmatpush2.msra.mxu0 0.0
        %1886 = vmatprep.subr.mxu0 0.0
        %1887 = vmatpush2.msra.mxu0 0.0
        %1888 = vmatprep.subr.mxu0 0.0
        %1889 = vmatpush2.msra.mxu0 0.0
        %1890 = vmatprep.subr.mxu0 0.0
        %1891 = vmatpush2.msra.mxu0 0.0
        %1892 = vmatprep.subr.mxu0 0.0
        %1893 = vmatpush2.msra.mxu0 0.0
        %1894 = vmatprep.subr.mxu0 0.0
        %1895 = vmatpush2.msra.mxu0 0.0
        %1896 = vmatprep.subr.mxu0 0.0
        %1897 = vmatpush2.msra.mxu0 0.0
        %1898 = vmatprep.subr.mxu0 0.0
        %1899 = vmatpush2.msra.mxu0 0.0
        %1900 = vmatprep.subr.mxu0 0.0
        %1901 = vmatpush2.msra.mxu0 0.0
        %1902 = vmatprep.subr.mxu0 0.0
        %1903 = vmatpush2.msra.mxu0 0.0
        %1904 = vmatprep.subr.mxu0 0.0
        %1905 = vmatpush2.msra.mxu0 0.0
        %1906 = vmatprep.subr.mxu0 0.0
        %1907 = vmatpush2.msra.mxu0 0.0
        %1908 = vmatprep.subr.mxu0 0.0
        %1909 = vmatpush2.msra.mxu0 0.0
        %1910 = vmatprep.subr.mxu0 0.0
        %1911 = vmatpush2.msra.mxu0 0.0
        %1912 = vmatprep.subr.mxu0 0.0
        %1913 = vmatpush2.msra.mxu0 0.0
        %1914 = vmatprep.mubr.f32.mxu0 0.0
        %1915 = vmatmul.mubr.f32.gmra.mxu0 %v1714
        %v1916 = vpop.f32.mrf.mxu0
        %v1917 = vadd.f32 0.0, %v1916
        %v1918 = vpop.f32.mrf.mxu0
        %1919 = vmatprep.mubr.f32.mxu0 0.0
        %1920 = vmatmul.mubr.f32.gmra.mxu0 %v1717
        %v1921 = vpop.f32.mrf.mxu0
        %v1922 = vadd.f32 0.0, %v1921
        %v1923 = vpop.f32.mrf.mxu0
        %1924 = vmatprep.mubr.f32.mxu0 0.0
        %1925 = vmatmul.mubr.f32.gmra.mxu0 %v1720
        %v1926 = vpop.f32.mrf.mxu0
        %v1927 = vadd.f32 0.0, %v1926
        %v1928 = vpop.f32.mrf.mxu0
        %1929 = vmatprep.mubr.f32.mxu0 0.0
        %1930 = vmatmul.mubr.f32.gmra.mxu0 %v1723
        %v1931 = vpop.f32.mrf.mxu0
        %v1932 = vadd.f32 0.0, %v1931
        %v1933 = vpop.f32.mrf.mxu0
        %1934 = vmatprep.mubr.f32.mxu0 0.0
        %1935 = vmatmul.mubr.f32.gmra.mxu0 %v1726
        %v1936 = vpop.f32.mrf.mxu0
        %v1937 = vadd.f32 0.0, %v1936
        %v1938 = vpop.f32.mrf.mxu0
        %1939 = vmatprep.mubr.f32.mxu0 0.0
        %1940 = vmatmul.mubr.f32.gmra.mxu0 %v1729
        %v1941 = vpop.f32.mrf.mxu0
        %v1942 = vadd.f32 0.0, %v1941
        %v1943 = vpop.f32.mrf.mxu0
        %1944 = vmatprep.mubr.f32.mxu0 0.0
        %1945 = vmatmul.mubr.f32.gmra.mxu0 %v1732
        %v1946 = vpop.f32.mrf.mxu0
        %v1947 = vadd.f32 0.0, %v1946
        %v1948 = vpop.f32.mrf.mxu0
        %1949 = vmatprep.mubr.f32.mxu0 0.0
        %1950 = vmatmul.mubr.f32.gmra.mxu0 %v1735
        %v1951 = vpop.f32.mrf.mxu0
        %v1952 = vadd.f32 0.0, %v1951
        %v1953 = vpop.f32.mrf.mxu0
        %1954 = vdwg.mxu0
        %v1955 = vmul.f32 %v1804, %v1207
        %v1956 = vmul.f32 %v1806, %v1208
        %v1957 = vmul.f32 %v1917, %v1209
        %v1958 = vmul.f32 %v1810, %v1207
        %v1959 = vmul.f32 %v1812, %v1208
        %v1960 = vmul.f32 %v1922, %v1209
        %v1961 = vmul.f32 %v1816, %v1207
        %v1962 = vmul.f32 %v1818, %v1208
        %v1963 = vmul.f32 %v1927, %v1209
        %v1964 = vmul.f32 %v1822, %v1207
        %v1965 = vmul.f32 %v1824, %v1208
        %v1966 = vmul.f32 %v1932, %v1209
        %v1967 = vmul.f32 %v1828, %v1207
        %v1968 = vmul.f32 %v1830, %v1208
        %v1969 = vmul.f32 %v1937, %v1209
        %v1970 = vmul.f32 %v1834, %v1207
        %v1971 = vmul.f32 %v1836, %v1208
        %v1972 = vmul.f32 %v1942, %v1209
        %v1973 = vmul.f32 %v1840, %v1207
        %v1974 = vmul.f32 %v1842, %v1208
        %v1975 = vmul.f32 %v1947, %v1209
        %v1976 = vmul.f32 %v1846, %v1207
        %v1977 = vmul.f32 %v1848, %v1208
        %v1978 = vmul.f32 %v1952, %v1209
        %s1979 = scalar_lea.vmem %s5, 256
        %v1980 = vld [vmem:[%s1979] sm:$0xff]
        %v1981 = vld [vmem:[%s1979 + $0x8] sm:$0xff]
        %v1982 = vld [vmem:[%s1979 + $0x10] sm:$0xff]
        %v1983 = vld [vmem:[%s1979 + $0x18] sm:$0xff]
        %v1984 = vld [vmem:[%s1979 + $0x20] sm:$0xff]
        %v1985 = vld [vmem:[%s1979 + $0x28] sm:$0xff]
        %v1986 = vld [vmem:[%s1979 + $0x30] sm:$0xff]
        %v1987 = vld [vmem:[%s1979 + $0x38] sm:$0xff]
        %v1988 = vld [vmem:[%s1979 + $0x40] sm:$0xff]
        %v1989 = vld [vmem:[%s1979 + $0x48] sm:$0xff]
        %v1990 = vld [vmem:[%s1979 + $0x50] sm:$0xff]
        %v1991 = vld [vmem:[%s1979 + $0x58] sm:$0xff]
        %v1992 = vld [vmem:[%s1979 + $0x60] sm:$0xff]
        %v1993 = vld [vmem:[%s1979 + $0x68] sm:$0xff]
        %v1994 = vld [vmem:[%s1979 + $0x70] sm:$0xff]
        %v1995 = vld [vmem:[%s1979 + $0x78] sm:$0xff]
        %1996 = vmatprep.subr.mxu0 0.0
        %1997 = vmatpush1.msra.mxu0 %v1995
        %1998 = vmatprep.subr.mxu0 0.0
        %1999 = vmatpush1.msra.mxu0 %v1994
        %2000 = vmatprep.subr.mxu0 0.0
        %2001 = vmatpush1.msra.mxu0 %v1993
        %2002 = vmatprep.subr.mxu0 0.0
        %2003 = vmatpush1.msra.mxu0 %v1992
        %2004 = vmatprep.subr.mxu0 0.0
        %2005 = vmatpush1.msra.mxu0 %v1991
        %2006 = vmatprep.subr.mxu0 0.0
        %2007 = vmatpush1.msra.mxu0 %v1990
        %2008 = vmatprep.subr.mxu0 0.0
        %2009 = vmatpush1.msra.mxu0 %v1989
        %2010 = vmatprep.subr.mxu0 0.0
        %2011 = vmatpush1.msra.mxu0 %v1988
        %2012 = vmatprep.subr.mxu0 0.0
        %2013 = vmatpush1.msra.mxu0 %v1987
        %2014 = vmatprep.subr.mxu0 0.0
        %2015 = vmatpush1.msra.mxu0 %v1986
        %2016 = vmatprep.subr.mxu0 0.0
        %2017 = vmatpush1.msra.mxu0 %v1985
        %2018 = vmatprep.subr.mxu0 0.0
        %2019 = vmatpush1.msra.mxu0 %v1984
        %2020 = vmatprep.subr.mxu0 0.0
        %2021 = vmatpush1.msra.mxu0 %v1983
        %2022 = vmatprep.subr.mxu0 0.0
        %2023 = vmatpush1.msra.mxu0 %v1982
        %2024 = vmatprep.subr.mxu0 0.0
        %2025 = vmatpush1.msra.mxu0 %v1981
        %2026 = vmatprep.subr.mxu0 0.0
        %2027 = vmatpush1.msra.mxu0 %v1980
        %2028 = vmatprep.subr.mxu0 0.0
        %2029 = vmatpush2.msra.mxu0 0.0
        %2030 = vmatprep.subr.mxu0 0.0
        %2031 = vmatpush2.msra.mxu0 0.0
        %2032 = vmatprep.subr.mxu0 0.0
        %2033 = vmatpush2.msra.mxu0 0.0
        %2034 = vmatprep.subr.mxu0 0.0
        %2035 = vmatpush2.msra.mxu0 0.0
        %2036 = vmatprep.subr.mxu0 0.0
        %2037 = vmatpush2.msra.mxu0 0.0
        %2038 = vmatprep.subr.mxu0 0.0
        %2039 = vmatpush2.msra.mxu0 0.0
        %2040 = vmatprep.subr.mxu0 0.0
        %2041 = vmatpush2.msra.mxu0 0.0
        %2042 = vmatprep.subr.mxu0 0.0
        %2043 = vmatpush2.msra.mxu0 0.0
        %2044 = vmatprep.subr.mxu0 0.0
        %2045 = vmatpush2.msra.mxu0 0.0
        %2046 = vmatprep.subr.mxu0 0.0
        %2047 = vmatpush2.msra.mxu0 0.0
        %2048 = vmatprep.subr.mxu0 0.0
        %2049 = vmatpush2.msra.mxu0 0.0
        %2050 = vmatprep.subr.mxu0 0.0
        %2051 = vmatpush2.msra.mxu0 0.0
        %2052 = vmatprep.subr.mxu0 0.0
        %2053 = vmatpush2.msra.mxu0 0.0
        %2054 = vmatprep.subr.mxu0 0.0
        %2055 = vmatpush2.msra.mxu0 0.0
        %2056 = vmatprep.subr.mxu0 0.0
        %2057 = vmatpush2.msra.mxu0 0.0
        %2058 = vmatprep.subr.mxu0 0.0
        %2059 = vmatpush2.msra.mxu0 0.0
        %2060 = vmatprep.mubr.f32.mxu0 0.0
        %2061 = vmatmul.mubr.f32.gmra.mxu0 %v624
        %v2062 = vpop.f32.mrf.mxu0
        %v2063 = vadd.f32 0.0, %v2062
        %v2064 = vpop.f32.mrf.mxu0
        %2065 = vdwg.mxu0
        %2066 = vxpose.xlu0.b32.start [1/16] %v2063, 128
        %2067 = vxpose.xlu0.b32.cont [2/16] 0.0, 128
        %2068 = vxpose.xlu0.b32.cont [3/16] 0.0, 128
        %2069 = vxpose.xlu0.b32.cont [4/16] 0.0, 128
        %2070 = vxpose.xlu0.b32.cont [5/16] 0.0, 128
        %2071 = vxpose.xlu0.b32.cont [6/16] 0.0, 128
        %2072 = vxpose.xlu0.b32.cont [7/16] 0.0, 128
        %2073 = vxpose.xlu0.b32.cont [8/16] 0.0, 128
        %2074 = vxpose.xlu0.b32.cont [9/16] 0.0, 128
        %2075 = vxpose.xlu0.b32.cont [10/16] 0.0, 128
        %2076 = vxpose.xlu0.b32.cont [11/16] 0.0, 128
        %2077 = vxpose.xlu0.b32.cont [12/16] 0.0, 128
        %2078 = vxpose.xlu0.b32.cont [13/16] 0.0, 128
        %2079 = vxpose.xlu0.b32.cont [14/16] 0.0, 128
        %2080 = vxpose.xlu0.b32.cont [15/16] 0.0, 128
        %2081 = vxpose.xlu0.b32.end [16/16] 0.0, 128
        %v2082 = vpop.trf.xlu0
        %v2083 = vpop.trf.xlu0
        %v2084 = vpop.trf.xlu0
        %v2085 = vpop.trf.xlu0
        %v2086 = vpop.trf.xlu0
        %v2087 = vpop.trf.xlu0
        %v2088 = vpop.trf.xlu0
        %v2089 = vpop.trf.xlu0
        %v2090 = vpop.trf.xlu0
        %v2091 = vpop.trf.xlu0
        %v2092 = vpop.trf.xlu0
        %v2093 = vpop.trf.xlu0
        %v2094 = vpop.trf.xlu0
        %v2095 = vpop.trf.xlu0
        %v2096 = vpop.trf.xlu0
        %v2097 = vpop.trf.xlu0
        %v2099 = vsel %vm738, %v2082, 0
        %v2102 = vsel %vm738, %v2083, 0
        %v2105 = vsel %vm738, %v2084, 0
        %v2108 = vsel %vm738, %v2085, 0
        %v2111 = vsel %vm738, %v2086, 0
        %v2114 = vsel %vm738, %v2087, 0
        %v2117 = vsel %vm738, %v2088, 0
        %v2120 = vsel %vm738, %v2089, 0
        %2122 = vmatprep.subr.mxu0 0.0
        %2123 = vmatpush1.msra.mxu0 0.0
        %2124 = vmatprep.subr.mxu0 0.0
        %2125 = vmatpush1.msra.mxu0 0.0
        %2126 = vmatprep.subr.mxu0 0.0
        %2127 = vmatpush1.msra.mxu0 0.0
        %2128 = vmatprep.subr.mxu0 0.0
        %2129 = vmatpush1.msra.mxu0 0.0
        %2130 = vmatprep.subr.mxu0 0.0
        %2131 = vmatpush1.msra.mxu0 0.0
        %2132 = vmatprep.subr.mxu0 0.0
        %2133 = vmatpush1.msra.mxu0 0.0
        %2134 = vmatprep.subr.mxu0 0.0
        %2135 = vmatpush1.msra.mxu0 0.0
        %2136 = vmatprep.subr.mxu0 0.0
        %2137 = vmatpush1.msra.mxu0 0.0
        %2138 = vmatprep.subr.mxu0 0.0
        %2139 = vmatpush1.msra.mxu0 0.0
        %2140 = vmatprep.subr.mxu0 0.0
        %2141 = vmatpush1.msra.mxu0 0.0
        %2142 = vmatprep.subr.mxu0 0.0
        %2143 = vmatpush1.msra.mxu0 0.0
        %2144 = vmatprep.subr.mxu0 0.0
        %2145 = vmatpush1.msra.mxu0 0.0
        %2146 = vmatprep.subr.mxu0 0.0
        %2147 = vmatpush1.msra.mxu0 0.0
        %2148 = vmatprep.subr.mxu0 0.0
        %2149 = vmatpush1.msra.mxu0 0.0
        %2150 = vmatprep.subr.mxu0 0.0
        %2151 = vmatpush1.msra.mxu0 0.0
        %2152 = vmatprep.subr.mxu0 %v678
        %2153 = vmatpush1.msra.mxu0 %v651
        %2154 = vmatprep.subr.mxu0 0.0
        %2155 = vmatpush2.msra.mxu0 0.0
        %2156 = vmatprep.subr.mxu0 0.0
        %2157 = vmatpush2.msra.mxu0 0.0
        %2158 = vmatprep.subr.mxu0 0.0
        %2159 = vmatpush2.msra.mxu0 0.0
        %2160 = vmatprep.subr.mxu0 0.0
        %2161 = vmatpush2.msra.mxu0 0.0
        %2162 = vmatprep.subr.mxu0 0.0
        %2163 = vmatpush2.msra.mxu0 0.0
        %2164 = vmatprep.subr.mxu0 0.0
        %2165 = vmatpush2.msra.mxu0 0.0
        %2166 = vmatprep.subr.mxu0 0.0
        %2167 = vmatpush2.msra.mxu0 0.0
        %2168 = vmatprep.subr.mxu0 0.0
        %2169 = vmatpush2.msra.mxu0 0.0
        %2170 = vmatprep.subr.mxu0 0.0
        %2171 = vmatpush2.msra.mxu0 0.0
        %2172 = vmatprep.subr.mxu0 0.0
        %2173 = vmatpush2.msra.mxu0 0.0
        %2174 = vmatprep.subr.mxu0 0.0
        %2175 = vmatpush2.msra.mxu0 0.0
        %2176 = vmatprep.subr.mxu0 0.0
        %2177 = vmatpush2.msra.mxu0 0.0
        %2178 = vmatprep.subr.mxu0 0.0
        %2179 = vmatpush2.msra.mxu0 0.0
        %2180 = vmatprep.subr.mxu0 0.0
        %2181 = vmatpush2.msra.mxu0 0.0
        %2182 = vmatprep.subr.mxu0 0.0
        %2183 = vmatpush2.msra.mxu0 0.0
        %2184 = vmatprep.subr.mxu0 0.0
        %2185 = vmatpush2.msra.mxu0 0.0
        %2186 = vmatprep.mubr.f32.mxu0 0.0
        %2187 = vmatmul.mubr.f32.gmra.mxu0 %v2099
        %v2188 = vpop.f32.mrf.mxu0
        %v2189 = vadd.f32 0.0, %v2188
        %v2190 = vpop.f32.mrf.mxu0
        %v2191 = vadd.f32 0.0, %v2190
        %2192 = vmatprep.mubr.f32.mxu0 0.0
        %2193 = vmatmul.mubr.f32.gmra.mxu0 %v2102
        %v2194 = vpop.f32.mrf.mxu0
        %v2195 = vadd.f32 0.0, %v2194
        %v2196 = vpop.f32.mrf.mxu0
        %v2197 = vadd.f32 0.0, %v2196
        %2198 = vmatprep.mubr.f32.mxu0 0.0
        %2199 = vmatmul.mubr.f32.gmra.mxu0 %v2105
        %v2200 = vpop.f32.mrf.mxu0
        %v2201 = vadd.f32 0.0, %v2200
        %v2202 = vpop.f32.mrf.mxu0
        %v2203 = vadd.f32 0.0, %v2202
        %2204 = vmatprep.mubr.f32.mxu0 0.0
        %2205 = vmatmul.mubr.f32.gmra.mxu0 %v2108
        %v2206 = vpop.f32.mrf.mxu0
        %v2207 = vadd.f32 0.0, %v2206
        %v2208 = vpop.f32.mrf.mxu0
        %v2209 = vadd.f32 0.0, %v2208
        %2210 = vmatprep.mubr.f32.mxu0 0.0
        %2211 = vmatmul.mubr.f32.gmra.mxu0 %v2111
        %v2212 = vpop.f32.mrf.mxu0
        %v2213 = vadd.f32 0.0, %v2212
        %v2214 = vpop.f32.mrf.mxu0
        %v2215 = vadd.f32 0.0, %v2214
        %2216 = vmatprep.mubr.f32.mxu0 0.0
        %2217 = vmatmul.mubr.f32.gmra.mxu0 %v2114
        %v2218 = vpop.f32.mrf.mxu0
        %v2219 = vadd.f32 0.0, %v2218
        %v2220 = vpop.f32.mrf.mxu0
        %v2221 = vadd.f32 0.0, %v2220
        %2222 = vmatprep.mubr.f32.mxu0 0.0
        %2223 = vmatmul.mubr.f32.gmra.mxu0 %v2117
        %v2224 = vpop.f32.mrf.mxu0
        %v2225 = vadd.f32 0.0, %v2224
        %v2226 = vpop.f32.mrf.mxu0
        %v2227 = vadd.f32 0.0, %v2226
        %2228 = vmatprep.mubr.f32.mxu0 0.0
        %2229 = vmatmul.mubr.f32.gmra.mxu0 %v2120
        %v2230 = vpop.f32.mrf.mxu0
        %v2231 = vadd.f32 0.0, %v2230
        %v2232 = vpop.f32.mrf.mxu0
        %v2233 = vadd.f32 0.0, %v2232
        %2234 = vdwg.mxu0
        %2235 = vmatprep.subr.mxu0 0.0
        %2236 = vmatpush1.msra.mxu0 0.0
        %2237 = vmatprep.subr.mxu0 0.0
        %2238 = vmatpush1.msra.mxu0 0.0
        %2239 = vmatprep.subr.mxu0 0.0
        %2240 = vmatpush1.msra.mxu0 0.0
        %2241 = vmatprep.subr.mxu0 0.0
        %2242 = vmatpush1.msra.mxu0 0.0
        %2243 = vmatprep.subr.mxu0 0.0
        %2244 = vmatpush1.msra.mxu0 0.0
        %2245 = vmatprep.subr.mxu0 0.0
        %2246 = vmatpush1.msra.mxu0 0.0
        %2247 = vmatprep.subr.mxu0 0.0
        %2248 = vmatpush1.msra.mxu0 0.0
        %2249 = vmatprep.subr.mxu0 0.0
        %2250 = vmatpush1.msra.mxu0 0.0
        %2251 = vmatprep.subr.mxu0 0.0
        %2252 = vmatpush1.msra.mxu0 0.0
        %2253 = vmatprep.subr.mxu0 0.0
        %2254 = vmatpush1.msra.mxu0 0.0
        %2255 = vmatprep.subr.mxu0 0.0
        %2256 = vmatpush1.msra.mxu0 0.0
        %2257 = vmatprep.subr.mxu0 0.0
        %2258 = vmatpush1.msra.mxu0 0.0
        %2259 = vmatprep.subr.mxu0 0.0
        %2260 = vmatpush1.msra.mxu0 0.0
        %2261 = vmatprep.subr.mxu0 0.0
        %2262 = vmatpush1.msra.mxu0 0.0
        %2263 = vmatprep.subr.mxu0 0.0
        %2264 = vmatpush1.msra.mxu0 0.0
        %2265 = vmatprep.subr.mxu0 0.0
        %2266 = vmatpush1.msra.mxu0 %v705
        %2267 = vmatprep.subr.mxu0 0.0
        %2268 = vmatpush2.msra.mxu0 0.0
        %2269 = vmatprep.subr.mxu0 0.0
        %2270 = vmatpush2.msra.mxu0 0.0
        %2271 = vmatprep.subr.mxu0 0.0
        %2272 = vmatpush2.msra.mxu0 0.0
        %2273 = vmatprep.subr.mxu0 0.0
        %2274 = vmatpush2.msra.mxu0 0.0
        %2275 = vmatprep.subr.mxu0 0.0
        %2276 = vmatpush2.msra.mxu0 0.0
        %2277 = vmatprep.subr.mxu0 0.0
        %2278 = vmatpush2.msra.mxu0 0.0
        %2279 = vmatprep.subr.mxu0 0.0
        %2280 = vmatpush2.msra.mxu0 0.0
        %2281 = vmatprep.subr.mxu0 0.0
        %2282 = vmatpush2.msra.mxu0 0.0
        %2283 = vmatprep.subr.mxu0 0.0
        %2284 = vmatpush2.msra.mxu0 0.0
        %2285 = vmatprep.subr.mxu0 0.0
        %2286 = vmatpush2.msra.mxu0 0.0
        %2287 = vmatprep.subr.mxu0 0.0
        %2288 = vmatpush2.msra.mxu0 0.0
        %2289 = vmatprep.subr.mxu0 0.0
        %2290 = vmatpush2.msra.mxu0 0.0
        %2291 = vmatprep.subr.mxu0 0.0
        %2292 = vmatpush2.msra.mxu0 0.0
        %2293 = vmatprep.subr.mxu0 0.0
        %2294 = vmatpush2.msra.mxu0 0.0
        %2295 = vmatprep.subr.mxu0 0.0
        %2296 = vmatpush2.msra.mxu0 0.0
        %2297 = vmatprep.subr.mxu0 0.0
        %2298 = vmatpush2.msra.mxu0 0.0
        %2299 = vmatprep.mubr.f32.mxu0 0.0
        %2300 = vmatmul.mubr.f32.gmra.mxu0 %v2099
        %v2301 = vpop.f32.mrf.mxu0
        %v2302 = vadd.f32 0.0, %v2301
        %v2303 = vpop.f32.mrf.mxu0
        %2304 = vmatprep.mubr.f32.mxu0 0.0
        %2305 = vmatmul.mubr.f32.gmra.mxu0 %v2102
        %v2306 = vpop.f32.mrf.mxu0
        %v2307 = vadd.f32 0.0, %v2306
        %v2308 = vpop.f32.mrf.mxu0
        %2309 = vmatprep.mubr.f32.mxu0 0.0
        %2310 = vmatmul.mubr.f32.gmra.mxu0 %v2105
        %v2311 = vpop.f32.mrf.mxu0
        %v2312 = vadd.f32 0.0, %v2311
        %v2313 = vpop.f32.mrf.mxu0
        %2314 = vmatprep.mubr.f32.mxu0 0.0
        %2315 = vmatmul.mubr.f32.gmra.mxu0 %v2108
        %v2316 = vpop.f32.mrf.mxu0
        %v2317 = vadd.f32 0.0, %v2316
        %v2318 = vpop.f32.mrf.mxu0
        %2319 = vmatprep.mubr.f32.mxu0 0.0
        %2320 = vmatmul.mubr.f32.gmra.mxu0 %v2111
        %v2321 = vpop.f32.mrf.mxu0
        %v2322 = vadd.f32 0.0, %v2321
        %v2323 = vpop.f32.mrf.mxu0
        %2324 = vmatprep.mubr.f32.mxu0 0.0
        %2325 = vmatmul.mubr.f32.gmra.mxu0 %v2114
        %v2326 = vpop.f32.mrf.mxu0
        %v2327 = vadd.f32 0.0, %v2326
        %v2328 = vpop.f32.mrf.mxu0
        %2329 = vmatprep.mubr.f32.mxu0 0.0
        %2330 = vmatmul.mubr.f32.gmra.mxu0 %v2117
        %v2331 = vpop.f32.mrf.mxu0
        %v2332 = vadd.f32 0.0, %v2331
        %v2333 = vpop.f32.mrf.mxu0
        %2334 = vmatprep.mubr.f32.mxu0 0.0
        %2335 = vmatmul.mubr.f32.gmra.mxu0 %v2120
        %v2336 = vpop.f32.mrf.mxu0
        %v2337 = vadd.f32 0.0, %v2336
        %v2338 = vpop.f32.mrf.mxu0
        %2339 = vdwg.mxu0
        %v2340 = vmul.f32 %v2189, %v1207
        %v2341 = vmul.f32 %v2191, %v1208
        %v2342 = vmul.f32 %v2302, %v1209
        %v2343 = vmul.f32 %v2195, %v1207
        %v2344 = vmul.f32 %v2197, %v1208
        %v2345 = vmul.f32 %v2307, %v1209
        %v2346 = vmul.f32 %v2201, %v1207
        %v2347 = vmul.f32 %v2203, %v1208
        %v2348 = vmul.f32 %v2312, %v1209
        %v2349 = vmul.f32 %v2207, %v1207
        %v2350 = vmul.f32 %v2209, %v1208
        %v2351 = vmul.f32 %v2317, %v1209
        %v2352 = vmul.f32 %v2213, %v1207
        %v2353 = vmul.f32 %v2215, %v1208
        %v2354 = vmul.f32 %v2322, %v1209
        %v2355 = vmul.f32 %v2219, %v1207
        %v2356 = vmul.f32 %v2221, %v1208
        %v2357 = vmul.f32 %v2327, %v1209
        %v2358 = vmul.f32 %v2225, %v1207
        %v2359 = vmul.f32 %v2227, %v1208
        %v2360 = vmul.f32 %v2332, %v1209
        %v2361 = vmul.f32 %v2231, %v1207
        %v2362 = vmul.f32 %v2233, %v1208
        %v2363 = vmul.f32 %v2337, %v1209
        %v2364 = vpack.c.bf16 %v1573, %v1570
        %v2365 = vpack.c.bf16 %v1574, %v1571
        %v2366 = vpack.c.bf16 %v1575, %v1572
        %v2367 = vpack.c.bf16 %v1958, %v1955
        %v2368 = vpack.c.bf16 %v1959, %v1956
        %v2369 = vpack.c.bf16 %v1960, %v1957
        %v2370 = vpack.c.bf16 %v2343, %v2340
        %v2371 = vpack.c.bf16 %v2344, %v2341
        %v2372 = vpack.c.bf16 %v2345, %v2342
        %v2373 = vpack.c.bf16 %v1579, %v1576
        %v2374 = vpack.c.bf16 %v1580, %v1577
        %v2375 = vpack.c.bf16 %v1581, %v1578
        %v2376 = vpack.c.bf16 %v1964, %v1961
        %v2377 = vpack.c.bf16 %v1965, %v1962
        %v2378 = vpack.c.bf16 %v1966, %v1963
        %v2379 = vpack.c.bf16 %v2349, %v2346
        %v2380 = vpack.c.bf16 %v2350, %v2347
        %v2381 = vpack.c.bf16 %v2351, %v2348
        %v2382 = vpack.c.bf16 %v1585, %v1582
        %v2383 = vpack.c.bf16 %v1586, %v1583
        %v2384 = vpack.c.bf16 %v1587, %v1584
        %v2385 = vpack.c.bf16 %v1970, %v1967
        %v2386 = vpack.c.bf16 %v1971, %v1968
        %v2387 = vpack.c.bf16 %v1972, %v1969
        %v2388 = vpack.c.bf16 %v2355, %v2352
        %v2389 = vpack.c.bf16 %v2356, %v2353
        %v2390 = vpack.c.bf16 %v2357, %v2354
        %v2391 = vpack.c.bf16 %v1591, %v1588
        %v2392 = vpack.c.bf16 %v1592, %v1589
        %v2393 = vpack.c.bf16 %v1593, %v1590
        %v2394 = vpack.c.bf16 %v1976, %v1973
        %v2395 = vpack.c.bf16 %v1977, %v1974
        %v2396 = vpack.c.bf16 %v1978, %v1975
        %v2397 = vpack.c.bf16 %v2361, %v2358
        %v2398 = vpack.c.bf16 %v2362, %v2359
        %v2399 = vpack.c.bf16 %v2363, %v2360
        %v2400 = vld [vmem:[%s6] sm:$0xff]
        %v2401 = vld [vmem:[%s6 + $0x8] sm:$0xff]
        %v2402 = vld [vmem:[%s6 + $0x10] sm:$0xff]
        %v2403 = vld [vmem:[%s6 + $0x18] sm:$0xff]
        %v2404 = vld [vmem:[%s6 + $0x20] sm:$0xff]
        %v2405 = vld [vmem:[%s6 + $0x28] sm:$0xff]
        %v2406 = vld [vmem:[%s6 + $0x30] sm:$0xff]
        %v2407 = vld [vmem:[%s6 + $0x38] sm:$0xff]
        %v2408 = vld [vmem:[%s6 + $0x40] sm:$0xff]
        %v2409 = vld [vmem:[%s6 + $0x48] sm:$0xff]
        %v2410 = vld [vmem:[%s6 + $0x50] sm:$0xff]
        %v2411 = vld [vmem:[%s6 + $0x58] sm:$0xff]
        %v2412 = vld [vmem:[%s6 + $0x60] sm:$0xff]
        %v2413 = vld [vmem:[%s6 + $0x68] sm:$0xff]
        %v2414 = vld [vmem:[%s6 + $0x70] sm:$0xff]
        %v2415 = vld [vmem:[%s6 + $0x78] sm:$0xff]
        %v2416 = vld [vmem:[%s6 + $0x80] sm:$0xff]
        %v2417 = vld [vmem:[%s6 + $0x88] sm:$0xff]
        %v2418 = vld [vmem:[%s6 + $0x90] sm:$0xff]
        %v2419 = vld [vmem:[%s6 + $0x98] sm:$0xff]
        %v2420 = vld [vmem:[%s6 + $0xa0] sm:$0xff]
        %v2421 = vld [vmem:[%s6 + $0xa8] sm:$0xff]
        %v2422 = vld [vmem:[%s6 + $0xb0] sm:$0xff]
        %v2423 = vld [vmem:[%s6 + $0xb8] sm:$0xff]
        %v2424 = vld [vmem:[%s6 + $0xc0] sm:$0xff]
        %v2425 = vld [vmem:[%s6 + $0xc8] sm:$0xff]
        %v2426 = vld [vmem:[%s6 + $0xd0] sm:$0xff]
        %v2427 = vld [vmem:[%s6 + $0xd8] sm:$0xff]
        %v2428 = vld [vmem:[%s6 + $0xe0] sm:$0xff]
        %v2429 = vld [vmem:[%s6 + $0xe8] sm:$0xff]
        %v2430 = vld [vmem:[%s6 + $0xf0] sm:$0xff]
        %v2431 = vld [vmem:[%s6 + $0xf8] sm:$0xff]
        %v2432 = vld [vmem:[%s6 + $0x100] sm:$0xff]
        %v2433 = vld [vmem:[%s6 + $0x108] sm:$0xff]
        %v2434 = vld [vmem:[%s6 + $0x110] sm:$0xff]
        %v2435 = vld [vmem:[%s6 + $0x118] sm:$0xff]
        %v2436 = vld [vmem:[%s6 + $0x120] sm:$0xff]
        %v2437 = vld [vmem:[%s6 + $0x128] sm:$0xff]
        %v2438 = vld [vmem:[%s6 + $0x130] sm:$0xff]
        %v2439 = vld [vmem:[%s6 + $0x138] sm:$0xff]
        %v2440 = vld [vmem:[%s6 + $0x140] sm:$0xff]
        %v2441 = vld [vmem:[%s6 + $0x148] sm:$0xff]
        %v2442 = vld [vmem:[%s6 + $0x150] sm:$0xff]
        %v2443 = vld [vmem:[%s6 + $0x158] sm:$0xff]
        %v2444 = vld [vmem:[%s6 + $0x160] sm:$0xff]
        %v2445 = vld [vmem:[%s6 + $0x168] sm:$0xff]
        %v2446 = vld [vmem:[%s6 + $0x170] sm:$0xff]
        %v2447 = vld [vmem:[%s6 + $0x178] sm:$0xff]
        %v2448 = vld [vmem:[%s6 + $0x180] sm:$0xff]
        %v2449 = vld [vmem:[%s6 + $0x188] sm:$0xff]
        %v2450 = vld [vmem:[%s6 + $0x190] sm:$0xff]
        %v2451 = vld [vmem:[%s6 + $0x198] sm:$0xff]
        %v2452 = vld [vmem:[%s6 + $0x1a0] sm:$0xff]
        %v2453 = vld [vmem:[%s6 + $0x1a8] sm:$0xff]
        %v2454 = vld [vmem:[%s6 + $0x1b0] sm:$0xff]
        %v2455 = vld [vmem:[%s6 + $0x1b8] sm:$0xff]
        %v2456 = vld [vmem:[%s6 + $0x1c0] sm:$0xff]
        %v2457 = vld [vmem:[%s6 + $0x1c8] sm:$0xff]
        %v2458 = vld [vmem:[%s6 + $0x1d0] sm:$0xff]
        %v2459 = vld [vmem:[%s6 + $0x1d8] sm:$0xff]
        %v2460 = vld [vmem:[%s6 + $0x1e0] sm:$0xff]
        %v2461 = vld [vmem:[%s6 + $0x1e8] sm:$0xff]
        %v2462 = vld [vmem:[%s6 + $0x1f0] sm:$0xff]
        %v2463 = vld [vmem:[%s6 + $0x1f8] sm:$0xff]
        %v2464 = vld [vmem:[%s6 + $0x200] sm:$0xff]
        %v2465 = vld [vmem:[%s6 + $0x208] sm:$0xff]
        %v2466 = vld [vmem:[%s6 + $0x210] sm:$0xff]
        %v2467 = vld [vmem:[%s6 + $0x218] sm:$0xff]
        %v2468 = vld [vmem:[%s6 + $0x220] sm:$0xff]
        %v2469 = vld [vmem:[%s6 + $0x228] sm:$0xff]
        %v2470 = vld [vmem:[%s6 + $0x230] sm:$0xff]
        %v2471 = vld [vmem:[%s6 + $0x238] sm:$0xff]
        %v2472 = vld [vmem:[%s6 + $0x240] sm:$0xff]
        %v2473 = vld [vmem:[%s6 + $0x248] sm:$0xff]
        %v2474 = vld [vmem:[%s6 + $0x250] sm:$0xff]
        %v2475 = vld [vmem:[%s6 + $0x258] sm:$0xff]
        %v2476 = vld [vmem:[%s6 + $0x260] sm:$0xff]
        %v2477 = vld [vmem:[%s6 + $0x268] sm:$0xff]
        %v2478 = vld [vmem:[%s6 + $0x270] sm:$0xff]
        %v2479 = vld [vmem:[%s6 + $0x278] sm:$0xff]
        %v2480 = vld [vmem:[%s6 + $0x280] sm:$0xff]
        %v2481 = vld [vmem:[%s6 + $0x288] sm:$0xff]
        %v2482 = vld [vmem:[%s6 + $0x290] sm:$0xff]
        %v2483 = vld [vmem:[%s6 + $0x298] sm:$0xff]
        %v2484 = vld [vmem:[%s6 + $0x2a0] sm:$0xff]
        %v2485 = vld [vmem:[%s6 + $0x2a8] sm:$0xff]
        %v2486 = vld [vmem:[%s6 + $0x2b0] sm:$0xff]
        %v2487 = vld [vmem:[%s6 + $0x2b8] sm:$0xff]
        %v2488 = vld [vmem:[%s6 + $0x2c0] sm:$0xff]
        %v2489 = vld [vmem:[%s6 + $0x2c8] sm:$0xff]
        %v2490 = vld [vmem:[%s6 + $0x2d0] sm:$0xff]
        %v2491 = vld [vmem:[%s6 + $0x2d8] sm:$0xff]
        %v2492 = vld [vmem:[%s6 + $0x2e0] sm:$0xff]
        %v2493 = vld [vmem:[%s6 + $0x2e8] sm:$0xff]
        %v2494 = vld [vmem:[%s6 + $0x2f0] sm:$0xff]
        %v2495 = vld [vmem:[%s6 + $0x2f8] sm:$0xff]
        %v2496 = vld [vmem:[%s6 + $0x300] sm:$0xff]
        %v2497 = vld [vmem:[%s6 + $0x308] sm:$0xff]
        %v2498 = vld [vmem:[%s6 + $0x310] sm:$0xff]
        %v2499 = vld [vmem:[%s6 + $0x318] sm:$0xff]
        %v2500 = vld [vmem:[%s6 + $0x320] sm:$0xff]
        %v2501 = vld [vmem:[%s6 + $0x328] sm:$0xff]
        %v2502 = vld [vmem:[%s6 + $0x330] sm:$0xff]
        %v2503 = vld [vmem:[%s6 + $0x338] sm:$0xff]
        %v2504 = vld [vmem:[%s6 + $0x340] sm:$0xff]
        %v2505 = vld [vmem:[%s6 + $0x348] sm:$0xff]
        %v2506 = vld [vmem:[%s6 + $0x350] sm:$0xff]
        %v2507 = vld [vmem:[%s6 + $0x358] sm:$0xff]
        %v2508 = vld [vmem:[%s6 + $0x360] sm:$0xff]
        %v2509 = vld [vmem:[%s6 + $0x368] sm:$0xff]
        %v2510 = vld [vmem:[%s6 + $0x370] sm:$0xff]
        %v2511 = vld [vmem:[%s6 + $0x378] sm:$0xff]
        %v2512 = vld [vmem:[%s6 + $0x380] sm:$0xff]
        %v2513 = vld [vmem:[%s6 + $0x388] sm:$0xff]
        %v2514 = vld [vmem:[%s6 + $0x390] sm:$0xff]
        %v2515 = vld [vmem:[%s6 + $0x398] sm:$0xff]
        %v2516 = vld [vmem:[%s6 + $0x3a0] sm:$0xff]
        %v2517 = vld [vmem:[%s6 + $0x3a8] sm:$0xff]
        %v2518 = vld [vmem:[%s6 + $0x3b0] sm:$0xff]
        %v2519 = vld [vmem:[%s6 + $0x3b8] sm:$0xff]
        %v2520 = vld [vmem:[%s6 + $0x3c0] sm:$0xff]
        %v2521 = vld [vmem:[%s6 + $0x3c8] sm:$0xff]
        %v2522 = vld [vmem:[%s6 + $0x3d0] sm:$0xff]
        %v2523 = vld [vmem:[%s6 + $0x3d8] sm:$0xff]
        %v2524 = vld [vmem:[%s6 + $0x3e0] sm:$0xff]
        %v2525 = vld [vmem:[%s6 + $0x3e8] sm:$0xff]
        %v2526 = vld [vmem:[%s6 + $0x3f0] sm:$0xff]
        %v2527 = vld [vmem:[%s6 + $0x3f8] sm:$0xff]
        %v2528 = vld [vmem:[%s6 + $0x400] sm:$0xff]
        %v2529 = vld [vmem:[%s6 + $0x408] sm:$0xff]
        %v2530 = vld [vmem:[%s6 + $0x410] sm:$0xff]
        %v2531 = vld [vmem:[%s6 + $0x418] sm:$0xff]
        %v2532 = vld [vmem:[%s6 + $0x420] sm:$0xff]
        %v2533 = vld [vmem:[%s6 + $0x428] sm:$0xff]
        %v2534 = vld [vmem:[%s6 + $0x430] sm:$0xff]
        %v2535 = vld [vmem:[%s6 + $0x438] sm:$0xff]
        %v2536 = vld [vmem:[%s6 + $0x440] sm:$0xff]
        %v2537 = vld [vmem:[%s6 + $0x448] sm:$0xff]
        %v2538 = vld [vmem:[%s6 + $0x450] sm:$0xff]
        %v2539 = vld [vmem:[%s6 + $0x458] sm:$0xff]
        %v2540 = vld [vmem:[%s6 + $0x460] sm:$0xff]
        %v2541 = vld [vmem:[%s6 + $0x468] sm:$0xff]
        %v2542 = vld [vmem:[%s6 + $0x470] sm:$0xff]
        %v2543 = vld [vmem:[%s6 + $0x478] sm:$0xff]
        %v2688 = vunpack.c.l.b16 %v2400
        %v2689 = vunpack.c.h.b16 %v2400
        %v2690 = vunpack.c.l.b16 %v2401
        %v2691 = vunpack.c.h.b16 %v2401
        %v2692 = vunpack.c.l.b16 %v2402
        %v2693 = vunpack.c.h.b16 %v2402
        %v2694 = vunpack.c.l.b16 %v2403
        %v2695 = vunpack.c.h.b16 %v2403
        %v2696 = vunpack.c.l.b16 %v2404
        %v2697 = vunpack.c.h.b16 %v2404
        %v2698 = vunpack.c.l.b16 %v2405
        %v2699 = vunpack.c.h.b16 %v2405
        %v2700 = vunpack.c.l.b16 %v2406
        %v2701 = vunpack.c.h.b16 %v2406
        %v2702 = vunpack.c.l.b16 %v2407
        %v2703 = vunpack.c.h.b16 %v2407
        %v2704 = vunpack.c.l.b16 %v2408
        %v2705 = vunpack.c.h.b16 %v2408
        %v2706 = vunpack.c.l.b16 %v2409
        %v2707 = vunpack.c.h.b16 %v2409
        %v2708 = vunpack.c.l.b16 %v2410
        %v2709 = vunpack.c.h.b16 %v2410
        %v2710 = vunpack.c.l.b16 %v2411
        %v2711 = vunpack.c.h.b16 %v2411
        %v2712 = vunpack.c.l.b16 %v2412
        %v2713 = vunpack.c.h.b16 %v2412
        %v2714 = vunpack.c.l.b16 %v2413
        %v2715 = vunpack.c.h.b16 %v2413
        %v2716 = vunpack.c.l.b16 %v2414
        %v2717 = vunpack.c.h.b16 %v2414
        %v2718 = vunpack.c.l.b16 %v2415
        %v2719 = vunpack.c.h.b16 %v2415
        %v2720 = vunpack.c.l.b16 %v2416
        %v2721 = vunpack.c.h.b16 %v2416
        %v2722 = vunpack.c.l.b16 %v2417
        %v2723 = vunpack.c.h.b16 %v2417
        %v2724 = vunpack.c.l.b16 %v2418
        %v2725 = vunpack.c.h.b16 %v2418
        %v2726 = vunpack.c.l.b16 %v2419
        %v2727 = vunpack.c.h.b16 %v2419
        %v2728 = vunpack.c.l.b16 %v2420
        %v2729 = vunpack.c.h.b16 %v2420
        %v2730 = vunpack.c.l.b16 %v2421
        %v2731 = vunpack.c.h.b16 %v2421
        %v2732 = vunpack.c.l.b16 %v2422
        %v2733 = vunpack.c.h.b16 %v2422
        %v2734 = vunpack.c.l.b16 %v2423
        %v2735 = vunpack.c.h.b16 %v2423
        %v2736 = vunpack.c.l.b16 %v2424
        %v2737 = vunpack.c.h.b16 %v2424
        %v2738 = vunpack.c.l.b16 %v2425
        %v2739 = vunpack.c.h.b16 %v2425
        %v2740 = vunpack.c.l.b16 %v2426
        %v2741 = vunpack.c.h.b16 %v2426
        %v2742 = vunpack.c.l.b16 %v2427
        %v2743 = vunpack.c.h.b16 %v2427
        %v2744 = vunpack.c.l.b16 %v2428
        %v2745 = vunpack.c.h.b16 %v2428
        %v2746 = vunpack.c.l.b16 %v2429
        %v2747 = vunpack.c.h.b16 %v2429
        %v2748 = vunpack.c.l.b16 %v2430
        %v2749 = vunpack.c.h.b16 %v2430
        %v2750 = vunpack.c.l.b16 %v2431
        %v2751 = vunpack.c.h.b16 %v2431
        %v2752 = vunpack.c.l.b16 %v2432
        %v2753 = vunpack.c.h.b16 %v2432
        %v2754 = vunpack.c.l.b16 %v2433
        %v2755 = vunpack.c.h.b16 %v2433
        %v2756 = vunpack.c.l.b16 %v2434
        %v2757 = vunpack.c.h.b16 %v2434
        %v2758 = vunpack.c.l.b16 %v2435
        %v2759 = vunpack.c.h.b16 %v2435
        %v2760 = vunpack.c.l.b16 %v2436
        %v2761 = vunpack.c.h.b16 %v2436
        %v2762 = vunpack.c.l.b16 %v2437
        %v2763 = vunpack.c.h.b16 %v2437
        %v2764 = vunpack.c.l.b16 %v2438
        %v2765 = vunpack.c.h.b16 %v2438
        %v2766 = vunpack.c.l.b16 %v2439
        %v2767 = vunpack.c.h.b16 %v2439
        %v2768 = vunpack.c.l.b16 %v2440
        %v2769 = vunpack.c.h.b16 %v2440
        %v2770 = vunpack.c.l.b16 %v2441
        %v2771 = vunpack.c.h.b16 %v2441
        %v2772 = vunpack.c.l.b16 %v2442
        %v2773 = vunpack.c.h.b16 %v2442
        %v2774 = vunpack.c.l.b16 %v2443
        %v2775 = vunpack.c.h.b16 %v2443
        %v2776 = vunpack.c.l.b16 %v2444
        %v2777 = vunpack.c.h.b16 %v2444
        %v2778 = vunpack.c.l.b16 %v2445
        %v2779 = vunpack.c.h.b16 %v2445
        %v2780 = vunpack.c.l.b16 %v2446
        %v2781 = vunpack.c.h.b16 %v2446
        %v2782 = vunpack.c.l.b16 %v2447
        %v2783 = vunpack.c.h.b16 %v2447
        %v2784 = vunpack.c.l.b16 %v2448
        %v2785 = vunpack.c.h.b16 %v2448
        %v2786 = vunpack.c.l.b16 %v2449
        %v2787 = vunpack.c.h.b16 %v2449
        %v2788 = vunpack.c.l.b16 %v2450
        %v2789 = vunpack.c.h.b16 %v2450
        %v2790 = vunpack.c.l.b16 %v2451
        %v2791 = vunpack.c.h.b16 %v2451
        %v2792 = vunpack.c.l.b16 %v2452
        %v2793 = vunpack.c.h.b16 %v2452
        %v2794 = vunpack.c.l.b16 %v2453
        %v2795 = vunpack.c.h.b16 %v2453
        %v2796 = vunpack.c.l.b16 %v2454
        %v2797 = vunpack.c.h.b16 %v2454
        %v2798 = vunpack.c.l.b16 %v2455
        %v2799 = vunpack.c.h.b16 %v2455
        %v2800 = vunpack.c.l.b16 %v2456
        %v2801 = vunpack.c.h.b16 %v2456
        %v2802 = vunpack.c.l.b16 %v2457
        %v2803 = vunpack.c.h.b16 %v2457
        %v2804 = vunpack.c.l.b16 %v2458
        %v2805 = vunpack.c.h.b16 %v2458
        %v2806 = vunpack.c.l.b16 %v2459
        %v2807 = vunpack.c.h.b16 %v2459
        %v2808 = vunpack.c.l.b16 %v2460
        %v2809 = vunpack.c.h.b16 %v2460
        %v2810 = vunpack.c.l.b16 %v2461
        %v2811 = vunpack.c.h.b16 %v2461
        %v2812 = vunpack.c.l.b16 %v2462
        %v2813 = vunpack.c.h.b16 %v2462
        %v2814 = vunpack.c.l.b16 %v2463
        %v2815 = vunpack.c.h.b16 %v2463
        %v2816 = vunpack.c.l.b16 %v2464
        %v2817 = vunpack.c.h.b16 %v2464
        %v2818 = vunpack.c.l.b16 %v2465
        %v2819 = vunpack.c.h.b16 %v2465
        %v2820 = vunpack.c.l.b16 %v2466
        %v2821 = vunpack.c.h.b16 %v2466
        %v2822 = vunpack.c.l.b16 %v2467
        %v2823 = vunpack.c.h.b16 %v2467
        %v2824 = vunpack.c.l.b16 %v2468
        %v2825 = vunpack.c.h.b16 %v2468
        %v2826 = vunpack.c.l.b16 %v2469
        %v2827 = vunpack.c.h.b16 %v2469
        %v2828 = vunpack.c.l.b16 %v2470
        %v2829 = vunpack.c.h.b16 %v2470
        %v2830 = vunpack.c.l.b16 %v2471
        %v2831 = vunpack.c.h.b16 %v2471
        %v2832 = vunpack.c.l.b16 %v2472
        %v2833 = vunpack.c.h.b16 %v2472
        %v2834 = vunpack.c.l.b16 %v2473
        %v2835 = vunpack.c.h.b16 %v2473
        %v2836 = vunpack.c.l.b16 %v2474
        %v2837 = vunpack.c.h.b16 %v2474
        %v2838 = vunpack.c.l.b16 %v2475
        %v2839 = vunpack.c.h.b16 %v2475
        %v2840 = vunpack.c.l.b16 %v2476
        %v2841 = vunpack.c.h.b16 %v2476
        %v2842 = vunpack.c.l.b16 %v2477
        %v2843 = vunpack.c.h.b16 %v2477
        %v2844 = vunpack.c.l.b16 %v2478
        %v2845 = vunpack.c.h.b16 %v2478
        %v2846 = vunpack.c.l.b16 %v2479
        %v2847 = vunpack.c.h.b16 %v2479
        %v2848 = vunpack.c.l.b16 %v2480
        %v2849 = vunpack.c.h.b16 %v2480
        %v2850 = vunpack.c.l.b16 %v2481
        %v2851 = vunpack.c.h.b16 %v2481
        %v2852 = vunpack.c.l.b16 %v2482
        %v2853 = vunpack.c.h.b16 %v2482
        %v2854 = vunpack.c.l.b16 %v2483
        %v2855 = vunpack.c.h.b16 %v2483
        %v2856 = vunpack.c.l.b16 %v2484
        %v2857 = vunpack.c.h.b16 %v2484
        %v2858 = vunpack.c.l.b16 %v2485
        %v2859 = vunpack.c.h.b16 %v2485
        %v2860 = vunpack.c.l.b16 %v2486
        %v2861 = vunpack.c.h.b16 %v2486
        %v2862 = vunpack.c.l.b16 %v2487
        %v2863 = vunpack.c.h.b16 %v2487
        %v2864 = vunpack.c.l.b16 %v2488
        %v2865 = vunpack.c.h.b16 %v2488
        %v2866 = vunpack.c.l.b16 %v2489
        %v2867 = vunpack.c.h.b16 %v2489
        %v2868 = vunpack.c.l.b16 %v2490
        %v2869 = vunpack.c.h.b16 %v2490
        %v2870 = vunpack.c.l.b16 %v2491
        %v2871 = vunpack.c.h.b16 %v2491
        %v2872 = vunpack.c.l.b16 %v2492
        %v2873 = vunpack.c.h.b16 %v2492
        %v2874 = vunpack.c.l.b16 %v2493
        %v2875 = vunpack.c.h.b16 %v2493
        %v2876 = vunpack.c.l.b16 %v2494
        %v2877 = vunpack.c.h.b16 %v2494
        %v2878 = vunpack.c.l.b16 %v2495
        %v2879 = vunpack.c.h.b16 %v2495
        %v2880 = vunpack.c.l.b16 %v2496
        %v2881 = vunpack.c.h.b16 %v2496
        %v2882 = vunpack.c.l.b16 %v2497
        %v2883 = vunpack.c.h.b16 %v2497
        %v2884 = vunpack.c.l.b16 %v2498
        %v2885 = vunpack.c.h.b16 %v2498
        %v2886 = vunpack.c.l.b16 %v2499
        %v2887 = vunpack.c.h.b16 %v2499
        %v2888 = vunpack.c.l.b16 %v2500
        %v2889 = vunpack.c.h.b16 %v2500
        %v2890 = vunpack.c.l.b16 %v2501
        %v2891 = vunpack.c.h.b16 %v2501
        %v2892 = vunpack.c.l.b16 %v2502
        %v2893 = vunpack.c.h.b16 %v2502
        %v2894 = vunpack.c.l.b16 %v2503
        %v2895 = vunpack.c.h.b16 %v2503
        %v2896 = vunpack.c.l.b16 %v2504
        %v2897 = vunpack.c.h.b16 %v2504
        %v2898 = vunpack.c.l.b16 %v2505
        %v2899 = vunpack.c.h.b16 %v2505
        %v2900 = vunpack.c.l.b16 %v2506
        %v2901 = vunpack.c.h.b16 %v2506
        %v2902 = vunpack.c.l.b16 %v2507
        %v2903 = vunpack.c.h.b16 %v2507
        %v2904 = vunpack.c.l.b16 %v2508
        %v2905 = vunpack.c.h.b16 %v2508
        %v2906 = vunpack.c.l.b16 %v2509
        %v2907 = vunpack.c.h.b16 %v2509
        %v2908 = vunpack.c.l.b16 %v2510
        %v2909 = vunpack.c.h.b16 %v2510
        %v2910 = vunpack.c.l.b16 %v2511
        %v2911 = vunpack.c.h.b16 %v2511
        %v2912 = vunpack.c.l.b16 %v2512
        %v2913 = vunpack.c.h.b16 %v2512
        %v2914 = vunpack.c.l.b16 %v2513
        %v2915 = vunpack.c.h.b16 %v2513
        %v2916 = vunpack.c.l.b16 %v2514
        %v2917 = vunpack.c.h.b16 %v2514
        %v2918 = vunpack.c.l.b16 %v2515
        %v2919 = vunpack.c.h.b16 %v2515
        %v2920 = vunpack.c.l.b16 %v2516
        %v2921 = vunpack.c.h.b16 %v2516
        %v2922 = vunpack.c.l.b16 %v2517
        %v2923 = vunpack.c.h.b16 %v2517
        %v2924 = vunpack.c.l.b16 %v2518
        %v2925 = vunpack.c.h.b16 %v2518
        %v2926 = vunpack.c.l.b16 %v2519
        %v2927 = vunpack.c.h.b16 %v2519
        %v2928 = vunpack.c.l.b16 %v2520
        %v2929 = vunpack.c.h.b16 %v2520
        %v2930 = vunpack.c.l.b16 %v2521
        %v2931 = vunpack.c.h.b16 %v2521
        %v2932 = vunpack.c.l.b16 %v2522
        %v2933 = vunpack.c.h.b16 %v2522
        %v2934 = vunpack.c.l.b16 %v2523
        %v2935 = vunpack.c.h.b16 %v2523
        %v2936 = vunpack.c.l.b16 %v2524
        %v2937 = vunpack.c.h.b16 %v2524
        %v2938 = vunpack.c.l.b16 %v2525
        %v2939 = vunpack.c.h.b16 %v2525
        %v2940 = vunpack.c.l.b16 %v2526
        %v2941 = vunpack.c.h.b16 %v2526
        %v2942 = vunpack.c.l.b16 %v2527
        %v2943 = vunpack.c.h.b16 %v2527
        %v2944 = vunpack.c.l.b16 %v2528
        %v2945 = vunpack.c.h.b16 %v2528
        %v2946 = vunpack.c.l.b16 %v2529
        %v2947 = vunpack.c.h.b16 %v2529
        %v2948 = vunpack.c.l.b16 %v2530
        %v2949 = vunpack.c.h.b16 %v2530
        %v2950 = vunpack.c.l.b16 %v2531
        %v2951 = vunpack.c.h.b16 %v2531
        %v2952 = vunpack.c.l.b16 %v2532
        %v2953 = vunpack.c.h.b16 %v2532
        %v2954 = vunpack.c.l.b16 %v2533
        %v2955 = vunpack.c.h.b16 %v2533
        %v2956 = vunpack.c.l.b16 %v2534
        %v2957 = vunpack.c.h.b16 %v2534
        %v2958 = vunpack.c.l.b16 %v2535
        %v2959 = vunpack.c.h.b16 %v2535
        %v2960 = vunpack.c.l.b16 %v2536
        %v2961 = vunpack.c.h.b16 %v2536
        %v2962 = vunpack.c.l.b16 %v2537
        %v2963 = vunpack.c.h.b16 %v2537
        %v2964 = vunpack.c.l.b16 %v2538
        %v2965 = vunpack.c.h.b16 %v2538
        %v2966 = vunpack.c.l.b16 %v2539
        %v2967 = vunpack.c.h.b16 %v2539
        %v2968 = vunpack.c.l.b16 %v2540
        %v2969 = vunpack.c.h.b16 %v2540
        %v2970 = vunpack.c.l.b16 %v2541
        %v2971 = vunpack.c.h.b16 %v2541
        %v2972 = vunpack.c.l.b16 %v2542
        %v2973 = vunpack.c.h.b16 %v2542
        %v2974 = vunpack.c.l.b16 %v2543
        %v2975 = vunpack.c.h.b16 %v2543
        %v2976 = vpack.c.b16 %v2690, %v2688
        %v2977 = vpack.c.b16 %v2691, %v2689
        %v2978 = vpack.c.b16 %v2694, %v2692
        %v2979 = vpack.c.b16 %v2695, %v2693
        %v2980 = vpack.c.b16 %v2698, %v2696
        %v2981 = vpack.c.b16 %v2699, %v2697
        %v2982 = vpack.c.b16 %v2702, %v2700
        %v2983 = vpack.c.b16 %v2703, %v2701
        %v2984 = vpack.c.b16 %v2706, %v2704
        %v2985 = vpack.c.b16 %v2707, %v2705
        %v2986 = vpack.c.b16 %v2710, %v2708
        %v2987 = vpack.c.b16 %v2711, %v2709
        %v2988 = vpack.c.b16 %v2714, %v2712
        %v2989 = vpack.c.b16 %v2715, %v2713
        %v2990 = vpack.c.b16 %v2718, %v2716
        %v2991 = vpack.c.b16 %v2719, %v2717
        %v2992 = vpack.c.b16 %v2722, %v2720
        %v2993 = vpack.c.b16 %v2723, %v2721
        %v2994 = vpack.c.b16 %v2726, %v2724
        %v2995 = vpack.c.b16 %v2727, %v2725
        %v2996 = vpack.c.b16 %v2730, %v2728
        %v2997 = vpack.c.b16 %v2731, %v2729
        %v2998 = vpack.c.b16 %v2734, %v2732
        %v2999 = vpack.c.b16 %v2735, %v2733
        %v3000 = vpack.c.b16 %v2738, %v2736
        %v3001 = vpack.c.b16 %v2739, %v2737
        %v3002 = vpack.c.b16 %v2742, %v2740
        %v3003 = vpack.c.b16 %v2743, %v2741
        %v3004 = vpack.c.b16 %v2746, %v2744
        %v3005 = vpack.c.b16 %v2747, %v2745
        %v3006 = vpack.c.b16 %v2750, %v2748
        %v3007 = vpack.c.b16 %v2751, %v2749
        %v3008 = vpack.c.b16 %v2754, %v2752
        %v3009 = vpack.c.b16 %v2755, %v2753
        %v3010 = vpack.c.b16 %v2758, %v2756
        %v3011 = vpack.c.b16 %v2759, %v2757
        %v3012 = vpack.c.b16 %v2762, %v2760
        %v3013 = vpack.c.b16 %v2763, %v2761
        %v3014 = vpack.c.b16 %v2766, %v2764
        %v3015 = vpack.c.b16 %v2767, %v2765
        %v3016 = vpack.c.b16 %v2770, %v2768
        %v3017 = vpack.c.b16 %v2771, %v2769
        %v3018 = vpack.c.b16 %v2774, %v2772
        %v3019 = vpack.c.b16 %v2775, %v2773
        %v3020 = vpack.c.b16 %v2778, %v2776
        %v3021 = vpack.c.b16 %v2779, %v2777
        %v3022 = vpack.c.b16 %v2782, %v2780
        %v3023 = vpack.c.b16 %v2783, %v2781
        %v3024 = vpack.c.b16 %v2786, %v2784
        %v3025 = vpack.c.b16 %v2787, %v2785
        %v3026 = vpack.c.b16 %v2790, %v2788
        %v3027 = vpack.c.b16 %v2791, %v2789
        %v3028 = vpack.c.b16 %v2794, %v2792
        %v3029 = vpack.c.b16 %v2795, %v2793
        %v3030 = vpack.c.b16 %v2798, %v2796
        %v3031 = vpack.c.b16 %v2799, %v2797
        %v3032 = vpack.c.b16 %v2802, %v2800
        %v3033 = vpack.c.b16 %v2803, %v2801
        %v3034 = vpack.c.b16 %v2806, %v2804
        %v3035 = vpack.c.b16 %v2807, %v2805
        %v3036 = vpack.c.b16 %v2810, %v2808
        %v3037 = vpack.c.b16 %v2811, %v2809
        %v3038 = vpack.c.b16 %v2814, %v2812
        %v3039 = vpack.c.b16 %v2815, %v2813
        %v3040 = vpack.c.b16 %v2818, %v2816
        %v3041 = vpack.c.b16 %v2819, %v2817
        %v3042 = vpack.c.b16 %v2822, %v2820
        %v3043 = vpack.c.b16 %v2823, %v2821
        %v3044 = vpack.c.b16 %v2826, %v2824
        %v3045 = vpack.c.b16 %v2827, %v2825
        %v3046 = vpack.c.b16 %v2830, %v2828
        %v3047 = vpack.c.b16 %v2831, %v2829
        %v3048 = vpack.c.b16 %v2834, %v2832
        %v3049 = vpack.c.b16 %v2835, %v2833
        %v3050 = vpack.c.b16 %v2838, %v2836
        %v3051 = vpack.c.b16 %v2839, %v2837
        %v3052 = vpack.c.b16 %v2842, %v2840
        %v3053 = vpack.c.b16 %v2843, %v2841
        %v3054 = vpack.c.b16 %v2846, %v2844
        %v3055 = vpack.c.b16 %v2847, %v2845
        %v3056 = vpack.c.b16 %v2850, %v2848
        %v3057 = vpack.c.b16 %v2851, %v2849
        %v3058 = vpack.c.b16 %v2854, %v2852
        %v3059 = vpack.c.b16 %v2855, %v2853
        %v3060 = vpack.c.b16 %v2858, %v2856
        %v3061 = vpack.c.b16 %v2859, %v2857
        %v3062 = vpack.c.b16 %v2862, %v2860
        %v3063 = vpack.c.b16 %v2863, %v2861
        %v3064 = vpack.c.b16 %v2866, %v2864
        %v3065 = vpack.c.b16 %v2867, %v2865
        %v3066 = vpack.c.b16 %v2870, %v2868
        %v3067 = vpack.c.b16 %v2871, %v2869
        %v3068 = vpack.c.b16 %v2874, %v2872
        %v3069 = vpack.c.b16 %v2875, %v2873
        %v3070 = vpack.c.b16 %v2878, %v2876
        %v3071 = vpack.c.b16 %v2879, %v2877
        %v3072 = vpack.c.b16 %v2882, %v2880
        %v3073 = vpack.c.b16 %v2883, %v2881
        %v3074 = vpack.c.b16 %v2886, %v2884
        %v3075 = vpack.c.b16 %v2887, %v2885
        %v3076 = vpack.c.b16 %v2890, %v2888
        %v3077 = vpack.c.b16 %v2891, %v2889
        %v3078 = vpack.c.b16 %v2894, %v2892
        %v3079 = vpack.c.b16 %v2895, %v2893
        %v3080 = vpack.c.b16 %v2898, %v2896
        %v3081 = vpack.c.b16 %v2899, %v2897
        %v3082 = vpack.c.b16 %v2902, %v2900
        %v3083 = vpack.c.b16 %v2903, %v2901
        %v3084 = vpack.c.b16 %v2906, %v2904
        %v3085 = vpack.c.b16 %v2907, %v2905
        %v3086 = vpack.c.b16 %v2910, %v2908
        %v3087 = vpack.c.b16 %v2911, %v2909
        %v3088 = vpack.c.b16 %v2914, %v2912
        %v3089 = vpack.c.b16 %v2915, %v2913
        %v3090 = vpack.c.b16 %v2918, %v2916
        %v3091 = vpack.c.b16 %v2919, %v2917
        %v3092 = vpack.c.b16 %v2922, %v2920
        %v3093 = vpack.c.b16 %v2923, %v2921
        %v3094 = vpack.c.b16 %v2926, %v2924
        %v3095 = vpack.c.b16 %v2927, %v2925
        %v3096 = vpack.c.b16 %v2930, %v2928
        %v3097 = vpack.c.b16 %v2931, %v2929
        %v3098 = vpack.c.b16 %v2934, %v2932
        %v3099 = vpack.c.b16 %v2935, %v2933
        %v3100 = vpack.c.b16 %v2938, %v2936
        %v3101 = vpack.c.b16 %v2939, %v2937
        %v3102 = vpack.c.b16 %v2942, %v2940
        %v3103 = vpack.c.b16 %v2943, %v2941
        %v3104 = vpack.c.b16 %v2946, %v2944
        %v3105 = vpack.c.b16 %v2947, %v2945
        %v3106 = vpack.c.b16 %v2950, %v2948
        %v3107 = vpack.c.b16 %v2951, %v2949
        %v3108 = vpack.c.b16 %v2954, %v2952
        %v3109 = vpack.c.b16 %v2955, %v2953
        %v3110 = vpack.c.b16 %v2958, %v2956
        %v3111 = vpack.c.b16 %v2959, %v2957
        %v3112 = vpack.c.b16 %v2962, %v2960
        %v3113 = vpack.c.b16 %v2963, %v2961
        %v3114 = vpack.c.b16 %v2966, %v2964
        %v3115 = vpack.c.b16 %v2967, %v2965
        %v3116 = vpack.c.b16 %v2970, %v2968
        %v3117 = vpack.c.b16 %v2971, %v2969
        %v3118 = vpack.c.b16 %v2974, %v2972
        %v3119 = vpack.c.b16 %v2975, %v2973
        %3264 = vmatprep.subr.bf16.mxu0 %v2991
        %3265 = vmatpush1.bf16.msra.mxu0 %v2990
        %3266 = vmatprep.subr.bf16.mxu0 %v2989
        %3267 = vmatpush1.bf16.msra.mxu0 %v2988
        %3268 = vmatprep.subr.bf16.mxu0 %v2987
        %3269 = vmatpush1.bf16.msra.mxu0 %v2986
        %3270 = vmatprep.subr.bf16.mxu0 %v2985
        %3271 = vmatpush1.bf16.msra.mxu0 %v2984
        %3272 = vmatprep.subr.bf16.mxu0 %v2983
        %3273 = vmatpush1.bf16.msra.mxu0 %v2982
        %3274 = vmatprep.subr.bf16.mxu0 %v2981
        %3275 = vmatpush1.bf16.msra.mxu0 %v2980
        %3276 = vmatprep.subr.bf16.mxu0 %v2979
        %3277 = vmatpush1.bf16.msra.mxu0 %v2978
        %3278 = vmatprep.subr.bf16.mxu0 %v2977
        %3279 = vmatpush1.bf16.msra.mxu0 %v2976
        %3280 = vmatprep.subr.bf16.mxu0 %v3007
        %3281 = vmatpush2.bf16.msra.mxu0 %v3006
        %3282 = vmatprep.subr.bf16.mxu0 %v3005
        %3283 = vmatpush2.bf16.msra.mxu0 %v3004
        %3284 = vmatprep.subr.bf16.mxu0 %v3003
        %3285 = vmatpush2.bf16.msra.mxu0 %v3002
        %3286 = vmatprep.subr.bf16.mxu0 %v3001
        %3287 = vmatpush2.bf16.msra.mxu0 %v3000
        %3288 = vmatprep.subr.bf16.mxu0 %v2999
        %3289 = vmatpush2.bf16.msra.mxu0 %v2998
        %3290 = vmatprep.subr.bf16.mxu0 %v2997
        %3291 = vmatpush2.bf16.msra.mxu0 %v2996
        %3292 = vmatprep.subr.bf16.mxu0 %v2995
        %3293 = vmatpush2.bf16.msra.mxu0 %v2994
        %3294 = vmatprep.subr.bf16.mxu0 %v2993
        %3295 = vmatpush2.bf16.msra.mxu0 %v2992
        %3296 = vmatprep.mubr.bf16.mxu0 %v2365
        %3297 = vmatmul.mubr.bf16.gmra.mxu0 %v2364
        %v3298 = vpop.f32.mrf.mxu0
        %v3299 = vadd.f32 0.0, %v3298
        %v3300 = vpop.f32.mrf.mxu0
        %v3301 = vadd.f32 0.0, %v3300
        %v3302 = vpop.f32.mrf.mxu0
        %v3303 = vadd.f32 0.0, %v3302
        %v3304 = vpop.f32.mrf.mxu0
        %v3305 = vadd.f32 0.0, %v3304
        %3306 = vmatprep.mubr.bf16.mxu0 %v2374
        %3307 = vmatmul.mubr.bf16.gmra.mxu0 %v2373
        %v3308 = vpop.f32.mrf.mxu0
        %v3309 = vadd.f32 0.0, %v3308
        %v3310 = vpop.f32.mrf.mxu0
        %v3311 = vadd.f32 0.0, %v3310
        %v3312 = vpop.f32.mrf.mxu0
        %v3313 = vadd.f32 0.0, %v3312
        %v3314 = vpop.f32.mrf.mxu0
        %v3315 = vadd.f32 0.0, %v3314
        %3316 = vmatprep.mubr.bf16.mxu0 %v2383
        %3317 = vmatmul.mubr.bf16.gmra.mxu0 %v2382
        %v3318 = vpop.f32.mrf.mxu0
        %v3319 = vadd.f32 0.0, %v3318
        %v3320 = vpop.f32.mrf.mxu0
        %v3321 = vadd.f32 0.0, %v3320
        %v3322 = vpop.f32.mrf.mxu0
        %v3323 = vadd.f32 0.0, %v3322
        %v3324 = vpop.f32.mrf.mxu0
        %v3325 = vadd.f32 0.0, %v3324
        %3326 = vmatprep.mubr.bf16.mxu0 %v2392
        %3327 = vmatmul.mubr.bf16.gmra.mxu0 %v2391
        %v3328 = vpop.f32.mrf.mxu0
        %v3329 = vadd.f32 0.0, %v3328
        %v3330 = vpop.f32.mrf.mxu0
        %v3331 = vadd.f32 0.0, %v3330
        %v3332 = vpop.f32.mrf.mxu0
        %v3333 = vadd.f32 0.0, %v3332
        %v3334 = vpop.f32.mrf.mxu0
        %v3335 = vadd.f32 0.0, %v3334
        %3336 = vdwg.mxu0
        %3337 = vmatprep.subr.bf16.mxu0 %v3023
        %3338 = vmatpush1.bf16.msra.mxu0 %v3022
        %3339 = vmatprep.subr.bf16.mxu0 %v3021
        %3340 = vmatpush1.bf16.msra.mxu0 %v3020
        %3341 = vmatprep.subr.bf16.mxu0 %v3019
        %3342 = vmatpush1.bf16.msra.mxu0 %v3018
        %3343 = vmatprep.subr.bf16.mxu0 %v3017
        %3344 = vmatpush1.bf16.msra.mxu0 %v3016
        %3345 = vmatprep.subr.bf16.mxu0 %v3015
        %3346 = vmatpush1.bf16.msra.mxu0 %v3014
        %3347 = vmatprep.subr.bf16.mxu0 %v3013
        %3348 = vmatpush1.bf16.msra.mxu0 %v3012
        %3349 = vmatprep.subr.bf16.mxu0 %v3011
        %3350 = vmatpush1.bf16.msra.mxu0 %v3010
        %3351 = vmatprep.subr.bf16.mxu0 %v3009
        %3352 = vmatpush1.bf16.msra.mxu0 %v3008
        %3353 = vmatprep.subr.bf16.mxu0 %v3039
        %3354 = vmatpush2.bf16.msra.mxu0 %v3038
        %3355 = vmatprep.subr.bf16.mxu0 %v3037
        %3356 = vmatpush2.bf16.msra.mxu0 %v3036
        %3357 = vmatprep.subr.bf16.mxu0 %v3035
        %3358 = vmatpush2.bf16.msra.mxu0 %v3034
        %3359 = vmatprep.subr.bf16.mxu0 %v3033
        %3360 = vmatpush2.bf16.msra.mxu0 %v3032
        %3361 = vmatprep.subr.bf16.mxu0 %v3031
        %3362 = vmatpush2.bf16.msra.mxu0 %v3030
        %3363 = vmatprep.subr.bf16.mxu0 %v3029
        %3364 = vmatpush2.bf16.msra.mxu0 %v3028
        %3365 = vmatprep.subr.bf16.mxu0 %v3027
        %3366 = vmatpush2.bf16.msra.mxu0 %v3026
        %3367 = vmatprep.subr.bf16.mxu0 %v3025
        %3368 = vmatpush2.bf16.msra.mxu0 %v3024
        %3369 = vmatprep.mubr.bf16.mxu0 %v2367
        %3370 = vmatmul.mubr.bf16.gmra.mxu0 %v2366
        %v3371 = vpop.f32.mrf.mxu0
        %v3372 = vadd.f32 %v3299, %v3371
        %v3373 = vpop.f32.mrf.mxu0
        %v3374 = vadd.f32 %v3301, %v3373
        %v3375 = vpop.f32.mrf.mxu0
        %v3376 = vadd.f32 %v3303, %v3375
        %v3377 = vpop.f32.mrf.mxu0
        %v3378 = vadd.f32 %v3305, %v3377
        %3379 = vmatprep.mubr.bf16.mxu0 %v2376
        %3380 = vmatmul.mubr.bf16.gmra.mxu0 %v2375
        %v3381 = vpop.f32.mrf.mxu0
        %v3382 = vadd.f32 %v3309, %v3381
        %v3383 = vpop.f32.mrf.mxu0
        %v3384 = vadd.f32 %v3311, %v3383
        %v3385 = vpop.f32.mrf.mxu0
        %v3386 = vadd.f32 %v3313, %v3385
        %v3387 = vpop.f32.mrf.mxu0
        %v3388 = vadd.f32 %v3315, %v3387
        %3389 = vmatprep.mubr.bf16.mxu0 %v2385
        %3390 = vmatmul.mubr.bf16.gmra.mxu0 %v2384
        %v3391 = vpop.f32.mrf.mxu0
        %v3392 = vadd.f32 %v3319, %v3391
        %v3393 = vpop.f32.mrf.mxu0
        %v3394 = vadd.f32 %v3321, %v3393
        %v3395 = vpop.f32.mrf.mxu0
        %v3396 = vadd.f32 %v3323, %v3395
        %v3397 = vpop.f32.mrf.mxu0
        %v3398 = vadd.f32 %v3325, %v3397
        %3399 = vmatprep.mubr.bf16.mxu0 %v2394
        %3400 = vmatmul.mubr.bf16.gmra.mxu0 %v2393
        %v3401 = vpop.f32.mrf.mxu0
        %v3402 = vadd.f32 %v3329, %v3401
        %v3403 = vpop.f32.mrf.mxu0
        %v3404 = vadd.f32 %v3331, %v3403
        %v3405 = vpop.f32.mrf.mxu0
        %v3406 = vadd.f32 %v3333, %v3405
        %v3407 = vpop.f32.mrf.mxu0
        %v3408 = vadd.f32 %v3335, %v3407
        %3409 = vdwg.mxu0
        %3410 = vmatprep.subr.bf16.mxu0 %v3055
        %3411 = vmatpush1.bf16.msra.mxu0 %v3054
        %3412 = vmatprep.subr.bf16.mxu0 %v3053
        %3413 = vmatpush1.bf16.msra.mxu0 %v3052
        %3414 = vmatprep.subr.bf16.mxu0 %v3051
        %3415 = vmatpush1.bf16.msra.mxu0 %v3050
        %3416 = vmatprep.subr.bf16.mxu0 %v3049
        %3417 = vmatpush1.bf16.msra.mxu0 %v3048
        %3418 = vmatprep.subr.bf16.mxu0 %v3047
        %3419 = vmatpush1.bf16.msra.mxu0 %v3046
        %3420 = vmatprep.subr.bf16.mxu0 %v3045
        %3421 = vmatpush1.bf16.msra.mxu0 %v3044
        %3422 = vmatprep.subr.bf16.mxu0 %v3043
        %3423 = vmatpush1.bf16.msra.mxu0 %v3042
        %3424 = vmatprep.subr.bf16.mxu0 %v3041
        %3425 = vmatpush1.bf16.msra.mxu0 %v3040
        %3426 = vmatprep.subr.bf16.mxu0 %v3071
        %3427 = vmatpush2.bf16.msra.mxu0 %v3070
        %3428 = vmatprep.subr.bf16.mxu0 %v3069
        %3429 = vmatpush2.bf16.msra.mxu0 %v3068
        %3430 = vmatprep.subr.bf16.mxu0 %v3067
        %3431 = vmatpush2.bf16.msra.mxu0 %v3066
        %3432 = vmatprep.subr.bf16.mxu0 %v3065
        %3433 = vmatpush2.bf16.msra.mxu0 %v3064
        %3434 = vmatprep.subr.bf16.mxu0 %v3063
        %3435 = vmatpush2.bf16.msra.mxu0 %v3062
        %3436 = vmatprep.subr.bf16.mxu0 %v3061
        %3437 = vmatpush2.bf16.msra.mxu0 %v3060
        %3438 = vmatprep.subr.bf16.mxu0 %v3059
        %3439 = vmatpush2.bf16.msra.mxu0 %v3058
        %3440 = vmatprep.subr.bf16.mxu0 %v3057
        %3441 = vmatpush2.bf16.msra.mxu0 %v3056
        %3442 = vmatprep.mubr.bf16.mxu0 %v2369
        %3443 = vmatmul.mubr.bf16.gmra.mxu0 %v2368
        %v3444 = vpop.f32.mrf.mxu0
        %v3445 = vadd.f32 %v3372, %v3444
        %v3446 = vpop.f32.mrf.mxu0
        %v3447 = vadd.f32 %v3374, %v3446
        %v3448 = vpop.f32.mrf.mxu0
        %v3449 = vadd.f32 %v3376, %v3448
        %v3450 = vpop.f32.mrf.mxu0
        %v3451 = vadd.f32 %v3378, %v3450
        %3452 = vmatprep.mubr.bf16.mxu0 %v2378
        %3453 = vmatmul.mubr.bf16.gmra.mxu0 %v2377
        %v3454 = vpop.f32.mrf.mxu0
        %v3455 = vadd.f32 %v3382, %v3454
        %v3456 = vpop.f32.mrf.mxu0
        %v3457 = vadd.f32 %v3384, %v3456
        %v3458 = vpop.f32.mrf.mxu0
        %v3459 = vadd.f32 %v3386, %v3458
        %v3460 = vpop.f32.mrf.mxu0
        %v3461 = vadd.f32 %v3388, %v3460
        %3462 = vmatprep.mubr.bf16.mxu0 %v2387
        %3463 = vmatmul.mubr.bf16.gmra.mxu0 %v2386
        %v3464 = vpop.f32.mrf.mxu0
        %v3465 = vadd.f32 %v3392, %v3464
        %v3466 = vpop.f32.mrf.mxu0
        %v3467 = vadd.f32 %v3394, %v3466
        %v3468 = vpop.f32.mrf.mxu0
        %v3469 = vadd.f32 %v3396, %v3468
        %v3470 = vpop.f32.mrf.mxu0
        %v3471 = vadd.f32 %v3398, %v3470
        %3472 = vmatprep.mubr.bf16.mxu0 %v2396
        %3473 = vmatmul.mubr.bf16.gmra.mxu0 %v2395
        %v3474 = vpop.f32.mrf.mxu0
        %v3475 = vadd.f32 %v3402, %v3474
        %v3476 = vpop.f32.mrf.mxu0
        %v3477 = vadd.f32 %v3404, %v3476
        %v3478 = vpop.f32.mrf.mxu0
        %v3479 = vadd.f32 %v3406, %v3478
        %v3480 = vpop.f32.mrf.mxu0
        %v3481 = vadd.f32 %v3408, %v3480
        %3482 = vdwg.mxu0
        %3483 = vmatprep.subr.bf16.mxu0 %v3087
        %3484 = vmatpush1.bf16.msra.mxu0 %v3086
        %3485 = vmatprep.subr.bf16.mxu0 %v3085
        %3486 = vmatpush1.bf16.msra.mxu0 %v3084
        %3487 = vmatprep.subr.bf16.mxu0 %v3083
        %3488 = vmatpush1.bf16.msra.mxu0 %v3082
        %3489 = vmatprep.subr.bf16.mxu0 %v3081
        %3490 = vmatpush1.bf16.msra.mxu0 %v3080
        %3491 = vmatprep.subr.bf16.mxu0 %v3079
        %3492 = vmatpush1.bf16.msra.mxu0 %v3078
        %3493 = vmatprep.subr.bf16.mxu0 %v3077
        %3494 = vmatpush1.bf16.msra.mxu0 %v3076
        %3495 = vmatprep.subr.bf16.mxu0 %v3075
        %3496 = vmatpush1.bf16.msra.mxu0 %v3074
        %3497 = vmatprep.subr.bf16.mxu0 %v3073
        %3498 = vmatpush1.bf16.msra.mxu0 %v3072
        %3499 = vmatprep.subr.bf16.mxu0 %v3103
        %3500 = vmatpush2.bf16.msra.mxu0 %v3102
        %3501 = vmatprep.subr.bf16.mxu0 %v3101
        %3502 = vmatpush2.bf16.msra.mxu0 %v3100
        %3503 = vmatprep.subr.bf16.mxu0 %v3099
        %3504 = vmatpush2.bf16.msra.mxu0 %v3098
        %3505 = vmatprep.subr.bf16.mxu0 %v3097
        %3506 = vmatpush2.bf16.msra.mxu0 %v3096
        %3507 = vmatprep.subr.bf16.mxu0 %v3095
        %3508 = vmatpush2.bf16.msra.mxu0 %v3094
        %3509 = vmatprep.subr.bf16.mxu0 %v3093
        %3510 = vmatpush2.bf16.msra.mxu0 %v3092
        %3511 = vmatprep.subr.bf16.mxu0 %v3091
        %3512 = vmatpush2.bf16.msra.mxu0 %v3090
        %3513 = vmatprep.subr.bf16.mxu0 %v3089
        %3514 = vmatpush2.bf16.msra.mxu0 %v3088
        %3515 = vmatprep.mubr.bf16.mxu0 %v2371
        %3516 = vmatmul.mubr.bf16.gmra.mxu0 %v2370
        %v3517 = vpop.f32.mrf.mxu0
        %v3518 = vadd.f32 %v3445, %v3517
        %v3519 = vpop.f32.mrf.mxu0
        %v3520 = vadd.f32 %v3447, %v3519
        %v3521 = vpop.f32.mrf.mxu0
        %v3522 = vadd.f32 %v3449, %v3521
        %v3523 = vpop.f32.mrf.mxu0
        %v3524 = vadd.f32 %v3451, %v3523
        %3525 = vmatprep.mubr.bf16.mxu0 %v2380
        %3526 = vmatmul.mubr.bf16.gmra.mxu0 %v2379
        %v3527 = vpop.f32.mrf.mxu0
        %v3528 = vadd.f32 %v3455, %v3527
        %v3529 = vpop.f32.mrf.mxu0
        %v3530 = vadd.f32 %v3457, %v3529
        %v3531 = vpop.f32.mrf.mxu0
        %v3532 = vadd.f32 %v3459, %v3531
        %v3533 = vpop.f32.mrf.mxu0
        %v3534 = vadd.f32 %v3461, %v3533
        %3535 = vmatprep.mubr.bf16.mxu0 %v2389
        %3536 = vmatmul.mubr.bf16.gmra.mxu0 %v2388
        %v3537 = vpop.f32.mrf.mxu0
        %v3538 = vadd.f32 %v3465, %v3537
        %v3539 = vpop.f32.mrf.mxu0
        %v3540 = vadd.f32 %v3467, %v3539
        %v3541 = vpop.f32.mrf.mxu0
        %v3542 = vadd.f32 %v3469, %v3541
        %v3543 = vpop.f32.mrf.mxu0
        %v3544 = vadd.f32 %v3471, %v3543
        %3545 = vmatprep.mubr.bf16.mxu0 %v2398
        %3546 = vmatmul.mubr.bf16.gmra.mxu0 %v2397
        %v3547 = vpop.f32.mrf.mxu0
        %v3548 = vadd.f32 %v3475, %v3547
        %v3549 = vpop.f32.mrf.mxu0
        %v3550 = vadd.f32 %v3477, %v3549
        %v3551 = vpop.f32.mrf.mxu0
        %v3552 = vadd.f32 %v3479, %v3551
        %v3553 = vpop.f32.mrf.mxu0
        %v3554 = vadd.f32 %v3481, %v3553
        %3555 = vdwg.mxu0
        %3556 = vmatprep.subr.bf16.mxu0 %v3119
        %3557 = vmatpush1.bf16.msra.mxu0 %v3118
        %3558 = vmatprep.subr.bf16.mxu0 %v3117
        %3559 = vmatpush1.bf16.msra.mxu0 %v3116
        %3560 = vmatprep.subr.bf16.mxu0 %v3115
        %3561 = vmatpush1.bf16.msra.mxu0 %v3114
        %3562 = vmatprep.subr.bf16.mxu0 %v3113
        %3563 = vmatpush1.bf16.msra.mxu0 %v3112
        %3564 = vmatprep.subr.bf16.mxu0 %v3111
        %3565 = vmatpush1.bf16.msra.mxu0 %v3110
        %3566 = vmatprep.subr.bf16.mxu0 %v3109
        %3567 = vmatpush1.bf16.msra.mxu0 %v3108
        %3568 = vmatprep.subr.bf16.mxu0 %v3107
        %3569 = vmatpush1.bf16.msra.mxu0 %v3106
        %3570 = vmatprep.subr.bf16.mxu0 %v3105
        %3571 = vmatpush1.bf16.msra.mxu0 %v3104
        %3572 = vmatprep.subr.bf16.mxu0 0
        %3573 = vmatpush2.bf16.msra.mxu0 0
        %3574 = vmatprep.subr.bf16.mxu0 0
        %3575 = vmatpush2.bf16.msra.mxu0 0
        %3576 = vmatprep.subr.bf16.mxu0 0
        %3577 = vmatpush2.bf16.msra.mxu0 0
        %3578 = vmatprep.subr.bf16.mxu0 0
        %3579 = vmatpush2.bf16.msra.mxu0 0
        %3580 = vmatprep.subr.bf16.mxu0 0
        %3581 = vmatpush2.bf16.msra.mxu0 0
        %3582 = vmatprep.subr.bf16.mxu0 0
        %3583 = vmatpush2.bf16.msra.mxu0 0
        %3584 = vmatprep.subr.bf16.mxu0 0
        %3585 = vmatpush2.bf16.msra.mxu0 0
        %3586 = vmatprep.subr.bf16.mxu0 0
        %3587 = vmatpush2.bf16.msra.mxu0 0
        %3588 = vmatprep.mubr.bf16.mxu0 0
        %3589 = vmatmul.mubr.bf16.gmra.mxu0 %v2372
        %v3590 = vpop.f32.mrf.mxu0
        %v3591 = vadd.f32 %v3518, %v3590
        %v3592 = vpop.f32.mrf.mxu0
        %v3593 = vadd.f32 %v3520, %v3592
        %v3594 = vpop.f32.mrf.mxu0
        %v3595 = vadd.f32 %v3522, %v3594
        %v3596 = vpop.f32.mrf.mxu0
        %v3597 = vadd.f32 %v3524, %v3596
        %3598 = vmatprep.mubr.bf16.mxu0 0
        %3599 = vmatmul.mubr.bf16.gmra.mxu0 %v2381
        %v3600 = vpop.f32.mrf.mxu0
        %v3601 = vadd.f32 %v3528, %v3600
        %v3602 = vpop.f32.mrf.mxu0
        %v3603 = vadd.f32 %v3530, %v3602
        %v3604 = vpop.f32.mrf.mxu0
        %v3605 = vadd.f32 %v3532, %v3604
        %v3606 = vpop.f32.mrf.mxu0
        %v3607 = vadd.f32 %v3534, %v3606
        %3608 = vmatprep.mubr.bf16.mxu0 0
        %3609 = vmatmul.mubr.bf16.gmra.mxu0 %v2390
        %v3610 = vpop.f32.mrf.mxu0
        %v3611 = vadd.f32 %v3538, %v3610
        %v3612 = vpop.f32.mrf.mxu0
        %v3613 = vadd.f32 %v3540, %v3612
        %v3614 = vpop.f32.mrf.mxu0
        %v3615 = vadd.f32 %v3542, %v3614
        %v3616 = vpop.f32.mrf.mxu0
        %v3617 = vadd.f32 %v3544, %v3616
        %3618 = vmatprep.mubr.bf16.mxu0 0
        %3619 = vmatmul.mubr.bf16.gmra.mxu0 %v2399
        %v3620 = vpop.f32.mrf.mxu0
        %v3621 = vadd.f32 %v3548, %v3620
        %v3622 = vpop.f32.mrf.mxu0
        %v3623 = vadd.f32 %v3550, %v3622
        %v3624 = vpop.f32.mrf.mxu0
        %v3625 = vadd.f32 %v3552, %v3624
        %v3626 = vpop.f32.mrf.mxu0
        %v3627 = vadd.f32 %v3554, %v3626
        %3628 = vdwg.mxu0
        %v3629 = vmul.f32 %v3591, 0.5
        %v3630 = vmul.f32 %v3593, 0.5
        %v3631 = vmul.f32 %v3595, 0.5
        %v3632 = vmul.f32 %v3597, 0.5
        %v3633 = vmul.f32 %v3601, 0.5
        %v3634 = vmul.f32 %v3603, 0.5
        %v3635 = vmul.f32 %v3605, 0.5
        %v3636 = vmul.f32 %v3607, 0.5
        %v3637 = vmul.f32 %v3611, 0.5
        %v3638 = vmul.f32 %v3613, 0.5
        %v3639 = vmul.f32 %v3615, 0.5
        %v3640 = vmul.f32 %v3617, 0.5
        %v3641 = vmul.f32 %v3621, 0.5
        %v3642 = vmul.f32 %v3623, 0.5
        %v3643 = vmul.f32 %v3625, 0.5
        %v3644 = vmul.f32 %v3627, 0.5
        %v3645 = vmul.f32 %v3591, 0.70710677
        %v3646 = vmul.f32 %v3593, 0.70710677
        %v3647 = vmul.f32 %v3595, 0.70710677
        %v3648 = vmul.f32 %v3597, 0.70710677
        %v3649 = vmul.f32 %v3601, 0.70710677
        %v3650 = vmul.f32 %v3603, 0.70710677
        %v3651 = vmul.f32 %v3605, 0.70710677
        %v3652 = vmul.f32 %v3607, 0.70710677
        %v3653 = vmul.f32 %v3611, 0.70710677
        %v3654 = vmul.f32 %v3613, 0.70710677
        %v3655 = vmul.f32 %v3615, 0.70710677
        %v3656 = vmul.f32 %v3617, 0.70710677
        %v3657 = vmul.f32 %v3621, 0.70710677
        %v3658 = vmul.f32 %v3623, 0.70710677
        %v3659 = vmul.f32 %v3625, 0.70710677
        %v3660 = vmul.f32 %v3627, 0.70710677
        %v3661 = verf.f32.pop %v3645
        %v3662 = verf.f32.pop %v3646
        %v3663 = verf.f32.pop %v3647
        %v3664 = verf.f32.pop %v3648
        %v3665 = verf.f32.pop %v3649
        %v3666 = verf.f32.pop %v3650
        %v3667 = verf.f32.pop %v3651
        %v3668 = verf.f32.pop %v3652
        %v3669 = verf.f32.pop %v3653
        %v3670 = verf.f32.pop %v3654
        %v3671 = verf.f32.pop %v3655
        %v3672 = verf.f32.pop %v3656
        %v3673 = verf.f32.pop %v3657
        %v3674 = verf.f32.pop %v3658
        %v3675 = verf.f32.pop %v3659
        %v3676 = verf.f32.pop %v3660
        %v3677 = vadd.f32 %v3661, 1.0
        %v3678 = vadd.f32 %v3662, 1.0
        %v3679 = vadd.f32 %v3663, 1.0
        %v3680 = vadd.f32 %v3664, 1.0
        %v3681 = vadd.f32 %v3665, 1.0
        %v3682 = vadd.f32 %v3666, 1.0
        %v3683 = vadd.f32 %v3667, 1.0
        %v3684 = vadd.f32 %v3668, 1.0
        %v3685 = vadd.f32 %v3669, 1.0
        %v3686 = vadd.f32 %v3670, 1.0
        %v3687 = vadd.f32 %v3671, 1.0
        %v3688 = vadd.f32 %v3672, 1.0
        %v3689 = vadd.f32 %v3673, 1.0
        %v3690 = vadd.f32 %v3674, 1.0
        %v3691 = vadd.f32 %v3675, 1.0
        %v3692 = vadd.f32 %v3676, 1.0
        %v3693 = vmul.f32 %v3629, %v3677
        %v3694 = vmul.f32 %v3630, %v3678
        %v3695 = vmul.f32 %v3631, %v3679
        %v3696 = vmul.f32 %v3632, %v3680
        %v3697 = vmul.f32 %v3633, %v3681
        %v3698 = vmul.f32 %v3634, %v3682
        %v3699 = vmul.f32 %v3635, %v3683
        %v3700 = vmul.f32 %v3636, %v3684
        %v3701 = vmul.f32 %v3637, %v3685
        %v3702 = vmul.f32 %v3638, %v3686
        %v3703 = vmul.f32 %v3639, %v3687
        %v3704 = vmul.f32 %v3640, %v3688
        %v3705 = vmul.f32 %v3641, %v3689
        %v3706 = vmul.f32 %v3642, %v3690
        %v3707 = vmul.f32 %v3643, %v3691
        %v3708 = vmul.f32 %v3644, %v3692
        %v3709 = vld [vmem:[%s7] sm:$0xff]
        %v3710 = vld [vmem:[%s7 + $0x8] sm:$0xff]
        %v3711 = vld [vmem:[%s7 + $0x10] sm:$0xff]
        %v3712 = vld [vmem:[%s7 + $0x18] sm:$0x7f]
        %vm3713 = vcmask 515072
        %v3715 = vsel %vm3713, %v3709, 0
        %v3718 = vsel %vm3713, %v3710, 0
        %v3721 = vsel %vm3713, %v3711, 0
        %v3724 = vsel %vm3713, %v3712, 0
        %vm3726 = vcmask 1046528
        %v3728 = vsel %vm3726, %v3707, 0
        %v3731 = vsel %vm3726, %v3708, 0
        %3733 = vmatprep.subr.mxu0 0.0
        %3734 = vmatpush1.msra.mxu0 0.0
        %3735 = vmatprep.subr.mxu0 0.0
        %3736 = vmatpush1.msra.mxu0 0.0
        %3737 = vmatprep.subr.mxu0 0.0
        %3738 = vmatpush1.msra.mxu0 0.0
        %3739 = vmatprep.subr.mxu0 0.0
        %3740 = vmatpush1.msra.mxu0 0.0
        %3741 = vmatprep.subr.mxu0 0.0
        %3742 = vmatpush1.msra.mxu0 0.0
        %3743 = vmatprep.subr.mxu0 0.0
        %3744 = vmatpush1.msra.mxu0 0.0
        %3745 = vmatprep.subr.mxu0 0.0
        %3746 = vmatpush1.msra.mxu0 0.0
        %3747 = vmatprep.subr.mxu0 0.0
        %3748 = vmatpush1.msra.mxu0 0.0
        %3749 = vmatprep.subr.mxu0 %v3731
        %3750 = vmatpush1.msra.mxu0 %v3728
        %3751 = vmatprep.subr.mxu0 %v3706
        %3752 = vmatpush1.msra.mxu0 %v3705
        %3753 = vmatprep.subr.mxu0 %v3704
        %3754 = vmatpush1.msra.mxu0 %v3703
        %3755 = vmatprep.subr.mxu0 %v3702
        %3756 = vmatpush1.msra.mxu0 %v3701
        %3757 = vmatprep.subr.mxu0 %v3700
        %3758 = vmatpush1.msra.mxu0 %v3699
        %3759 = vmatprep.subr.mxu0 %v3698
        %3760 = vmatpush1.msra.mxu0 %v3697
        %3761 = vmatprep.subr.mxu0 %v3696
        %3762 = vmatpush1.msra.mxu0 %v3695
        %3763 = vmatprep.subr.mxu0 %v3694
        %3764 = vmatpush1.msra.mxu0 %v3693
        %3765 = vmatprep.subr.mxu0 0.0
        %3766 = vmatpush2.msra.mxu0 0.0
        %3767 = vmatprep.subr.mxu0 0.0
        %3768 = vmatpush2.msra.mxu0 0.0
        %3769 = vmatprep.subr.mxu0 0.0
        %3770 = vmatpush2.msra.mxu0 0.0
        %3771 = vmatprep.subr.mxu0 0.0
        %3772 = vmatpush2.msra.mxu0 0.0
        %3773 = vmatprep.subr.mxu0 0.0
        %3774 = vmatpush2.msra.mxu0 0.0
        %3775 = vmatprep.subr.mxu0 0.0
        %3776 = vmatpush2.msra.mxu0 0.0
        %3777 = vmatprep.subr.mxu0 0.0
        %3778 = vmatpush2.msra.mxu0 0.0
        %3779 = vmatprep.subr.mxu0 0.0
        %3780 = vmatpush2.msra.mxu0 0.0
        %3781 = vmatprep.subr.mxu0 0.0
        %3782 = vmatpush2.msra.mxu0 0.0
        %3783 = vmatprep.subr.mxu0 0.0
        %3784 = vmatpush2.msra.mxu0 0.0
        %3785 = vmatprep.subr.mxu0 0.0
        %3786 = vmatpush2.msra.mxu0 0.0
        %3787 = vmatprep.subr.mxu0 0.0
        %3788 = vmatpush2.msra.mxu0 0.0
        %3789 = vmatprep.subr.mxu0 0.0
        %3790 = vmatpush2.msra.mxu0 0.0
        %3791 = vmatprep.subr.mxu0 0.0
        %3792 = vmatpush2.msra.mxu0 0.0
        %3793 = vmatprep.subr.mxu0 0.0
        %3794 = vmatpush2.msra.mxu0 0.0
        %3795 = vmatprep.subr.mxu0 0.0
        %3796 = vmatpush2.msra.mxu0 0.0
        %3797 = vmatprep.mubr.f32.mxu0 0.0
        %3798 = vmatmul.mubr.f32.gmra.mxu0 %v3715
        %v3799 = vpop.f32.mrf.mxu0
        %v3800 = vadd.f32 0.0, %v3799
        %v3801 = vpop.f32.mrf.mxu0
        %v3802 = vadd.f32 0.0, %v3801
        %3803 = vmatprep.mubr.f32.mxu0 0.0
        %3804 = vmatmul.mubr.f32.gmra.mxu0 %v3718
        %v3805 = vpop.f32.mrf.mxu0
        %v3806 = vadd.f32 0.0, %v3805
        %v3807 = vpop.f32.mrf.mxu0
        %v3808 = vadd.f32 0.0, %v3807
        %3809 = vmatprep.mubr.f32.mxu0 0.0
        %3810 = vmatmul.mubr.f32.gmra.mxu0 %v3721
        %v3811 = vpop.f32.mrf.mxu0
        %v3812 = vadd.f32 0.0, %v3811
        %v3813 = vpop.f32.mrf.mxu0
        %v3814 = vadd.f32 0.0, %v3813
        %3815 = vmatprep.mubr.f32.mxu0 0.0
        %3816 = vmatmul.mubr.f32.gmra.mxu0 %v3724
        %v3817 = vpop.f32.mrf.mxu0
        %v3818 = vadd.f32 0.0, %v3817
        %v3819 = vpop.f32.mrf.mxu0
        %v3820 = vadd.f32 0.0, %v3819
        %3821 = vdwg.mxu0
        %s3822 = scalar_lea.vmem %s7, 32
        %v3823 = vld [vmem:[%s3822] sm:$0xff]
        %v3824 = vld [vmem:[%s3822 + $0x8] sm:$0xff]
        %v3825 = vld [vmem:[%s3822 + $0x10] sm:$0xff]
        %v3826 = vld [vmem:[%s3822 + $0x18] sm:$0x7f]
        %v3828 = vsel %vm3713, %v3823, 0
        %v3831 = vsel %vm3713, %v3824, 0
        %v3834 = vsel %vm3713, %v3825, 0
        %v3837 = vsel %vm3713, %v3826, 0
        %3839 = vmatprep.subr.mxu0 0.0
        %3840 = vmatpush1.msra.mxu0 0.0
        %3841 = vmatprep.subr.mxu0 0.0
        %3842 = vmatpush1.msra.mxu0 0.0
        %3843 = vmatprep.subr.mxu0 0.0
        %3844 = vmatpush1.msra.mxu0 0.0
        %3845 = vmatprep.subr.mxu0 0.0
        %3846 = vmatpush1.msra.mxu0 0.0
        %3847 = vmatprep.subr.mxu0 0.0
        %3848 = vmatpush1.msra.mxu0 0.0
        %3849 = vmatprep.subr.mxu0 0.0
        %3850 = vmatpush1.msra.mxu0 0.0
        %3851 = vmatprep.subr.mxu0 0.0
        %3852 = vmatpush1.msra.mxu0 0.0
        %3853 = vmatprep.subr.mxu0 0.0
        %3854 = vmatpush1.msra.mxu0 0.0
        %3855 = vmatprep.subr.mxu0 %v3731
        %3856 = vmatpush1.msra.mxu0 %v3728
        %3857 = vmatprep.subr.mxu0 %v3706
        %3858 = vmatpush1.msra.mxu0 %v3705
        %3859 = vmatprep.subr.mxu0 %v3704
        %3860 = vmatpush1.msra.mxu0 %v3703
        %3861 = vmatprep.subr.mxu0 %v3702
        %3862 = vmatpush1.msra.mxu0 %v3701
        %3863 = vmatprep.subr.mxu0 %v3700
        %3864 = vmatpush1.msra.mxu0 %v3699
        %3865 = vmatprep.subr.mxu0 %v3698
        %3866 = vmatpush1.msra.mxu0 %v3697
        %3867 = vmatprep.subr.mxu0 %v3696
        %3868 = vmatpush1.msra.mxu0 %v3695
        %3869 = vmatprep.subr.mxu0 %v3694
        %3870 = vmatpush1.msra.mxu0 %v3693
        %3871 = vmatprep.subr.mxu0 0.0
        %3872 = vmatpush2.msra.mxu0 0.0
        %3873 = vmatprep.subr.mxu0 0.0
        %3874 = vmatpush2.msra.mxu0 0.0
        %3875 = vmatprep.subr.mxu0 0.0
        %3876 = vmatpush2.msra.mxu0 0.0
        %3877 = vmatprep.subr.mxu0 0.0
        %3878 = vmatpush2.msra.mxu0 0.0
        %3879 = vmatprep.subr.mxu0 0.0
        %3880 = vmatpush2.msra.mxu0 0.0
        %3881 = vmatprep.subr.mxu0 0.0
        %3882 = vmatpush2.msra.mxu0 0.0
        %3883 = vmatprep.subr.mxu0 0.0
        %3884 = vmatpush2.msra.mxu0 0.0
        %3885 = vmatprep.subr.mxu0 0.0
        %3886 = vmatpush2.msra.mxu0 0.0
        %3887 = vmatprep.subr.mxu0 0.0
        %3888 = vmatpush2.msra.mxu0 0.0
        %3889 = vmatprep.subr.mxu0 0.0
        %3890 = vmatpush2.msra.mxu0 0.0
        %3891 = vmatprep.subr.mxu0 0.0
        %3892 = vmatpush2.msra.mxu0 0.0
        %3893 = vmatprep.subr.mxu0 0.0
        %3894 = vmatpush2.msra.mxu0 0.0
        %3895 = vmatprep.subr.mxu0 0.0
        %3896 = vmatpush2.msra.mxu0 0.0
        %3897 = vmatprep.subr.mxu0 0.0
        %3898 = vmatpush2.msra.mxu0 0.0
        %3899 = vmatprep.subr.mxu0 0.0
        %3900 = vmatpush2.msra.mxu0 0.0
        %3901 = vmatprep.subr.mxu0 0.0
        %3902 = vmatpush2.msra.mxu0 0.0
        %3903 = vmatprep.mubr.f32.mxu0 0.0
        %3904 = vmatmul.mubr.f32.gmra.mxu0 %v3828
        %v3905 = vpop.f32.mrf.mxu0
        %v3906 = vadd.f32 0.0, %v3905
        %v3907 = vpop.f32.mrf.mxu0
        %v3908 = vadd.f32 0.0, %v3907
        %3909 = vmatprep.mubr.f32.mxu0 0.0
        %3910 = vmatmul.mubr.f32.gmra.mxu0 %v3831
        %v3911 = vpop.f32.mrf.mxu0
        %v3912 = vadd.f32 0.0, %v3911
        %v3913 = vpop.f32.mrf.mxu0
        %v3914 = vadd.f32 0.0, %v3913
        %3915 = vmatprep.mubr.f32.mxu0 0.0
        %3916 = vmatmul.mubr.f32.gmra.mxu0 %v3834
        %v3917 = vpop.f32.mrf.mxu0
        %v3918 = vadd.f32 0.0, %v3917
        %v3919 = vpop.f32.mrf.mxu0
        %v3920 = vadd.f32 0.0, %v3919
        %3921 = vmatprep.mubr.f32.mxu0 0.0
        %3922 = vmatmul.mubr.f32.gmra.mxu0 %v3837
        %v3923 = vpop.f32.mrf.mxu0
        %v3924 = vadd.f32 0.0, %v3923
        %v3925 = vpop.f32.mrf.mxu0
        %v3926 = vadd.f32 0.0, %v3925
        %3927 = vdwg.mxu0
        %s3928 = scalar_lea.vmem %s7, 64
        %v3929 = vld [vmem:[%s3928] sm:$0xff]
        %v3930 = vld [vmem:[%s3928 + $0x8] sm:$0xff]
        %v3931 = vld [vmem:[%s3928 + $0x10] sm:$0xff]
        %v3932 = vld [vmem:[%s3928 + $0x18] sm:$0x7f]
        %v3934 = vsel %vm3713, %v3929, 0
        %v3937 = vsel %vm3713, %v3930, 0
        %v3940 = vsel %vm3713, %v3931, 0
        %v3943 = vsel %vm3713, %v3932, 0
        %3945 = vmatprep.subr.mxu0 0.0
        %3946 = vmatpush1.msra.mxu0 0.0
        %3947 = vmatprep.subr.mxu0 0.0
        %3948 = vmatpush1.msra.mxu0 0.0
        %3949 = vmatprep.subr.mxu0 0.0
        %3950 = vmatpush1.msra.mxu0 0.0
        %3951 = vmatprep.subr.mxu0 0.0
        %3952 = vmatpush1.msra.mxu0 0.0
        %3953 = vmatprep.subr.mxu0 0.0
        %3954 = vmatpush1.msra.mxu0 0.0
        %3955 = vmatprep.subr.mxu0 0.0
        %3956 = vmatpush1.msra.mxu0 0.0
        %3957 = vmatprep.subr.mxu0 0.0
        %3958 = vmatpush1.msra.mxu0 0.0
        %3959 = vmatprep.subr.mxu0 0.0
        %3960 = vmatpush1.msra.mxu0 0.0
        %3961 = vmatprep.subr.mxu0 %v3731
        %3962 = vmatpush1.msra.mxu0 %v3728
        %3963 = vmatprep.subr.mxu0 %v3706
        %3964 = vmatpush1.msra.mxu0 %v3705
        %3965 = vmatprep.subr.mxu0 %v3704
        %3966 = vmatpush1.msra.mxu0 %v3703
        %3967 = vmatprep.subr.mxu0 %v3702
        %3968 = vmatpush1.msra.mxu0 %v3701
        %3969 = vmatprep.subr.mxu0 %v3700
        %3970 = vmatpush1.msra.mxu0 %v3699
        %3971 = vmatprep.subr.mxu0 %v3698
        %3972 = vmatpush1.msra.mxu0 %v3697
        %3973 = vmatprep.subr.mxu0 %v3696
        %3974 = vmatpush1.msra.mxu0 %v3695
        %3975 = vmatprep.subr.mxu0 %v3694
        %3976 = vmatpush1.msra.mxu0 %v3693
        %3977 = vmatprep.subr.mxu0 0.0
        %3978 = vmatpush2.msra.mxu0 0.0
        %3979 = vmatprep.subr.mxu0 0.0
        %3980 = vmatpush2.msra.mxu0 0.0
        %3981 = vmatprep.subr.mxu0 0.0
        %3982 = vmatpush2.msra.mxu0 0.0
        %3983 = vmatprep.subr.mxu0 0.0
        %3984 = vmatpush2.msra.mxu0 0.0
        %3985 = vmatprep.subr.mxu0 0.0
        %3986 = vmatpush2.msra.mxu0 0.0
        %3987 = vmatprep.subr.mxu0 0.0
        %3988 = vmatpush2.msra.mxu0 0.0
        %3989 = vmatprep.subr.mxu0 0.0
        %3990 = vmatpush2.msra.mxu0 0.0
        %3991 = vmatprep.subr.mxu0 0.0
        %3992 = vmatpush2.msra.mxu0 0.0
        %3993 = vmatprep.subr.mxu0 0.0
        %3994 = vmatpush2.msra.mxu0 0.0
        %3995 = vmatprep.subr.mxu0 0.0
        %3996 = vmatpush2.msra.mxu0 0.0
        %3997 = vmatprep.subr.mxu0 0.0
        %3998 = vmatpush2.msra.mxu0 0.0
        %3999 = vmatprep.subr.mxu0 0.0
        %4000 = vmatpush2.msra.mxu0 0.0
        %4001 = vmatprep.subr.mxu0 0.0
        %4002 = vmatpush2.msra.mxu0 0.0
        %4003 = vmatprep.subr.mxu0 0.0
        %4004 = vmatpush2.msra.mxu0 0.0
        %4005 = vmatprep.subr.mxu0 0.0
        %4006 = vmatpush2.msra.mxu0 0.0
        %4007 = vmatprep.subr.mxu0 0.0
        %4008 = vmatpush2.msra.mxu0 0.0
        %4009 = vmatprep.mubr.f32.mxu0 0.0
        %4010 = vmatmul.mubr.f32.gmra.mxu0 %v3934
        %v4011 = vpop.f32.mrf.mxu0
        %v4012 = vadd.f32 0.0, %v4011
        %v4013 = vpop.f32.mrf.mxu0
        %v4014 = vadd.f32 0.0, %v4013
        %4015 = vmatprep.mubr.f32.mxu0 0.0
        %4016 = vmatmul.mubr.f32.gmra.mxu0 %v3937
        %v4017 = vpop.f32.mrf.mxu0
        %v4018 = vadd.f32 0.0, %v4017
        %v4019 = vpop.f32.mrf.mxu0
        %v4020 = vadd.f32 0.0, %v4019
        %4021 = vmatprep.mubr.f32.mxu0 0.0
        %4022 = vmatmul.mubr.f32.gmra.mxu0 %v3940
        %v4023 = vpop.f32.mrf.mxu0
        %v4024 = vadd.f32 0.0, %v4023
        %v4025 = vpop.f32.mrf.mxu0
        %v4026 = vadd.f32 0.0, %v4025
        %4027 = vmatprep.mubr.f32.mxu0 0.0
        %4028 = vmatmul.mubr.f32.gmra.mxu0 %v3943
        %v4029 = vpop.f32.mrf.mxu0
        %v4030 = vadd.f32 0.0, %v4029
        %v4031 = vpop.f32.mrf.mxu0
        %v4032 = vadd.f32 0.0, %v4031
        %4033 = vdwg.mxu0
        %4042 = vrot.lane.b32.xlu0 %v3906, 61
        %v4043 = vpop.permute.xlu0 %4042
        %4044 = vrot.lane.b32.xlu0 %v3908, 61
        %v4045 = vpop.permute.xlu0 %4044
        %4046 = vrot.lane.b32.xlu0 %v3912, 61
        %v4047 = vpop.permute.xlu0 %4046
        %4048 = vrot.lane.b32.xlu0 %v3914, 61
        %v4049 = vpop.permute.xlu0 %4048
        %4050 = vrot.lane.b32.xlu0 %v3918, 61
        %v4051 = vpop.permute.xlu0 %4050
        %4052 = vrot.lane.b32.xlu0 %v3920, 61
        %v4053 = vpop.permute.xlu0 %4052
        %4054 = vrot.lane.b32.xlu0 %v3924, 61
        %v4055 = vpop.permute.xlu0 %4054
        %4056 = vrot.lane.b32.xlu0 %v3926, 61
        %v4057 = vpop.permute.xlu0 %4056
        %vm4058 = vcmask 498688
        %v4059 = vsel %vm4058, %v4043, %v4045
        %v4060 = vsel %vm4058, %v4047, %v4049
        %v4061 = vsel %vm4058, %v4051, %v4053
        %v4062 = vsel %vm4058, %v4055, %v4057
        %4079 = vrot.lane.b32.xlu0 %v4012, 122
        %v4080 = vpop.permute.xlu0 %4079
        %4081 = vrot.lane.b32.xlu0 %v4014, 122
        %v4082 = vpop.permute.xlu0 %4081
        %4083 = vrot.lane.b32.xlu0 %v4018, 122
        %v4084 = vpop.permute.xlu0 %4083
        %4085 = vrot.lane.b32.xlu0 %v4020, 122
        %v4086 = vpop.permute.xlu0 %4085
        %4087 = vrot.lane.b32.xlu0 %v4024, 122
        %v4088 = vpop.permute.xlu0 %4087
        %4089 = vrot.lane.b32.xlu0 %v4026, 122
        %v4090 = vpop.permute.xlu0 %4089
        %4091 = vrot.lane.b32.xlu0 %v4030, 122
        %v4092 = vpop.permute.xlu0 %4091
        %4093 = vrot.lane.b32.xlu0 %v4032, 122
        %v4094 = vpop.permute.xlu0 %4093
        %vm4095 = vcmask 998400
        %v4096 = vsel %vm4095, %v4080, %v4082
        %v4097 = vsel %vm4095, %v4084, %v4086
        %v4098 = vsel %vm4095, %v4088, %v4090
        %v4099 = vsel %vm4095, %v4092, %v4094
        %v4112 = vsel %vm4058, %v3802, %v4043
        %v4113 = vsel %vm4058, %v3808, %v4047
        %v4114 = vsel %vm4058, %v3814, %v4051
        %v4115 = vsel %vm4058, %v3820, %v4055
        %v4116 = vsel %vm4095, %v4059, %v4080
        %v4117 = vsel %vm4095, %v4060, %v4084
        %v4118 = vsel %vm4095, %v4061, %v4088
        %v4119 = vsel %vm4095, %v4062, %v4092
        %v4120 = vpack.c.bf16 %v3806, %v3800
        %v4121 = vpack.c.bf16 %v4113, %v4112
        %v4122 = vpack.c.bf16 %v4117, %v4116
        %v4123 = vpack.c.bf16 %v4097, %v4096
        %v4124 = vpack.c.bf16 %v4086, %v4082
        %v4125 = vpack.c.bf16 %v3818, %v3812
        %v4126 = vpack.c.bf16 %v4115, %v4114
        %v4127 = vpack.c.bf16 %v4119, %v4118
        %v4128 = vpack.c.bf16 %v4099, %v4098
        %v4129 = vpack.c.bf16 %v4094, %v4090
        %v4130 = vld [vmem:[%s8] sm:$0xf]
        %v4131 = vld [vmem:[%s8 + $0x4] sm:$0xf]
        %v4132 = vld [vmem:[%s8 + $0x8] sm:$0xf]
        %v4133 = vld [vmem:[%s8 + $0xc] sm:$0xf]
        %v4134 = vld [vmem:[%s8 + $0x10] sm:$0xf]
        %v4135 = vld [vmem:[%s8 + $0x14] sm:$0xf]
        %v4136 = vld [vmem:[%s8 + $0x18] sm:$0xf]
        %v4137 = vld [vmem:[%s8 + $0x1c] sm:$0xf]
        %v4138 = vld [vmem:[%s8 + $0x20] sm:$0xf]
        %v4139 = vld [vmem:[%s8 + $0x24] sm:$0xf]
        %v4140 = vld [vmem:[%s8 + $0x28] sm:$0xf]
        %v4141 = vld [vmem:[%s8 + $0x2c] sm:$0xf]
        %v4142 = vld [vmem:[%s8 + $0x30] sm:$0xf]
        %v4143 = vld [vmem:[%s8 + $0x34] sm:$0xf]
        %v4144 = vld [vmem:[%s8 + $0x38] sm:$0xf]
        %v4145 = vld [vmem:[%s8 + $0x3c] sm:$0xf]
        %v4146 = vld [vmem:[%s8 + $0x40] sm:$0xf]
        %v4147 = vld [vmem:[%s8 + $0x44] sm:$0xf]
        %v4148 = vld [vmem:[%s8 + $0x48] sm:$0xf]
        %v4149 = vld [vmem:[%s8 + $0x4c] sm:$0xf]
        %v4150 = vld [vmem:[%s8 + $0x50] sm:$0xf]
        %v4151 = vld [vmem:[%s8 + $0x54] sm:$0xf]
        %v4152 = vld [vmem:[%s8 + $0x58] sm:$0xf]
        %v4153 = vld [vmem:[%s8 + $0x5c] sm:$0xf]
        %v4154 = vld [vmem:[%s8 + $0x60] sm:$0xf]
        %v4155 = vld [vmem:[%s8 + $0x64] sm:$0xf]
        %v4156 = vld [vmem:[%s8 + $0x68] sm:$0xf]
        %v4157 = vld [vmem:[%s8 + $0x6c] sm:$0xf]
        %v4158 = vld [vmem:[%s8 + $0x70] sm:$0xf]
        %v4159 = vld [vmem:[%s8 + $0x74] sm:$0xf]
        %v4160 = vld [vmem:[%s8 + $0x78] sm:$0xf]
        %v4161 = vld [vmem:[%s8 + $0x7c] sm:$0xf]
        %v4162 = vld [vmem:[%s8 + $0x80] sm:$0xf]
        %v4163 = vld [vmem:[%s8 + $0x84] sm:$0xf]
        %v4164 = vld [vmem:[%s8 + $0x88] sm:$0xf]
        %v4165 = vld [vmem:[%s8 + $0x8c] sm:$0xf]
        %v4166 = vld [vmem:[%s8 + $0x90] sm:$0xf]
        %v4167 = vld [vmem:[%s8 + $0x94] sm:$0xf]
        %v4168 = vld [vmem:[%s8 + $0x98] sm:$0xf]
        %v4169 = vld [vmem:[%s8 + $0x9c] sm:$0xf]
        %v4170 = vld [vmem:[%s8 + $0xa0] sm:$0xf]
        %v4171 = vld [vmem:[%s8 + $0xa4] sm:$0xf]
        %v4172 = vld [vmem:[%s8 + $0xa8] sm:$0xf]
        %v4173 = vld [vmem:[%s8 + $0xac] sm:$0xf]
        %v4174 = vld [vmem:[%s8 + $0xb0] sm:$0xf]
        %v4175 = vld [vmem:[%s8 + $0xb4] sm:$0xf]
        %v4176 = vld [vmem:[%s8 + $0xb8] sm:$0xf]
        %v4177 = vld [vmem:[%s8 + $0xbc] sm:$0xf]
        %v4178 = vld [vmem:[%s8 + $0xc0] sm:$0xf]
        %v4179 = vld [vmem:[%s8 + $0xc4] sm:$0xf]
        %v4180 = vld [vmem:[%s8 + $0xc8] sm:$0xf]
        %v4181 = vld [vmem:[%s8 + $0xcc] sm:$0xf]
        %v4182 = vld [vmem:[%s8 + $0xd0] sm:$0xf]
        %v4183 = vld [vmem:[%s8 + $0xd4] sm:$0xf]
        %v4184 = vld [vmem:[%s8 + $0xd8] sm:$0xf]
        %v4185 = vld [vmem:[%s8 + $0xdc] sm:$0xf]
        %v4186 = vld [vmem:[%s8 + $0xe0] sm:$0xf]
        %v4187 = vld [vmem:[%s8 + $0xe4] sm:$0xf]
        %v4188 = vld [vmem:[%s8 + $0xe8] sm:$0xf]
        %v4189 = vld [vmem:[%s8 + $0xec] sm:$0xf]
        %v4190 = vld [vmem:[%s8 + $0xf0] sm:$0xf]
        %v4191 = vld [vmem:[%s8 + $0xf4] sm:$0xf]
        %v4192 = vld [vmem:[%s8 + $0xf8] sm:$0xf]
        %v4193 = vld [vmem:[%s8 + $0xfc] sm:$0xf]
        %v4194 = vld [vmem:[%s8 + $0x100] sm:$0xf]
        %v4195 = vld [vmem:[%s8 + $0x104] sm:$0xf]
        %v4196 = vld [vmem:[%s8 + $0x108] sm:$0xf]
        %v4197 = vld [vmem:[%s8 + $0x10c] sm:$0xf]
        %v4198 = vld [vmem:[%s8 + $0x110] sm:$0xf]
        %v4199 = vld [vmem:[%s8 + $0x114] sm:$0xf]
        %v4200 = vld [vmem:[%s8 + $0x118] sm:$0xf]
        %v4272 = vunpack.c.l.b16 %v4130
        %v4273 = vunpack.c.l.b16 %v4131
        %v4274 = vunpack.c.l.b16 %v4132
        %v4275 = vunpack.c.l.b16 %v4133
        %v4276 = vunpack.c.l.b16 %v4134
        %v4277 = vunpack.c.l.b16 %v4135
        %v4278 = vunpack.c.l.b16 %v4136
        %v4279 = vunpack.c.l.b16 %v4137
        %v4280 = vunpack.c.l.b16 %v4138
        %v4281 = vunpack.c.l.b16 %v4139
        %v4282 = vunpack.c.l.b16 %v4140
        %v4283 = vunpack.c.l.b16 %v4141
        %v4284 = vunpack.c.l.b16 %v4142
        %v4285 = vunpack.c.l.b16 %v4143
        %v4286 = vunpack.c.l.b16 %v4144
        %v4287 = vunpack.c.l.b16 %v4145
        %v4288 = vunpack.c.l.b16 %v4146
        %v4289 = vunpack.c.l.b16 %v4147
        %v4290 = vunpack.c.l.b16 %v4148
        %v4291 = vunpack.c.l.b16 %v4149
        %v4292 = vunpack.c.l.b16 %v4150
        %v4293 = vunpack.c.l.b16 %v4151
        %v4294 = vunpack.c.l.b16 %v4152
        %v4295 = vunpack.c.l.b16 %v4153
        %v4296 = vunpack.c.l.b16 %v4154
        %v4297 = vunpack.c.l.b16 %v4155
        %v4298 = vunpack.c.l.b16 %v4156
        %v4299 = vunpack.c.l.b16 %v4157
        %v4300 = vunpack.c.l.b16 %v4158
        %v4301 = vunpack.c.l.b16 %v4159
        %v4302 = vunpack.c.l.b16 %v4160
        %v4303 = vunpack.c.l.b16 %v4161
        %v4304 = vunpack.c.l.b16 %v4162
        %v4305 = vunpack.c.l.b16 %v4163
        %v4306 = vunpack.c.l.b16 %v4164
        %v4307 = vunpack.c.l.b16 %v4165
        %v4308 = vunpack.c.l.b16 %v4166
        %v4309 = vunpack.c.l.b16 %v4167
        %v4310 = vunpack.c.l.b16 %v4168
        %v4311 = vunpack.c.l.b16 %v4169
        %v4312 = vunpack.c.l.b16 %v4170
        %v4313 = vunpack.c.l.b16 %v4171
        %v4314 = vunpack.c.l.b16 %v4172
        %v4315 = vunpack.c.l.b16 %v4173
        %v4316 = vunpack.c.l.b16 %v4174
        %v4317 = vunpack.c.l.b16 %v4175
        %v4318 = vunpack.c.l.b16 %v4176
        %v4319 = vunpack.c.l.b16 %v4177
        %v4320 = vunpack.c.l.b16 %v4178
        %v4321 = vunpack.c.l.b16 %v4179
        %v4322 = vunpack.c.l.b16 %v4180
        %v4323 = vunpack.c.l.b16 %v4181
        %v4324 = vunpack.c.l.b16 %v4182
        %v4325 = vunpack.c.l.b16 %v4183
        %v4326 = vunpack.c.l.b16 %v4184
        %v4327 = vunpack.c.l.b16 %v4185
        %v4328 = vunpack.c.l.b16 %v4186
        %v4329 = vunpack.c.l.b16 %v4187
        %v4330 = vunpack.c.l.b16 %v4188
        %v4331 = vunpack.c.l.b16 %v4189
        %v4332 = vunpack.c.l.b16 %v4190
        %v4333 = vunpack.c.l.b16 %v4191
        %v4334 = vunpack.c.l.b16 %v4192
        %v4335 = vunpack.c.l.b16 %v4193
        %v4336 = vunpack.c.l.b16 %v4194
        %v4337 = vunpack.c.l.b16 %v4195
        %v4338 = vunpack.c.l.b16 %v4196
        %v4339 = vunpack.c.l.b16 %v4197
        %v4340 = vunpack.c.l.b16 %v4198
        %v4341 = vunpack.c.l.b16 %v4199
        %v4342 = vunpack.c.l.b16 %v4200
        %v4343 = vpack.c.b16 %v4273, %v4272
        %v4344 = vpack.c.b16 %v4275, %v4274
        %v4345 = vpack.c.b16 %v4277, %v4276
        %v4346 = vpack.c.b16 %v4279, %v4278
        %v4347 = vpack.c.b16 %v4281, %v4280
        %v4348 = vpack.c.b16 %v4283, %v4282
        %v4349 = vpack.c.b16 %v4285, %v4284
        %v4350 = vpack.c.b16 %v4287, %v4286
        %v4351 = vpack.c.b16 %v4289, %v4288
        %v4352 = vpack.c.b16 %v4291, %v4290
        %v4353 = vpack.c.b16 %v4293, %v4292
        %v4354 = vpack.c.b16 %v4295, %v4294
        %v4355 = vpack.c.b16 %v4297, %v4296
        %v4356 = vpack.c.b16 %v4299, %v4298
        %v4357 = vpack.c.b16 %v4301, %v4300
        %v4358 = vpack.c.b16 %v4303, %v4302
        %v4359 = vpack.c.b16 %v4305, %v4304
        %v4360 = vpack.c.b16 %v4307, %v4306
        %v4361 = vpack.c.b16 %v4309, %v4308
        %v4362 = vpack.c.b16 %v4311, %v4310
        %v4363 = vpack.c.b16 %v4313, %v4312
        %v4364 = vpack.c.b16 %v4315, %v4314
        %v4365 = vpack.c.b16 %v4317, %v4316
        %v4366 = vpack.c.b16 %v4319, %v4318
        %v4367 = vpack.c.b16 %v4321, %v4320
        %v4368 = vpack.c.b16 %v4323, %v4322
        %v4369 = vpack.c.b16 %v4325, %v4324
        %v4370 = vpack.c.b16 %v4327, %v4326
        %v4371 = vpack.c.b16 %v4329, %v4328
        %v4372 = vpack.c.b16 %v4331, %v4330
        %v4373 = vpack.c.b16 %v4333, %v4332
        %v4374 = vpack.c.b16 %v4335, %v4334
        %v4375 = vpack.c.b16 %v4337, %v4336
        %v4376 = vpack.c.b16 %v4339, %v4338
        %v4377 = vpack.c.b16 %v4341, %v4340
        %v4378 = vpack.c.b16 %v4342, %v4342
        %vm4414 = vcmask 449536
        %v4416 = vsel %vm4414, %v4124, 0
        %v4419 = vsel %vm4414, %v4129, 0
        %vm4421 = vcmask 1042432
        %vm4422 = vcmask 1043456
        %v4423 = vsel %vm4421, 4294967295, 65535
        %v4424 = vsel %vm4422, %v4423, 0
        %v4426 = vand.u32 %v4378, %v4424
        %4428 = vmatprep.subr.bf16.mxu0 0
        %4429 = vmatpush1.bf16.msra.mxu0 %v4350
        %4430 = vmatprep.subr.bf16.mxu0 0
        %4431 = vmatpush1.bf16.msra.mxu0 %v4349
        %4432 = vmatprep.subr.bf16.mxu0 0
        %4433 = vmatpush1.bf16.msra.mxu0 %v4348
        %4434 = vmatprep.subr.bf16.mxu0 0
        %4435 = vmatpush1.bf16.msra.mxu0 %v4347
        %4436 = vmatprep.subr.bf16.mxu0 0
        %4437 = vmatpush1.bf16.msra.mxu0 %v4346
        %4438 = vmatprep.subr.bf16.mxu0 0
        %4439 = vmatpush1.bf16.msra.mxu0 %v4345
        %4440 = vmatprep.subr.bf16.mxu0 0
        %4441 = vmatpush1.bf16.msra.mxu0 %v4344
        %4442 = vmatprep.subr.bf16.mxu0 0
        %4443 = vmatpush1.bf16.msra.mxu0 %v4343
        %4444 = vmatprep.subr.bf16.mxu0 0
        %4445 = vmatpush2.bf16.msra.mxu0 %v4358
        %4446 = vmatprep.subr.bf16.mxu0 0
        %4447 = vmatpush2.bf16.msra.mxu0 %v4357
        %4448 = vmatprep.subr.bf16.mxu0 0
        %4449 = vmatpush2.bf16.msra.mxu0 %v4356
        %4450 = vmatprep.subr.bf16.mxu0 0
        %4451 = vmatpush2.bf16.msra.mxu0 %v4355
        %4452 = vmatprep.subr.bf16.mxu0 0
        %4453 = vmatpush2.bf16.msra.mxu0 %v4354
        %4454 = vmatprep.subr.bf16.mxu0 0
        %4455 = vmatpush2.bf16.msra.mxu0 %v4353
        %4456 = vmatprep.subr.bf16.mxu0 0
        %4457 = vmatpush2.bf16.msra.mxu0 %v4352
        %4458 = vmatprep.subr.bf16.mxu0 0
        %4459 = vmatpush2.bf16.msra.mxu0 %v4351
        %4460 = vmatprep.mubr.bf16.mxu0 %v4121
        %4461 = vmatmul.mubr.bf16.gmra.mxu0 %v4120
        %v4462 = vpop.f32.mrf.mxu0
        %v4463 = vadd.f32 0.0, %v4462
        %v4464 = vpop.f32.mrf.mxu0
        %v4465 = vpop.f32.mrf.mxu0
        %v4466 = vadd.f32 0.0, %v4465
        %v4467 = vpop.f32.mrf.mxu0
        %4468 = vmatprep.mubr.bf16.mxu0 %v4126
        %4469 = vmatmul.mubr.bf16.gmra.mxu0 %v4125
        %v4470 = vpop.f32.mrf.mxu0
        %v4471 = vadd.f32 0.0, %v4470
        %v4472 = vpop.f32.mrf.mxu0
        %v4473 = vpop.f32.mrf.mxu0
        %v4474 = vadd.f32 0.0, %v4473
        %v4475 = vpop.f32.mrf.mxu0
        %4476 = vdwg.mxu0
        %4477 = vmatprep.subr.bf16.mxu0 0
        %4478 = vmatpush1.bf16.msra.mxu0 %v4366
        %4479 = vmatprep.subr.bf16.mxu0 0
        %4480 = vmatpush1.bf16.msra.mxu0 %v4365
        %4481 = vmatprep.subr.bf16.mxu0 0
        %4482 = vmatpush1.bf16.msra.mxu0 %v4364
        %4483 = vmatprep.subr.bf16.mxu0 0
        %4484 = vmatpush1.bf16.msra.mxu0 %v4363
        %4485 = vmatprep.subr.bf16.mxu0 0
        %4486 = vmatpush1.bf16.msra.mxu0 %v4362
        %4487 = vmatprep.subr.bf16.mxu0 0
        %4488 = vmatpush1.bf16.msra.mxu0 %v4361
        %4489 = vmatprep.subr.bf16.mxu0 0
        %4490 = vmatpush1.bf16.msra.mxu0 %v4360
        %4491 = vmatprep.subr.bf16.mxu0 0
        %4492 = vmatpush1.bf16.msra.mxu0 %v4359
        %4493 = vmatprep.subr.bf16.mxu0 0
        %4494 = vmatpush2.bf16.msra.mxu0 %v4374
        %4495 = vmatprep.subr.bf16.mxu0 0
        %4496 = vmatpush2.bf16.msra.mxu0 %v4373
        %4497 = vmatprep.subr.bf16.mxu0 0
        %4498 = vmatpush2.bf16.msra.mxu0 %v4372
        %4499 = vmatprep.subr.bf16.mxu0 0
        %4500 = vmatpush2.bf16.msra.mxu0 %v4371
        %4501 = vmatprep.subr.bf16.mxu0 0
        %4502 = vmatpush2.bf16.msra.mxu0 %v4370
        %4503 = vmatprep.subr.bf16.mxu0 0
        %4504 = vmatpush2.bf16.msra.mxu0 %v4369
        %4505 = vmatprep.subr.bf16.mxu0 0
        %4506 = vmatpush2.bf16.msra.mxu0 %v4368
        %4507 = vmatprep.subr.bf16.mxu0 0
        %4508 = vmatpush2.bf16.msra.mxu0 %v4367
        %4509 = vmatprep.mubr.bf16.mxu0 %v4123
        %4510 = vmatmul.mubr.bf16.gmra.mxu0 %v4122
        %v4511 = vpop.f32.mrf.mxu0
        %v4512 = vadd.f32 %v4463, %v4511
        %v4513 = vpop.f32.mrf.mxu0
        %v4514 = vpop.f32.mrf.mxu0
        %v4515 = vadd.f32 %v4466, %v4514
        %v4516 = vpop.f32.mrf.mxu0
        %4517 = vmatprep.mubr.bf16.mxu0 %v4128
        %4518 = vmatmul.mubr.bf16.gmra.mxu0 %v4127
        %v4519 = vpop.f32.mrf.mxu0
        %v4520 = vadd.f32 %v4471, %v4519
        %v4521 = vpop.f32.mrf.mxu0
        %v4522 = vpop.f32.mrf.mxu0
        %v4523 = vadd.f32 %v4474, %v4522
        %v4524 = vpop.f32.mrf.mxu0
        %4525 = vdwg.mxu0
        %4526 = vmatprep.subr.bf16.mxu0 0
        %4527 = vmatpush1.bf16.msra.mxu0 0
        %4528 = vmatprep.subr.bf16.mxu0 0
        %4529 = vmatpush1.bf16.msra.mxu0 0
        %4530 = vmatprep.subr.bf16.mxu0 0
        %4531 = vmatpush1.bf16.msra.mxu0 0
        %4532 = vmatprep.subr.bf16.mxu0 0
        %4533 = vmatpush1.bf16.msra.mxu0 0
        %4534 = vmatprep.subr.bf16.mxu0 0
        %4535 = vmatpush1.bf16.msra.mxu0 %v4426
        %4536 = vmatprep.subr.bf16.mxu0 0
        %4537 = vmatpush1.bf16.msra.mxu0 %v4377
        %4538 = vmatprep.subr.bf16.mxu0 0
        %4539 = vmatpush1.bf16.msra.mxu0 %v4376
        %4540 = vmatprep.subr.bf16.mxu0 0
        %4541 = vmatpush1.bf16.msra.mxu0 %v4375
        %4542 = vmatprep.subr.bf16.mxu0 0
        %4543 = vmatpush2.bf16.msra.mxu0 0
        %4544 = vmatprep.subr.bf16.mxu0 0
        %4545 = vmatpush2.bf16.msra.mxu0 0
        %4546 = vmatprep.subr.bf16.mxu0 0
        %4547 = vmatpush2.bf16.msra.mxu0 0
        %4548 = vmatprep.subr.bf16.mxu0 0
        %4549 = vmatpush2.bf16.msra.mxu0 0
        %4550 = vmatprep.subr.bf16.mxu0 0
        %4551 = vmatpush2.bf16.msra.mxu0 0
        %4552 = vmatprep.subr.bf16.mxu0 0
        %4553 = vmatpush2.bf16.msra.mxu0 0
        %4554 = vmatprep.subr.bf16.mxu0 0
        %4555 = vmatpush2.bf16.msra.mxu0 0
        %4556 = vmatprep.subr.bf16.mxu0 0
        %4557 = vmatpush2.bf16.msra.mxu0 0
        %4558 = vmatprep.mubr.bf16.mxu0 0
        %4559 = vmatmul.mubr.bf16.gmra.mxu0 %v4416
        %v4560 = vpop.f32.mrf.mxu0
        %v4561 = vadd.f32 %v4512, %v4560
        %v4562 = vpop.f32.mrf.mxu0
        %v4563 = vpop.f32.mrf.mxu0
        %v4564 = vadd.f32 %v4515, %v4563
        %v4565 = vpop.f32.mrf.mxu0
        %4566 = vmatprep.mubr.bf16.mxu0 0
        %4567 = vmatmul.mubr.bf16.gmra.mxu0 %v4419
        %v4568 = vpop.f32.mrf.mxu0
        %v4569 = vadd.f32 %v4520, %v4568
        %v4570 = vpop.f32.mrf.mxu0
        %v4571 = vpop.f32.mrf.mxu0
        %v4572 = vadd.f32 %v4523, %v4571
        %v4573 = vpop.f32.mrf.mxu0
        %4574 = vdwg.mxu0
        %v4575 = vld [vmem:[%s9] sm:$0xf]
        %v4576 = vld [vmem:[%s9 + $0x4] sm:$0xf]
        %v4577 = vld [vmem:[%s9 + $0x8] sm:$0xf]
        %v4578 = vld [vmem:[%s9 + $0xc] sm:$0xf]
        %v4579 = vunpack.c.l.bf16 %v4575
        %v4580 = vunpack.c.l.bf16 %v4576
        %v4581 = vunpack.c.l.bf16 %v4577
        %v4582 = vunpack.c.l.bf16 %v4578
        %v4583 = vmul.f32 %v4561, %v4579
        %v4584 = vmul.f32 %v4564, %v4580
        %v4585 = vmul.f32 %v4569, %v4581
        %v4586 = vmul.f32 %v4572, %v4582
        %vm4587 = vcmask 760832
        %v4588 = vsel %vm4587, %v4583, 0.0
        %4589 = vadd.xlane.f32.xlu0 %v4588
        %v4590 = vpop.xlane.xlu0 %4589
        %v4591 = vsel %vm4587, %v4584, 0.0
        %4592 = vadd.xlane.f32.xlu0 %v4591
        %v4593 = vpop.xlane.xlu0 %4592
        %v4594 = vsel %vm4587, %v4585, 0.0
        %4595 = vadd.xlane.f32.xlu0 %v4594
        %v4596 = vpop.xlane.xlu0 %4595
        %vm4597 = vcmask 759808
        %v4598 = vsel %vm4597, %v4586, 0.0
        %4599 = vadd.xlane.f32.xlu0 %v4598
        %v4600 = vpop.xlane.xlu0 %4599
        %s4601 = scalar_lea.vmem %s9, 16
        %v4602 = vld [vmem:[%s4601] sm:$0xf]
        %v4603 = vld [vmem:[%s4601 + $0x4] sm:$0xf]
        %v4604 = vld [vmem:[%s4601 + $0x8] sm:$0xf]
        %v4605 = vld [vmem:[%s4601 + $0xc] sm:$0xf]
        %v4606 = vunpack.c.l.bf16 %v4602
        %v4607 = vunpack.c.l.bf16 %v4603
        %v4608 = vunpack.c.l.bf16 %v4604
        %v4609 = vunpack.c.l.bf16 %v4605
        %v4610 = vmul.f32 %v4561, %v4606
        %v4611 = vmul.f32 %v4564, %v4607
        %v4612 = vmul.f32 %v4569, %v4608
        %v4613 = vmul.f32 %v4572, %v4609
        %v4614 = vsel %vm4587, %v4610, 0.0
        %4615 = vadd.xlane.f32.xlu0 %v4614
        %v4616 = vpop.xlane.xlu0 %4615
        %v4617 = vsel %vm4587, %v4611, 0.0
        %4618 = vadd.xlane.f32.xlu0 %v4617
        %v4619 = vpop.xlane.xlu0 %4618
        %v4620 = vsel %vm4587, %v4612, 0.0
        %4621 = vadd.xlane.f32.xlu0 %v4620
        %v4622 = vpop.xlane.xlu0 %4621
        %v4623 = vsel %vm4597, %v4613, 0.0
        %4624 = vadd.xlane.f32.xlu0 %v4623
        %v4625 = vpop.xlane.xlu0 %4624
        %s4626 = scalar_lea.vmem %s9, 32
        %v4627 = vld [vmem:[%s4626] sm:$0xf]
        %v4628 = vld [vmem:[%s4626 + $0x4] sm:$0xf]
        %v4629 = vld [vmem:[%s4626 + $0x8] sm:$0xf]
        %v4630 = vld [vmem:[%s4626 + $0xc] sm:$0xf]
        %v4631 = vunpack.c.l.bf16 %v4627
        %v4632 = vunpack.c.l.bf16 %v4628
        %v4633 = vunpack.c.l.bf16 %v4629
        %v4634 = vunpack.c.l.bf16 %v4630
        %v4635 = vmul.f32 %v4561, %v4631
        %v4636 = vmul.f32 %v4564, %v4632
        %v4637 = vmul.f32 %v4569, %v4633
        %v4638 = vmul.f32 %v4572, %v4634
        %v4639 = vsel %vm4587, %v4635, 0.0
        %4640 = vadd.xlane.f32.xlu0 %v4639
        %v4641 = vpop.xlane.xlu0 %4640
        %v4642 = vsel %vm4587, %v4636, 0.0
        %4643 = vadd.xlane.f32.xlu0 %v4642
        %v4644 = vpop.xlane.xlu0 %4643
        %v4645 = vsel %vm4587, %v4637, 0.0
        %4646 = vadd.xlane.f32.xlu0 %v4645
        %v4647 = vpop.xlane.xlu0 %4646
        %v4648 = vsel %vm4597, %v4638, 0.0
        %4649 = vadd.xlane.f32.xlu0 %v4648
        %v4650 = vpop.xlane.xlu0 %4649
        %s4651 = scalar_lea.vmem %s9, 48
        %v4652 = vld [vmem:[%s4651] sm:$0xf]
        %v4653 = vld [vmem:[%s4651 + $0x4] sm:$0xf]
        %v4654 = vld [vmem:[%s4651 + $0x8] sm:$0xf]
        %v4655 = vld [vmem:[%s4651 + $0xc] sm:$0xf]
        %v4656 = vunpack.c.l.bf16 %v4652
        %v4657 = vunpack.c.l.bf16 %v4653
        %v4658 = vunpack.c.l.bf16 %v4654
        %v4659 = vunpack.c.l.bf16 %v4655
        %v4660 = vmul.f32 %v4561, %v4656
        %v4661 = vmul.f32 %v4564, %v4657
        %v4662 = vmul.f32 %v4569, %v4658
        %v4663 = vmul.f32 %v4572, %v4659
        %v4664 = vsel %vm4587, %v4660, 0.0
        %4665 = vadd.xlane.f32.xlu0 %v4664
        %v4666 = vpop.xlane.xlu0 %4665
        %v4667 = vsel %vm4587, %v4661, 0.0
        %4668 = vadd.xlane.f32.xlu0 %v4667
        %v4669 = vpop.xlane.xlu0 %4668
        %v4670 = vsel %vm4587, %v4662, 0.0
        %4671 = vadd.xlane.f32.xlu0 %v4670
        %v4672 = vpop.xlane.xlu0 %4671
        %v4673 = vsel %vm4597, %v4663, 0.0
        %4674 = vadd.xlane.f32.xlu0 %v4673
        %v4675 = vpop.xlane.xlu0 %4674
        %s4676 = scalar_lea.vmem %s9, 64
        %v4677 = vld [vmem:[%s4676] sm:$0xf]
        %v4678 = vld [vmem:[%s4676 + $0x4] sm:$0xf]
        %v4679 = vld [vmem:[%s4676 + $0x8] sm:$0xf]
        %v4680 = vld [vmem:[%s4676 + $0xc] sm:$0xf]
        %v4681 = vunpack.c.l.bf16 %v4677
        %v4682 = vunpack.c.l.bf16 %v4678
        %v4683 = vunpack.c.l.bf16 %v4679
        %v4684 = vunpack.c.l.bf16 %v4680
        %v4685 = vmul.f32 %v4561, %v4681
        %v4686 = vmul.f32 %v4564, %v4682
        %v4687 = vmul.f32 %v4569, %v4683
        %v4688 = vmul.f32 %v4572, %v4684
        %v4689 = vsel %vm4587, %v4685, 0.0
        %4690 = vadd.xlane.f32.xlu0 %v4689
        %v4691 = vpop.xlane.xlu0 %4690
        %v4692 = vsel %vm4587, %v4686, 0.0
        %4693 = vadd.xlane.f32.xlu0 %v4692
        %v4694 = vpop.xlane.xlu0 %4693
        %v4695 = vsel %vm4587, %v4687, 0.0
        %4696 = vadd.xlane.f32.xlu0 %v4695
        %v4697 = vpop.xlane.xlu0 %4696
        %v4698 = vsel %vm4597, %v4688, 0.0
        %4699 = vadd.xlane.f32.xlu0 %v4698
        %v4700 = vpop.xlane.xlu0 %4699
        %s4701 = scalar_lea.vmem %s9, 80
        %v4702 = vld [vmem:[%s4701] sm:$0xf]
        %v4703 = vld [vmem:[%s4701 + $0x4] sm:$0xf]
        %v4704 = vld [vmem:[%s4701 + $0x8] sm:$0xf]
        %v4705 = vld [vmem:[%s4701 + $0xc] sm:$0xf]
        %v4706 = vunpack.c.l.bf16 %v4702
        %v4707 = vunpack.c.l.bf16 %v4703
        %v4708 = vunpack.c.l.bf16 %v4704
        %v4709 = vunpack.c.l.bf16 %v4705
        %v4710 = vmul.f32 %v4561, %v4706
        %v4711 = vmul.f32 %v4564, %v4707
        %v4712 = vmul.f32 %v4569, %v4708
        %v4713 = vmul.f32 %v4572, %v4709
        %v4714 = vsel %vm4587, %v4710, 0.0
        %4715 = vadd.xlane.f32.xlu0 %v4714
        %v4716 = vpop.xlane.xlu0 %4715
        %v4717 = vsel %vm4587, %v4711, 0.0
        %4718 = vadd.xlane.f32.xlu0 %v4717
        %v4719 = vpop.xlane.xlu0 %4718
        %v4720 = vsel %vm4587, %v4712, 0.0
        %4721 = vadd.xlane.f32.xlu0 %v4720
        %v4722 = vpop.xlane.xlu0 %4721
        %v4723 = vsel %vm4597, %v4713, 0.0
        %4724 = vadd.xlane.f32.xlu0 %v4723
        %v4725 = vpop.xlane.xlu0 %4724
        %s4726 = scalar_lea.vmem %s9, 96
        %v4727 = vld [vmem:[%s4726] sm:$0xf]
        %v4728 = vld [vmem:[%s4726 + $0x4] sm:$0xf]
        %v4729 = vld [vmem:[%s4726 + $0x8] sm:$0xf]
        %v4730 = vld [vmem:[%s4726 + $0xc] sm:$0xf]
        %v4731 = vunpack.c.l.bf16 %v4727
        %v4732 = vunpack.c.l.bf16 %v4728
        %v4733 = vunpack.c.l.bf16 %v4729
        %v4734 = vunpack.c.l.bf16 %v4730
        %v4735 = vmul.f32 %v4561, %v4731
        %v4736 = vmul.f32 %v4564, %v4732
        %v4737 = vmul.f32 %v4569, %v4733
        %v4738 = vmul.f32 %v4572, %v4734
        %v4739 = vsel %vm4587, %v4735, 0.0
        %4740 = vadd.xlane.f32.xlu0 %v4739
        %v4741 = vpop.xlane.xlu0 %4740
        %v4742 = vsel %vm4587, %v4736, 0.0
        %4743 = vadd.xlane.f32.xlu0 %v4742
        %v4744 = vpop.xlane.xlu0 %4743
        %v4745 = vsel %vm4587, %v4737, 0.0
        %4746 = vadd.xlane.f32.xlu0 %v4745
        %v4747 = vpop.xlane.xlu0 %4746
        %v4748 = vsel %vm4597, %v4738, 0.0
        %4749 = vadd.xlane.f32.xlu0 %v4748
        %v4750 = vpop.xlane.xlu0 %4749
        %s4751 = scalar_lea.vmem %s9, 112
        %v4752 = vld [vmem:[%s4751] sm:$0xf]
        %v4753 = vld [vmem:[%s4751 + $0x4] sm:$0xf]
        %v4754 = vld [vmem:[%s4751 + $0x8] sm:$0xf]
        %v4755 = vld [vmem:[%s4751 + $0xc] sm:$0xf]
        %v4756 = vunpack.c.l.bf16 %v4752
        %v4757 = vunpack.c.l.bf16 %v4753
        %v4758 = vunpack.c.l.bf16 %v4754
        %v4759 = vunpack.c.l.bf16 %v4755
        %v4760 = vmul.f32 %v4561, %v4756
        %v4761 = vmul.f32 %v4564, %v4757
        %v4762 = vmul.f32 %v4569, %v4758
        %v4763 = vmul.f32 %v4572, %v4759
        %v4764 = vsel %vm4587, %v4760, 0.0
        %4765 = vadd.xlane.f32.xlu0 %v4764
        %v4766 = vpop.xlane.xlu0 %4765
        %v4767 = vsel %vm4587, %v4761, 0.0
        %4768 = vadd.xlane.f32.xlu0 %v4767
        %v4769 = vpop.xlane.xlu0 %4768
        %v4770 = vsel %vm4587, %v4762, 0.0
        %4771 = vadd.xlane.f32.xlu0 %v4770
        %v4772 = vpop.xlane.xlu0 %4771
        %v4773 = vsel %vm4597, %v4763, 0.0
        %4774 = vadd.xlane.f32.xlu0 %v4773
        %v4775 = vpop.xlane.xlu0 %4774
        %s4776 = scalar_lea.vmem %s9, 128
        %v4777 = vld [vmem:[%s4776] sm:$0xf]
        %v4778 = vld [vmem:[%s4776 + $0x4] sm:$0xf]
        %v4779 = vld [vmem:[%s4776 + $0x8] sm:$0xf]
        %v4780 = vld [vmem:[%s4776 + $0xc] sm:$0xf]
        %v4781 = vunpack.c.l.bf16 %v4777
        %v4782 = vunpack.c.l.bf16 %v4778
        %v4783 = vunpack.c.l.bf16 %v4779
        %v4784 = vunpack.c.l.bf16 %v4780
        %v4785 = vmul.f32 %v4561, %v4781
        %v4786 = vmul.f32 %v4564, %v4782
        %v4787 = vmul.f32 %v4569, %v4783
        %v4788 = vmul.f32 %v4572, %v4784
        %v4789 = vsel %vm4587, %v4785, 0.0
        %4790 = vadd.xlane.f32.xlu0 %v4789
        %v4791 = vpop.xlane.xlu0 %4790
        %v4792 = vsel %vm4587, %v4786, 0.0
        %4793 = vadd.xlane.f32.xlu0 %v4792
        %v4794 = vpop.xlane.xlu0 %4793
        %v4795 = vsel %vm4587, %v4787, 0.0
        %4796 = vadd.xlane.f32.xlu0 %v4795
        %v4797 = vpop.xlane.xlu0 %4796
        %v4798 = vsel %vm4597, %v4788, 0.0
        %4799 = vadd.xlane.f32.xlu0 %v4798
        %v4800 = vpop.xlane.xlu0 %4799
        %s4801 = scalar_lea.vmem %s9, 144
        %v4802 = vld [vmem:[%s4801] sm:$0xf]
        %v4803 = vld [vmem:[%s4801 + $0x4] sm:$0xf]
        %v4804 = vld [vmem:[%s4801 + $0x8] sm:$0xf]
        %v4805 = vld [vmem:[%s4801 + $0xc] sm:$0xf]
        %v4806 = vunpack.c.l.bf16 %v4802
        %v4807 = vunpack.c.l.bf16 %v4803
        %v4808 = vunpack.c.l.bf16 %v4804
        %v4809 = vunpack.c.l.bf16 %v4805
        %v4810 = vmul.f32 %v4561, %v4806
        %v4811 = vmul.f32 %v4564, %v4807
        %v4812 = vmul.f32 %v4569, %v4808
        %v4813 = vmul.f32 %v4572, %v4809
        %v4814 = vsel %vm4587, %v4810, 0.0
        %4815 = vadd.xlane.f32.xlu0 %v4814
        %v4816 = vpop.xlane.xlu0 %4815
        %v4817 = vsel %vm4587, %v4811, 0.0
        %4818 = vadd.xlane.f32.xlu0 %v4817
        %v4819 = vpop.xlane.xlu0 %4818
        %v4820 = vsel %vm4587, %v4812, 0.0
        %4821 = vadd.xlane.f32.xlu0 %v4820
        %v4822 = vpop.xlane.xlu0 %4821
        %v4823 = vsel %vm4597, %v4813, 0.0
        %4824 = vadd.xlane.f32.xlu0 %v4823
        %v4825 = vpop.xlane.xlu0 %4824
        %s4826 = scalar_lea.vmem %s9, 160
        %v4827 = vld [vmem:[%s4826] sm:$0xf]
        %v4828 = vld [vmem:[%s4826 + $0x4] sm:$0xf]
        %v4829 = vld [vmem:[%s4826 + $0x8] sm:$0xf]
        %v4830 = vld [vmem:[%s4826 + $0xc] sm:$0xf]
        %v4831 = vunpack.c.l.bf16 %v4827
        %v4832 = vunpack.c.l.bf16 %v4828
        %v4833 = vunpack.c.l.bf16 %v4829
        %v4834 = vunpack.c.l.bf16 %v4830
        %v4835 = vmul.f32 %v4561, %v4831
        %v4836 = vmul.f32 %v4564, %v4832
        %v4837 = vmul.f32 %v4569, %v4833
        %v4838 = vmul.f32 %v4572, %v4834
        %v4839 = vsel %vm4587, %v4835, 0.0
        %4840 = vadd.xlane.f32.xlu0 %v4839
        %v4841 = vpop.xlane.xlu0 %4840
        %v4842 = vsel %vm4587, %v4836, 0.0
        %4843 = vadd.xlane.f32.xlu0 %v4842
        %v4844 = vpop.xlane.xlu0 %4843
        %v4845 = vsel %vm4587, %v4837, 0.0
        %4846 = vadd.xlane.f32.xlu0 %v4845
        %v4847 = vpop.xlane.xlu0 %4846
        %v4848 = vsel %vm4597, %v4838, 0.0
        %4849 = vadd.xlane.f32.xlu0 %v4848
        %v4850 = vpop.xlane.xlu0 %4849
        %s4851 = scalar_lea.vmem %s9, 176
        %v4852 = vld [vmem:[%s4851] sm:$0xf]
        %v4853 = vld [vmem:[%s4851 + $0x4] sm:$0xf]
        %v4854 = vld [vmem:[%s4851 + $0x8] sm:$0xf]
        %v4855 = vld [vmem:[%s4851 + $0xc] sm:$0xf]
        %v4856 = vunpack.c.l.bf16 %v4852
        %v4857 = vunpack.c.l.bf16 %v4853
        %v4858 = vunpack.c.l.bf16 %v4854
        %v4859 = vunpack.c.l.bf16 %v4855
        %v4860 = vmul.f32 %v4561, %v4856
        %v4861 = vmul.f32 %v4564, %v4857
        %v4862 = vmul.f32 %v4569, %v4858
        %v4863 = vmul.f32 %v4572, %v4859
        %v4864 = vsel %vm4587, %v4860, 0.0
        %4865 = vadd.xlane.f32.xlu0 %v4864
        %v4866 = vpop.xlane.xlu0 %4865
        %v4867 = vsel %vm4587, %v4861, 0.0
        %4868 = vadd.xlane.f32.xlu0 %v4867
        %v4869 = vpop.xlane.xlu0 %4868
        %v4870 = vsel %vm4587, %v4862, 0.0
        %4871 = vadd.xlane.f32.xlu0 %v4870
        %v4872 = vpop.xlane.xlu0 %4871
        %v4873 = vsel %vm4597, %v4863, 0.0
        %4874 = vadd.xlane.f32.xlu0 %v4873
        %v4875 = vpop.xlane.xlu0 %4874
        %s4876 = scalar_lea.vmem %s9, 192
        %v4877 = vld [vmem:[%s4876] sm:$0xf]
        %v4878 = vld [vmem:[%s4876 + $0x4] sm:$0xf]
        %v4879 = vld [vmem:[%s4876 + $0x8] sm:$0xf]
        %v4880 = vld [vmem:[%s4876 + $0xc] sm:$0xf]
        %v4881 = vunpack.c.l.bf16 %v4877
        %v4882 = vunpack.c.l.bf16 %v4878
        %v4883 = vunpack.c.l.bf16 %v4879
        %v4884 = vunpack.c.l.bf16 %v4880
        %v4885 = vmul.f32 %v4561, %v4881
        %v4886 = vmul.f32 %v4564, %v4882
        %v4887 = vmul.f32 %v4569, %v4883
        %v4888 = vmul.f32 %v4572, %v4884
        %v4889 = vsel %vm4587, %v4885, 0.0
        %4890 = vadd.xlane.f32.xlu0 %v4889
        %v4891 = vpop.xlane.xlu0 %4890
        %v4892 = vsel %vm4587, %v4886, 0.0
        %4893 = vadd.xlane.f32.xlu0 %v4892
        %v4894 = vpop.xlane.xlu0 %4893
        %v4895 = vsel %vm4587, %v4887, 0.0
        %4896 = vadd.xlane.f32.xlu0 %v4895
        %v4897 = vpop.xlane.xlu0 %4896
        %v4898 = vsel %vm4597, %v4888, 0.0
        %4899 = vadd.xlane.f32.xlu0 %v4898
        %v4900 = vpop.xlane.xlu0 %4899
        %s4901 = scalar_lea.vmem %s9, 208
        %v4902 = vld [vmem:[%s4901] sm:$0xf]
        %v4903 = vld [vmem:[%s4901 + $0x4] sm:$0xf]
        %v4904 = vld [vmem:[%s4901 + $0x8] sm:$0xf]
        %v4905 = vld [vmem:[%s4901 + $0xc] sm:$0xf]
        %v4906 = vunpack.c.l.bf16 %v4902
        %v4907 = vunpack.c.l.bf16 %v4903
        %v4908 = vunpack.c.l.bf16 %v4904
        %v4909 = vunpack.c.l.bf16 %v4905
        %v4910 = vmul.f32 %v4561, %v4906
        %v4911 = vmul.f32 %v4564, %v4907
        %v4912 = vmul.f32 %v4569, %v4908
        %v4913 = vmul.f32 %v4572, %v4909
        %v4914 = vsel %vm4587, %v4910, 0.0
        %4915 = vadd.xlane.f32.xlu0 %v4914
        %v4916 = vpop.xlane.xlu0 %4915
        %v4917 = vsel %vm4587, %v4911, 0.0
        %4918 = vadd.xlane.f32.xlu0 %v4917
        %v4919 = vpop.xlane.xlu0 %4918
        %v4920 = vsel %vm4587, %v4912, 0.0
        %4921 = vadd.xlane.f32.xlu0 %v4920
        %v4922 = vpop.xlane.xlu0 %4921
        %v4923 = vsel %vm4597, %v4913, 0.0
        %4924 = vadd.xlane.f32.xlu0 %v4923
        %v4925 = vpop.xlane.xlu0 %4924
        %s4926 = scalar_lea.vmem %s9, 224
        %v4927 = vld [vmem:[%s4926] sm:$0xf]
        %v4928 = vld [vmem:[%s4926 + $0x4] sm:$0xf]
        %v4929 = vld [vmem:[%s4926 + $0x8] sm:$0xf]
        %v4930 = vld [vmem:[%s4926 + $0xc] sm:$0xf]
        %v4931 = vunpack.c.l.bf16 %v4927
        %v4932 = vunpack.c.l.bf16 %v4928
        %v4933 = vunpack.c.l.bf16 %v4929
        %v4934 = vunpack.c.l.bf16 %v4930
        %v4935 = vmul.f32 %v4561, %v4931
        %v4936 = vmul.f32 %v4564, %v4932
        %v4937 = vmul.f32 %v4569, %v4933
        %v4938 = vmul.f32 %v4572, %v4934
        %v4939 = vsel %vm4587, %v4935, 0.0
        %4940 = vadd.xlane.f32.xlu0 %v4939
        %v4941 = vpop.xlane.xlu0 %4940
        %v4942 = vsel %vm4587, %v4936, 0.0
        %4943 = vadd.xlane.f32.xlu0 %v4942
        %v4944 = vpop.xlane.xlu0 %4943
        %v4945 = vsel %vm4587, %v4937, 0.0
        %4946 = vadd.xlane.f32.xlu0 %v4945
        %v4947 = vpop.xlane.xlu0 %4946
        %v4948 = vsel %vm4597, %v4938, 0.0
        %4949 = vadd.xlane.f32.xlu0 %v4948
        %v4950 = vpop.xlane.xlu0 %4949
        %s4951 = scalar_lea.vmem %s9, 240
        %v4952 = vld [vmem:[%s4951] sm:$0xf]
        %v4953 = vld [vmem:[%s4951 + $0x4] sm:$0xf]
        %v4954 = vld [vmem:[%s4951 + $0x8] sm:$0xf]
        %v4955 = vld [vmem:[%s4951 + $0xc] sm:$0xf]
        %v4956 = vunpack.c.l.bf16 %v4952
        %v4957 = vunpack.c.l.bf16 %v4953
        %v4958 = vunpack.c.l.bf16 %v4954
        %v4959 = vunpack.c.l.bf16 %v4955
        %v4960 = vmul.f32 %v4561, %v4956
        %v4961 = vmul.f32 %v4564, %v4957
        %v4962 = vmul.f32 %v4569, %v4958
        %v4963 = vmul.f32 %v4572, %v4959
        %v4964 = vsel %vm4587, %v4960, 0.0
        %4965 = vadd.xlane.f32.xlu0 %v4964
        %v4966 = vpop.xlane.xlu0 %4965
        %v4967 = vsel %vm4587, %v4961, 0.0
        %4968 = vadd.xlane.f32.xlu0 %v4967
        %v4969 = vpop.xlane.xlu0 %4968
        %v4970 = vsel %vm4587, %v4962, 0.0
        %4971 = vadd.xlane.f32.xlu0 %v4970
        %v4972 = vpop.xlane.xlu0 %4971
        %v4973 = vsel %vm4597, %v4963, 0.0
        %4974 = vadd.xlane.f32.xlu0 %v4973
        %v4975 = vpop.xlane.xlu0 %4974
        %vm4976 = vcmask 7168
        %v4977 = vsel %vm4976, %v4590, %v4616
        %v4978 = vsel %vm4976, %v4593, %v4619
        %v4979 = vsel %vm4976, %v4596, %v4622
        %v4980 = vsel %vm4976, %v4600, %v4625
        %vm4981 = vcmask 15360
        %v4982 = vsel %vm4981, %v4977, %v4641
        %v4983 = vsel %vm4981, %v4978, %v4644
        %v4984 = vsel %vm4981, %v4979, %v4647
        %v4985 = vsel %vm4981, %v4980, %v4650
        %vm4986 = vcmask 23552
        %v4987 = vsel %vm4986, %v4982, %v4666
        %v4988 = vsel %vm4986, %v4983, %v4669
        %v4989 = vsel %vm4986, %v4984, %v4672
        %v4990 = vsel %vm4986, %v4985, %v4675
        %vm4991 = vcmask 31744
        %v4992 = vsel %vm4991, %v4987, %v4691
        %v4993 = vsel %vm4991, %v4988, %v4694
        %v4994 = vsel %vm4991, %v4989, %v4697
        %v4995 = vsel %vm4991, %v4990, %v4700
        %vm4996 = vcmask 39936
        %v4997 = vsel %vm4996, %v4992, %v4716
        %v4998 = vsel %vm4996, %v4993, %v4719
        %v4999 = vsel %vm4996, %v4994, %v4722
        %v5000 = vsel %vm4996, %v4995, %v4725
        %vm5001 = vcmask 48128
        %v5002 = vsel %vm5001, %v4997, %v4741
        %v5003 = vsel %vm5001, %v4998, %v4744
        %v5004 = vsel %vm5001, %v4999, %v4747
        %v5005 = vsel %vm5001, %v5000, %v4750
        %vm5006 = vcmask 56320
        %v5007 = vsel %vm5006, %v5002, %v4766
        %v5008 = vsel %vm5006, %v5003, %v4769
        %v5009 = vsel %vm5006, %v5004, %v4772
        %v5010 = vsel %vm5006, %v5005, %v4775
        %v5011 = vsel %vm738, %v5007, %v4791
        %v5012 = vsel %vm738, %v5008, %v4794
        %v5013 = vsel %vm738, %v5009, %v4797
        %v5014 = vsel %vm738, %v5010, %v4800
        %vm5015 = vcmask 72704
        %v5016 = vsel %vm5015, %v5011, %v4816
        %v5017 = vsel %vm5015, %v5012, %v4819
        %v5018 = vsel %vm5015, %v5013, %v4822
        %v5019 = vsel %vm5015, %v5014, %v4825
        %vm5020 = vcmask 80896
        %v5021 = vsel %vm5020, %v5016, %v4841
        %v5022 = vsel %vm5020, %v5017, %v4844
        %v5023 = vsel %vm5020, %v5018, %v4847
        %v5024 = vsel %vm5020, %v5019, %v4850
        %vm5025 = vcmask 89088
        %v5026 = vsel %vm5025, %v5021, %v4866
        %v5027 = vsel %vm5025, %v5022, %v4869
        %v5028 = vsel %vm5025, %v5023, %v4872
        %v5029 = vsel %vm5025, %v5024, %v4875
        %vm5030 = vcmask 97280
        %v5031 = vsel %vm5030, %v5026, %v4891
        %v5032 = vsel %vm5030, %v5027, %v4894
        %v5033 = vsel %vm5030, %v5028, %v4897
        %v5034 = vsel %vm5030, %v5029, %v4900
        %vm5035 = vcmask 105472
        %v5036 = vsel %vm5035, %v5031, %v4916
        %v5037 = vsel %vm5035, %v5032, %v4919
        %v5038 = vsel %vm5035, %v5033, %v4922
        %v5039 = vsel %vm5035, %v5034, %v4925
        %vm5040 = vcmask 113664
        %v5041 = vsel %vm5040, %v5036, %v4941
        %v5042 = vsel %vm5040, %v5037, %v4944
        %v5043 = vsel %vm5040, %v5038, %v4947
        %v5044 = vsel %vm5040, %v5039, %v4950
        %vm5045 = vcmask 121856
        %v5046 = vsel %vm5045, %v5041, %v4966
        %v5047 = vsel %vm5045, %v5042, %v4969
        %v5048 = vsel %vm5045, %v5043, %v4972
        %v5049 = vsel %vm5045, %v5044, %v4975
        %vm5050 = vcmask 130048
        %v5051 = vsel %vm5050, %v5046, 0.0
        %v5052 = vsel %vm5050, %v5047, 0.0
        %v5053 = vadd.f32 %v5051, %v5052
        %v5054 = vsel %vm5050, %v5048, 0.0
        %v5055 = vadd.f32 %v5053, %v5054
        %vm5056 = vcmask 129024
        %v5057 = vsel %vm5056, %v5049, 0.0
        %v5058 = vadd.f32 %v5055, %v5057
        %v5059 = vrot.slane %v5058, 4
        %v5060 = vadd.f32 %v5058, %v5059
        %v5061 = vrot.slane %v5060, 2
        %v5062 = vadd.f32 %v5060, %v5061
        %v5063 = vrot.slane %v5062, 1
        %v5064 = vadd.f32 %v5062, %v5063
        %v5065 = vld [vmem:[%s10] sm:$0x1]
        %v5066 = vadd.f32 %v5064, %v5065
        %vm5067 = vcmask 122880
        %5068 = vst.msk [vmem:[%s376] sm:$0x1] %vm5067, %v5066
        %s5069 = sand.u32 %s269, 1
        %s5070 = scalar_lea.sflag [#allocation3], %s5069
        %s5071 = sand.u32 %s269, 1
        %s5072 = scalar_lea.vmem [#allocation2], %s5071
        // Predicated region
        $region65: #{down_classifier_forward.1} parent=63 // pred_check
          %p5073 = pneg %p279
        $region66: #{down_classifier_forward.1} parent=63 // pred_check_branch
          %5075 = sbr.rel (%p5073) target = $region68
        $region67: #{down_classifier_forward.1} parent=63 // pred_region
          %s5077 = ssub.s32 16, 16
          %5078 = vsyncadd %s5070, %s5077
          %s5079 = smul.addr %s25, 16
          %s5080 = scalar_lea.hbm %s11, %s5079
          %s5082 = sshll.u32 %s5072, 4
          %s5083 = int_to_ptr.vmem [resolvable:$true] %s5082
          %5085 = dma.vmem_to_hbm [thread:$0]  %s5083, 16, %s5080, %s5070
        $region68: #{down_classifier_forward.1} parent=63 // pred_fallthru
          _
      $region64: #{down_classifier_forward.1} parent=5 // pred_fallthru
        _
      %p5086 = scmp.le.s32.totalorder 2, %s20
      // Predicated region
      $region69: #{down_classifier_forward.1} parent=5 // pred_check
        %p5087 = pneg %p5086
      $region70: #{down_classifier_forward.1} parent=5 // pred_check_branch
        %5089 = sbr.rel (%p5087) target = $region72
      $region71: #{down_classifier_forward.1} parent=5 // pred_region
        %s5090 = ssub.s32 %s20, 2
        // Predicated region
        $region73: #{down_classifier_forward.1} parent=71 // pred_check
          %p5091 = pneg %p285
        $region74: #{down_classifier_forward.1} parent=71 // pred_check_branch
          %5093 = sbr.rel (%p5091) target = $region76
        $region75: #{down_classifier_forward.1} parent=71 // pred_region
          %s5094 = sand.u32 %s270, 1
          %s5095 = scalar_lea.sflag [#allocation3], %s5094
          %s5096 = sand.u32 %s270, 1
          %s5097 = scalar_lea.vmem [#allocation2], %s5096
          %5098 = dma.done %s5095, 16
        $region76: #{down_classifier_forward.1} parent=71 // pred_fallthru
          _
      $region72: #{down_classifier_forward.1} parent=5 // pred_fallthru
        _
    $region6: #{down_classifier_forward.1} parent=1 // loop_footer
      %s24 = sadd.s32 1, %s20
    $region7: #{down_classifier_forward.1} parent=1 // loop_footer_branch
      %19 = sbr.rel target = $region3
    $region8: #{down_classifier_forward.1} parent=1 // loop_exit
      _
    %5099 = vsyncpa [#allocation3], 1
    %s5100 = scalar_lea.sflag [#allocation3], 1
    %5101 = vsyncpa %s5100, 1

</llo_original>
